<compile_context>
chip_gen: v5e
topology: v5e:2x2
jax: 0.10.0
libtpu: 0.0.40
codegen_flags: <defaults>
</compile_context>

<pallas_src>
import functools

import jax
import jax.numpy as jnp
from jax.experimental import pallas as pl
from jax.experimental.pallas import tpu as pltpu

INPUT_DIM = 28
NOISE_DIM = 100
BN_EPS = 1e-5

NOISE_PAD = 128                      # 100 -> 128 (lane multiple)
OUT_DIM = INPUT_DIM * INPUT_DIM      # 784
OUT_PAD = 896                        # 784 -> 7 * 128 (lane multiple)


def generator_kernel(
    z_ref,                                   # (B, 128)   f32  (K zero-padded)
    w1_ref, b1_ref,                          # (128,128)  bf16, (1,128)  f32
    w2_ref, b2_ref, g2_ref, be2_ref,         # (128,256)  bf16, f32 x3
    w3_ref, b3_ref, g3_ref, be3_ref,         # (256,512)  bf16, f32 x3
    w4_ref, b4_ref, g4_ref, be4_ref,         # (512,1024) bf16, f32 x3
    w5_hbm_ref, b5_ref,                      # (1024,896) bf16 in HBM, (1,896) f32
    out_ref,                                 # (B, 896)   f32
    w5_vmem, w5_sem,                         # scratch: VMEM staging + DMA sem
):
    # Kick off the largest weight transfer immediately; it overlaps layers 1-4.
    w5_copy = pltpu.make_async_copy(w5_hbm_ref, w5_vmem, w5_sem)
    w5_copy.start()

    def bn_relu(x, gamma, beta):
        # One-pass batch stats (training-mode BatchNorm1d, biased variance),
        # folded into a single fused multiply-add per element.
        mu = jnp.mean(x, axis=0, keepdims=True)
        var = jnp.maximum(jnp.mean(x * x, axis=0, keepdims=True) - mu * mu, 0.0)
        scale = gamma * jax.lax.rsqrt(var + BN_EPS)
        shift = beta - mu * scale
        return jnp.maximum(x * scale + shift, 0.0)

    # block(noise_dim, 128, normalize=False): Linear + ReLU
    z = z_ref[...].astype(jnp.bfloat16)
    h = jnp.dot(z, w1_ref[...], preferred_element_type=jnp.float32) + b1_ref[...]
    h = jnp.maximum(h, 0.0)

    # block(128, 256): Linear + BN + ReLU
    h = jnp.dot(h.astype(jnp.bfloat16), w2_ref[...],
                preferred_element_type=jnp.float32) + b2_ref[...]
    h = bn_relu(h, g2_ref[...], be2_ref[...])

    # block(256, 512): Linear + BN + ReLU
    h = jnp.dot(h.astype(jnp.bfloat16), w3_ref[...],
                preferred_element_type=jnp.float32) + b3_ref[...]
    h = bn_relu(h, g3_ref[...], be3_ref[...])

    # block(512, 1024): Linear + BN + ReLU
    h = jnp.dot(h.astype(jnp.bfloat16), w4_ref[...],
                preferred_element_type=jnp.float32) + b4_ref[...]
    h = bn_relu(h, g4_ref[...], be4_ref[...])

    # Linear(1024, 784->896 padded) + Tanh
    w5_copy.wait()
    h = jnp.dot(h.astype(jnp.bfloat16), w5_vmem[...],
                preferred_element_type=jnp.float32) + b5_ref[...]
    out_ref[...] = jnp.tanh(h)


@jax.jit
def generator_forward(z, params):
    """z: (B, NOISE_DIM) float32 -> img: (B, 1, 28, 28) float32."""
    B = z.shape[0]
    # Zero-pad the noise features 100 -> 128 (w1 rows 100..127 are zero).
    z_pad = jnp.pad(z.astype(jnp.float32), ((0, 0), (0, NOISE_PAD - NOISE_DIM)))

    args = (
        z_pad,
        params["w1"], params["b1"],
        params["w2"], params["b2"], params["g2"], params["be2"],
        params["w3"], params["b3"], params["g3"], params["be3"],
        params["w4"], params["b4"], params["g4"], params["be4"],
        params["w5"], params["b5"],
    )
    vmem_spec = pl.BlockSpec(memory_space=pltpu.MemorySpace.VMEM)
    hbm_spec = pl.BlockSpec(memory_space=pl.ANY)   # w5 streamed manually
    in_specs = [vmem_spec] * 15 + [hbm_spec, vmem_spec]

    flat = pl.pallas_call(
        generator_kernel,
        out_shape=jax.ShapeDtypeStruct((B, OUT_PAD), jnp.float32),
        in_specs=in_specs,
        out_specs=vmem_spec,
        scratch_shapes=[
            pltpu.VMEM((1024, OUT_PAD), jnp.bfloat16),
            pltpu.SemaphoreType.DMA(()),
        ],
        compiler_params=pltpu.CompilerParams(vmem_limit_bytes=32 * 1024 * 1024),
    )(*args)

    # Drop lane padding and reshape: img = img.view(-1, 1, input_dim, input_dim)
    return flat[:, :OUT_DIM].reshape(B, 1, INPUT_DIM, INPUT_DIM)


def init_params(key):
    """Deterministic init mimicking PyTorch Linear default (uniform +-1/sqrt(fan_in)).

    Weights are stored in bfloat16 (MXU-native, halves HBM traffic); biases and
    BatchNorm affine params stay float32.
    """
    dims = [NOISE_DIM, 128, 256, 512, 1024, OUT_DIM]
    params = {}
    keys = jax.random.split(key, 2 * (len(dims) - 1))
    for i in range(len(dims) - 1):
        fan_in, fan_out = dims[i], dims[i + 1]
        bound = 1.0 / jnp.sqrt(fan_in)
        # stored as (in, out) so the kernel does x @ w (== PyTorch x @ W.T)
        w = jax.random.uniform(keys[2 * i], (fan_in, fan_out), jnp.float32,
                               -bound, bound)
        b = jax.random.uniform(keys[2 * i + 1], (1, fan_out), jnp.float32,
                               -bound, bound)
        params[f"w{i+1}"] = w
        params[f"b{i+1}"] = b

    # Lane padding: w1 K dim 100 -> 128 (zero rows), w5/b5 N dim 784 -> 896
    # (zero columns; padded outputs become tanh(0)=0 and are sliced off).
    params["w1"] = jnp.pad(params["w1"], ((0, NOISE_PAD - NOISE_DIM), (0, 0)))
    params["w5"] = jnp.pad(params["w5"], ((0, 0), (0, OUT_PAD - OUT_DIM)))
    params["b5"] = jnp.pad(params["b5"], ((0, 0), (0, OUT_PAD - OUT_DIM)))

    # Cast weights to bf16 (biases stay f32 for the f32 accumulator add).
    for i in range(1, 6):
        params[f"w{i}"] = params[f"w{i}"].astype(jnp.bfloat16)

    # BatchNorm affine params for layers 2..4 (PyTorch init: gamma=1, beta=0).
    for i, f in zip((2, 3, 4), (256, 512, 1024)):
        params[f"g{i}"] = jnp.ones((1, f), jnp.float32)
        params[f"be{i}"] = jnp.zeros((1, f), jnp.float32)
    return params


if __name__ == "__main__":
    key = jax.random.PRNGKey(0)
    pkey, zkey = jax.random.split(key)
    params = init_params(pkey)

    B = 8  # small batch (sublane-aligned)
    z = jax.random.normal(zkey, (B, NOISE_DIM), dtype=jnp.float32)

    img = generator_forward(z, params)
    jax.block_until_ready(img)

    assert img.shape == (B, 1, INPUT_DIM, INPUT_DIM), img.shape
    assert bool(jnp.all(jnp.abs(img) <= 1.0 + 1e-6))  # tanh range sanity check
    assert bool(jnp.all(jnp.isfinite(img)))
    print("KERNEL_OK")
</pallas_src>

<mosaic_0001>
module attributes {stable_mosaic.version = 11 : i64} {
  func.func @generator_kernel(%arg0: memref<8x128xf32, #tpu.memory_space<vmem>>, %arg1: memref<128x128xbf16, #tpu.memory_space<vmem>>, %arg2: memref<1x128xf32, #tpu.memory_space<vmem>>, %arg3: memref<128x256xbf16, #tpu.memory_space<vmem>>, %arg4: memref<1x256xf32, #tpu.memory_space<vmem>>, %arg5: memref<1x256xf32, #tpu.memory_space<vmem>>, %arg6: memref<1x256xf32, #tpu.memory_space<vmem>>, %arg7: memref<256x512xbf16, #tpu.memory_space<vmem>>, %arg8: memref<1x512xf32, #tpu.memory_space<vmem>>, %arg9: memref<1x512xf32, #tpu.memory_space<vmem>>, %arg10: memref<1x512xf32, #tpu.memory_space<vmem>>, %arg11: memref<512x1024xbf16, #tpu.memory_space<vmem>>, %arg12: memref<1x1024xf32, #tpu.memory_space<vmem>>, %arg13: memref<1x1024xf32, #tpu.memory_space<vmem>>, %arg14: memref<1x1024xf32, #tpu.memory_space<vmem>>, %arg15: memref<1024x896xbf16, #tpu.memory_space<any>>, %arg16: memref<1x896xf32, #tpu.memory_space<vmem>>, %arg17: memref<8x896xf32, #tpu.memory_space<vmem>>, %arg18: memref<1024x896xbf16, #tpu.memory_space<vmem>>, %arg19: memref<!tpu.dma_semaphore, #tpu.memory_space<semaphore_mem>>) attributes {dimension_semantics = [], scalar_prefetch = 0 : i64, scratch_operands = 2 : i64, tpu.core_type = #tpu.core_type<tc>} {
    tpu.enqueue_dma source(%arg15 : memref<1024x896xbf16, #tpu.memory_space<any>>) target(%arg18 : memref<1024x896xbf16, #tpu.memory_space<vmem>>) target_semaphore(%arg19 : memref<!tpu.dma_semaphore, #tpu.memory_space<semaphore_mem>>)
    %c0 = arith.constant 0 : index
    %c0_0 = arith.constant 0 : index
    %0 = vector.load %arg0[%c0, %c0_0] : memref<8x128xf32, #tpu.memory_space<vmem>>, vector<8x128xf32>
    %1 = arith.truncf %0 : vector<8x128xf32> to vector<8x128xbf16>
    %c0_1 = arith.constant 0 : index
    %c0_2 = arith.constant 0 : index
    %2 = vector.load %arg1[%c0_1, %c0_2] : memref<128x128xbf16, #tpu.memory_space<vmem>>, vector<128x128xbf16>
    %cst = arith.constant dense<0.000000e+00> : vector<8x128xf32>
    %3 = tpu.matmul %1, %2, %cst {dimension_numbers = #tpu.dot_dimension_numbers<[1], [0], [0], [1], [0, 0, 1, 1], [], []>} : vector<8x128xbf16>, vector<128x128xbf16>, vector<8x128xf32> -> vector<8x128xf32>
    %c0_3 = arith.constant 0 : index
    %c0_4 = arith.constant 0 : index
    %4 = vector.load %arg2[%c0_3, %c0_4] : memref<1x128xf32, #tpu.memory_space<vmem>>, vector<1x128xf32>
    %5 = vector.broadcast %4 : vector<1x128xf32> to vector<8x128xf32>
    %6 = arith.addf %3, %5 : vector<8x128xf32>
    %cst_5 = arith.constant 0.000000e+00 : f32
    %7 = vector.broadcast %cst_5 : f32 to vector<8x128xf32>
    %8 = arith.maximumf %6, %7 : vector<8x128xf32>
    %9 = arith.truncf %8 : vector<8x128xf32> to vector<8x128xbf16>
    %c0_6 = arith.constant 0 : index
    %c0_7 = arith.constant 0 : index
    %10 = vector.load %arg3[%c0_6, %c0_7] : memref<128x256xbf16, #tpu.memory_space<vmem>>, vector<128x256xbf16>
    %cst_8 = arith.constant dense<0.000000e+00> : vector<8x256xf32>
    %11 = tpu.matmul %9, %10, %cst_8 {dimension_numbers = #tpu.dot_dimension_numbers<[1], [0], [0], [1], [0, 0, 1, 1], [], []>} : vector<8x128xbf16>, vector<128x256xbf16>, vector<8x256xf32> -> vector<8x256xf32>
    %c0_9 = arith.constant 0 : index
    %c0_10 = arith.constant 0 : index
    %12 = vector.load %arg4[%c0_9, %c0_10] : memref<1x256xf32, #tpu.memory_space<vmem>>, vector<1x256xf32>
    %13 = vector.broadcast %12 : vector<1x256xf32> to vector<8x256xf32>
    %14 = arith.addf %11, %13 : vector<8x256xf32>
    %c0_11 = arith.constant 0 : index
    %c0_12 = arith.constant 0 : index
    %15 = vector.load %arg5[%c0_11, %c0_12] : memref<1x256xf32, #tpu.memory_space<vmem>>, vector<1x256xf32>
    %c0_13 = arith.constant 0 : index
    %c0_14 = arith.constant 0 : index
    %16 = vector.load %arg6[%c0_13, %c0_14] : memref<1x256xf32, #tpu.memory_space<vmem>>, vector<1x256xf32>
    %cst_15 = arith.constant dense<0.000000e+00> : vector<256xf32>
    %17 = vector.multi_reduction <add>, %14, %cst_15 [0] : vector<8x256xf32> to vector<256xf32>
    %18 = vector.shape_cast %17 : vector<256xf32> to vector<1x256xf32>
    %cst_16 = arith.constant 8.000000e+00 : f32
    %19 = vector.broadcast %cst_16 : f32 to vector<1x256xf32>
    %20 = arith.divf %18, %19 : vector<1x256xf32>
    %21 = arith.mulf %14, %14 : vector<8x256xf32>
    %cst_17 = arith.constant dense<0.000000e+00> : vector<256xf32>
    %22 = vector.multi_reduction <add>, %21, %cst_17 [0] : vector<8x256xf32> to vector<256xf32>
    %23 = vector.shape_cast %22 : vector<256xf32> to vector<1x256xf32>
    %cst_18 = arith.constant 8.000000e+00 : f32
    %24 = vector.broadcast %cst_18 : f32 to vector<1x256xf32>
    %25 = arith.divf %23, %24 : vector<1x256xf32>
    %26 = arith.mulf %20, %20 : vector<1x256xf32>
    %27 = arith.subf %25, %26 : vector<1x256xf32>
    %cst_19 = arith.constant 0.000000e+00 : f32
    %28 = vector.broadcast %cst_19 : f32 to vector<1x256xf32>
    %29 = arith.maximumf %27, %28 : vector<1x256xf32>
    %cst_20 = arith.constant 9.99999974E-6 : f32
    %30 = vector.broadcast %cst_20 : f32 to vector<1x256xf32>
    %31 = arith.addf %29, %30 : vector<1x256xf32>
    %32 = math.rsqrt %31 : vector<1x256xf32>
    %33 = arith.mulf %15, %32 : vector<1x256xf32>
    %34 = arith.mulf %20, %33 : vector<1x256xf32>
    %35 = arith.subf %16, %34 : vector<1x256xf32>
    %36 = vector.broadcast %33 : vector<1x256xf32> to vector<8x256xf32>
    %37 = arith.mulf %14, %36 : vector<8x256xf32>
    %38 = vector.broadcast %35 : vector<1x256xf32> to vector<8x256xf32>
    %39 = arith.addf %37, %38 : vector<8x256xf32>
    %cst_21 = arith.constant 0.000000e+00 : f32
    %40 = vector.broadcast %cst_21 : f32 to vector<8x256xf32>
    %41 = arith.maximumf %39, %40 : vector<8x256xf32>
    %42 = arith.truncf %41 : vector<8x256xf32> to vector<8x256xbf16>
    %c0_22 = arith.constant 0 : index
    %c0_23 = arith.constant 0 : index
    %43 = vector.load %arg7[%c0_22, %c0_23] : memref<256x512xbf16, #tpu.memory_space<vmem>>, vector<256x512xbf16>
    %cst_24 = arith.constant dense<0.000000e+00> : vector<8x512xf32>
    %44 = tpu.matmul %42, %43, %cst_24 {dimension_numbers = #tpu.dot_dimension_numbers<[1], [0], [0], [1], [0, 0, 1, 1], [], []>} : vector<8x256xbf16>, vector<256x512xbf16>, vector<8x512xf32> -> vector<8x512xf32>
    %c0_25 = arith.constant 0 : index
    %c0_26 = arith.constant 0 : index
    %45 = vector.load %arg8[%c0_25, %c0_26] : memref<1x512xf32, #tpu.memory_space<vmem>>, vector<1x512xf32>
    %46 = vector.broadcast %45 : vector<1x512xf32> to vector<8x512xf32>
    %47 = arith.addf %44, %46 : vector<8x512xf32>
    %c0_27 = arith.constant 0 : index
    %c0_28 = arith.constant 0 : index
    %48 = vector.load %arg9[%c0_27, %c0_28] : memref<1x512xf32, #tpu.memory_space<vmem>>, vector<1x512xf32>
    %c0_29 = arith.constant 0 : index
    %c0_30 = arith.constant 0 : index
    %49 = vector.load %arg10[%c0_29, %c0_30] : memref<1x512xf32, #tpu.memory_space<vmem>>, vector<1x512xf32>
    %cst_31 = arith.constant dense<0.000000e+00> : vector<512xf32>
    %50 = vector.multi_reduction <add>, %47, %cst_31 [0] : vector<8x512xf32> to vector<512xf32>
    %51 = vector.shape_cast %50 : vector<512xf32> to vector<1x512xf32>
    %cst_32 = arith.constant 8.000000e+00 : f32
    %52 = vector.broadcast %cst_32 : f32 to vector<1x512xf32>
    %53 = arith.divf %51, %52 : vector<1x512xf32>
    %54 = arith.mulf %47, %47 : vector<8x512xf32>
    %cst_33 = arith.constant dense<0.000000e+00> : vector<512xf32>
    %55 = vector.multi_reduction <add>, %54, %cst_33 [0] : vector<8x512xf32> to vector<512xf32>
    %56 = vector.shape_cast %55 : vector<512xf32> to vector<1x512xf32>
    %cst_34 = arith.constant 8.000000e+00 : f32
    %57 = vector.broadcast %cst_34 : f32 to vector<1x512xf32>
    %58 = arith.divf %56, %57 : vector<1x512xf32>
    %59 = arith.mulf %53, %53 : vector<1x512xf32>
    %60 = arith.subf %58, %59 : vector<1x512xf32>
    %cst_35 = arith.constant 0.000000e+00 : f32
    %61 = vector.broadcast %cst_35 : f32 to vector<1x512xf32>
    %62 = arith.maximumf %60, %61 : vector<1x512xf32>
    %cst_36 = arith.constant 9.99999974E-6 : f32
    %63 = vector.broadcast %cst_36 : f32 to vector<1x512xf32>
    %64 = arith.addf %62, %63 : vector<1x512xf32>
    %65 = math.rsqrt %64 : vector<1x512xf32>
    %66 = arith.mulf %48, %65 : vector<1x512xf32>
    %67 = arith.mulf %53, %66 : vector<1x512xf32>
    %68 = arith.subf %49, %67 : vector<1x512xf32>
    %69 = vector.broadcast %66 : vector<1x512xf32> to vector<8x512xf32>
    %70 = arith.mulf %47, %69 : vector<8x512xf32>
    %71 = vector.broadcast %68 : vector<1x512xf32> to vector<8x512xf32>
    %72 = arith.addf %70, %71 : vector<8x512xf32>
    %cst_37 = arith.constant 0.000000e+00 : f32
    %73 = vector.broadcast %cst_37 : f32 to vector<8x512xf32>
    %74 = arith.maximumf %72, %73 : vector<8x512xf32>
    %75 = arith.truncf %74 : vector<8x512xf32> to vector<8x512xbf16>
    %c0_38 = arith.constant 0 : index
    %c0_39 = arith.constant 0 : index
    %76 = vector.load %arg11[%c0_38, %c0_39] : memref<512x1024xbf16, #tpu.memory_space<vmem>>, vector<512x1024xbf16>
    %cst_40 = arith.constant dense<0.000000e+00> : vector<8x1024xf32>
    %77 = tpu.matmul %75, %76, %cst_40 {dimension_numbers = #tpu.dot_dimension_numbers<[1], [0], [0], [1], [0, 0, 1, 1], [], []>} : vector<8x512xbf16>, vector<512x1024xbf16>, vector<8x1024xf32> -> vector<8x1024xf32>
    %c0_41 = arith.constant 0 : index
    %c0_42 = arith.constant 0 : index
    %78 = vector.load %arg12[%c0_41, %c0_42] : memref<1x1024xf32, #tpu.memory_space<vmem>>, vector<1x1024xf32>
    %79 = vector.broadcast %78 : vector<1x1024xf32> to vector<8x1024xf32>
    %80 = arith.addf %77, %79 : vector<8x1024xf32>
    %c0_43 = arith.constant 0 : index
    %c0_44 = arith.constant 0 : index
    %81 = vector.load %arg13[%c0_43, %c0_44] : memref<1x1024xf32, #tpu.memory_space<vmem>>, vector<1x1024xf32>
    %c0_45 = arith.constant 0 : index
    %c0_46 = arith.constant 0 : index
    %82 = vector.load %arg14[%c0_45, %c0_46] : memref<1x1024xf32, #tpu.memory_space<vmem>>, vector<1x1024xf32>
    %cst_47 = arith.constant dense<0.000000e+00> : vector<1024xf32>
    %83 = vector.multi_reduction <add>, %80, %cst_47 [0] : vector<8x1024xf32> to vector<1024xf32>
    %84 = vector.shape_cast %83 : vector<1024xf32> to vector<1x1024xf32>
    %cst_48 = arith.constant 8.000000e+00 : f32
    %85 = vector.broadcast %cst_48 : f32 to vector<1x1024xf32>
    %86 = arith.divf %84, %85 : vector<1x1024xf32>
    %87 = arith.mulf %80, %80 : vector<8x1024xf32>
    %cst_49 = arith.constant dense<0.000000e+00> : vector<1024xf32>
    %88 = vector.multi_reduction <add>, %87, %cst_49 [0] : vector<8x1024xf32> to vector<1024xf32>
    %89 = vector.shape_cast %88 : vector<1024xf32> to vector<1x1024xf32>
    %cst_50 = arith.constant 8.000000e+00 : f32
    %90 = vector.broadcast %cst_50 : f32 to vector<1x1024xf32>
    %91 = arith.divf %89, %90 : vector<1x1024xf32>
    %92 = arith.mulf %86, %86 : vector<1x1024xf32>
    %93 = arith.subf %91, %92 : vector<1x1024xf32>
    %cst_51 = arith.constant 0.000000e+00 : f32
    %94 = vector.broadcast %cst_51 : f32 to vector<1x1024xf32>
    %95 = arith.maximumf %93, %94 : vector<1x1024xf32>
    %cst_52 = arith.constant 9.99999974E-6 : f32
    %96 = vector.broadcast %cst_52 : f32 to vector<1x1024xf32>
    %97 = arith.addf %95, %96 : vector<1x1024xf32>
    %98 = math.rsqrt %97 : vector<1x1024xf32>
    %99 = arith.mulf %81, %98 : vector<1x1024xf32>
    %100 = arith.mulf %86, %99 : vector<1x1024xf32>
    %101 = arith.subf %82, %100 : vector<1x1024xf32>
    %102 = vector.broadcast %99 : vector<1x1024xf32> to vector<8x1024xf32>
    %103 = arith.mulf %80, %102 : vector<8x1024xf32>
    %104 = vector.broadcast %101 : vector<1x1024xf32> to vector<8x1024xf32>
    %105 = arith.addf %103, %104 : vector<8x1024xf32>
    %cst_53 = arith.constant 0.000000e+00 : f32
    %106 = vector.broadcast %cst_53 : f32 to vector<8x1024xf32>
    %107 = arith.maximumf %105, %106 : vector<8x1024xf32>
    tpu.wait_dma2 semaphore(%arg19 : memref<!tpu.dma_semaphore, #tpu.memory_space<semaphore_mem>>) src(%arg15 : memref<1024x896xbf16, #tpu.memory_space<any>>) dst(%arg18 : memref<1024x896xbf16, #tpu.memory_space<vmem>>)
    %108 = arith.truncf %107 : vector<8x1024xf32> to vector<8x1024xbf16>
    %c0_54 = arith.constant 0 : index
    %c0_55 = arith.constant 0 : index
    %109 = vector.load %arg18[%c0_54, %c0_55] : memref<1024x896xbf16, #tpu.memory_space<vmem>>, vector<1024x896xbf16>
    %cst_56 = arith.constant dense<0.000000e+00> : vector<8x896xf32>
    %110 = tpu.matmul %108, %109, %cst_56 {dimension_numbers = #tpu.dot_dimension_numbers<[1], [0], [0], [1], [0, 0, 1, 1], [], []>} : vector<8x1024xbf16>, vector<1024x896xbf16>, vector<8x896xf32> -> vector<8x896xf32>
    %c0_57 = arith.constant 0 : index
    %c0_58 = arith.constant 0 : index
    %111 = vector.load %arg16[%c0_57, %c0_58] : memref<1x896xf32, #tpu.memory_space<vmem>>, vector<1x896xf32>
    %112 = vector.broadcast %111 : vector<1x896xf32> to vector<8x896xf32>
    %113 = arith.addf %110, %112 : vector<8x896xf32>
    %114 = math.tanh %113 : vector<8x896xf32>
    %c0_59 = arith.constant 0 : index
    %c0_60 = arith.constant 0 : index
    %115 = vector.load %arg17[%c0_59, %c0_60] : memref<8x896xf32, #tpu.memory_space<vmem>>, vector<8x896xf32>
    tpu.vector_store %arg17[%c0_59, %c0_60], %114 {strides = array<i32>} : memref<8x896xf32, #tpu.memory_space<vmem>>, vector<8x896xf32>,
    return
  }
}

</mosaic_0001>

<llo_original>
// kernel: generator_forward.1
$region0: #{generator_forward.1}
  #allocation0 [shape = 'u32[]', space=smem, size = 0x4, offset = 0x4, fixed_abs, tag = 'smem constant byte address 0x4 - core index']
  #allocation1 [shape = 'u32[72,128]{1,0:T(1,128)}', space=vmem, size = 0x9000, scoped, tag = 'internal scratch']
  #allocation2 [shape = 'bf16[1024,896]{1,0:T(8,128)(2,1)}', space=vmem, size = 0x1c0000, scoped, tag = 'scratch operand']
  #allocation3 [shape = 's32[1]{0}', space=sflag, size = 0x4, scoped, tag = 'scratch operand']
  #allocation27 [shape = 's32[]', space=sflag, size = 0x4, offset = 0, fixed_abs, tag = 'sflag constant byte address 0x0 - dummy sync flag']
  #allocation28 [shape = 's32[]', space=sflag, size = 0x4, offset = 0, fixed_abs, tag = 'sflag constant byte address 0x0 - dummy sync flag']
  #allocation29 [shape = 'u32[]', space=smem, size = 0x4, offset = 0x44, fixed_abs, tag = 'smem constant byte address 0x44 - assertion arg 0']
  #allocation30 [shape = 'u32[]', space=smem, size = 0x4, offset = 0x48, fixed_abs, tag = 'smem constant byte address 0x48 - assertion arg 1']
  %s0 = inlined_call_operand.vmem [shape: f32[8,128], index: 0, kind: input, shape index: {}]
  %s1 = inlined_call_operand.hbm [shape: bf16[128,128], index: 1, kind: input, shape index: {}]
  %s2 = inlined_call_operand.hbm [shape: f32[1,128], index: 2, kind: input, shape index: {}]
  %s3 = inlined_call_operand.hbm [shape: bf16[128,256], index: 3, kind: input, shape index: {}]
  %s4 = inlined_call_operand.hbm [shape: f32[1,256], index: 4, kind: input, shape index: {}]
  %s5 = inlined_call_operand.hbm [shape: f32[1,256], index: 5, kind: input, shape index: {}]
  %s6 = inlined_call_operand.hbm [shape: f32[1,256], index: 6, kind: input, shape index: {}]
  %s7 = inlined_call_operand.hbm [shape: bf16[256,512], index: 7, kind: input, shape index: {}]
  %s8 = inlined_call_operand.hbm [shape: f32[1,512], index: 8, kind: input, shape index: {}]
  %s9 = inlined_call_operand.hbm [shape: f32[1,512], index: 9, kind: input, shape index: {}]
  %s10 = inlined_call_operand.hbm [shape: f32[1,512], index: 10, kind: input, shape index: {}]
  %s11 = inlined_call_operand.hbm [shape: bf16[512,1024], index: 11, kind: input, shape index: {}]
  %s12 = inlined_call_operand.hbm [shape: f32[1,1024], index: 12, kind: input, shape index: {}]
  %s13 = inlined_call_operand.hbm [shape: f32[1,1024], index: 13, kind: input, shape index: {}]
  %s14 = inlined_call_operand.hbm [shape: f32[1,1024], index: 14, kind: input, shape index: {}]
  %s15 = inlined_call_operand.hbm [shape: bf16[1024,896], index: 15, kind: input, shape index: {}]
  %s16 = inlined_call_operand.hbm [shape: f32[1,896], index: 16, kind: input, shape index: {}]
  %s17 = inlined_call_operand.vmem [shape: f32[8,896], index: 17, kind: output, shape index: {}]
  %s18 = sld [smem:[#allocation0]]
  $region138: #{generator_forward.1} parent=0
    _
  %s20 = ssub.s32 1, %s18
  %s21 = scalar_select 0, %s20, %s18
  $region1: #{generator_forward.1} parent=0
    #allocation4 [shape = 'u8[32768]{0}', space=vmem, size = 0x8000, scoped, tag = 'input window, operand 1, single buffered']
    #allocation5 [shape = 's32[1]{0}', space=sflag, size = 0x4, scoped, tag = 'scoped memory for generator_forward.1']
    #allocation6 [shape = 'u8[512]{0}', space=vmem, size = 0x400, scoped, tag = 'input window, operand 2, single buffered']
    #allocation7 [shape = 's32[1]{0}', space=sflag, size = 0x4, scoped, tag = 'scoped memory for generator_forward.1']
    #allocation8 [shape = 'u8[65536]{0}', space=vmem, size = 0x10000, scoped, tag = 'input window, operand 3, single buffered']
    #allocation9 [shape = 'u8[1024]{0}', space=vmem, size = 0x400, scoped, tag = 'input window, operand 4, single buffered']
    #allocation10 [shape = 's32[1]{0}', space=sflag, size = 0x4, scoped, tag = 'scoped memory for generator_forward.1']
    #allocation11 [shape = 'u8[1024]{0}', space=vmem, size = 0x400, scoped, tag = 'input window, operand 5, single buffered']
    #allocation12 [shape = 'u8[1024]{0}', space=vmem, size = 0x400, scoped, tag = 'input window, operand 6, single buffered']
    #allocation13 [shape = 's32[1]{0}', space=sflag, size = 0x4, scoped, tag = 'scoped memory for generator_forward.1']
    #allocation14 [shape = 'u8[262144]{0}', space=vmem, size = 0x40000, scoped, tag = 'input window, operand 7, single buffered']
    #allocation15 [shape = 'u8[2048]{0}', space=vmem, size = 0x800, scoped, tag = 'input window, operand 8, single buffered']
    #allocation16 [shape = 's32[1]{0}', space=sflag, size = 0x4, scoped, tag = 'scoped memory for generator_forward.1']
    #allocation17 [shape = 'u8[2048]{0}', space=vmem, size = 0x800, scoped, tag = 'input window, operand 9, single buffered']
    #allocation18 [shape = 'u8[2048]{0}', space=vmem, size = 0x800, scoped, tag = 'input window, operand 10, single buffered']
    #allocation19 [shape = 's32[1]{0}', space=sflag, size = 0x4, scoped, tag = 'scoped memory for generator_forward.1']
    #allocation20 [shape = 'u8[1048576]{0}', space=vmem, size = 0x100000, scoped, tag = 'input window, operand 11, single buffered']
    #allocation21 [shape = 'u8[4096]{0}', space=vmem, size = 0x1000, scoped, tag = 'input window, operand 12, single buffered']
    #allocation22 [shape = 's32[1]{0}', space=sflag, size = 0x4, scoped, tag = 'scoped memory for generator_forward.1']
    #allocation23 [shape = 'u8[4096]{0}', space=vmem, size = 0x1000, scoped, tag = 'input window, operand 13, single buffered']
    #allocation24 [shape = 'u8[4096]{0}', space=vmem, size = 0x1000, scoped, tag = 'input window, operand 14, single buffered']
    #allocation25 [shape = 's32[1]{0}', space=sflag, size = 0x4, scoped, tag = 'scoped memory for generator_forward.1']
    #allocation26 [shape = 'u8[3584]{0}', space=vmem, size = 0x1000, scoped, tag = 'input window, operand 16, single buffered']
    %22 = vsyncpa [#allocation5], 0
    %23 = vsyncpa [#allocation7], 0
    %24 = vsyncpa [#allocation10], 0
    %25 = vsyncpa [#allocation13], 0
    %26 = vsyncpa [#allocation16], 0
    %27 = vsyncpa [#allocation19], 0
    %28 = vsyncpa [#allocation22], 0
    %29 = vsyncpa [#allocation25], 0
    // Predicated region
    $region2: #{generator_forward.1} parent=1 // pred_check
      _
    $region3: #{generator_forward.1} parent=1 // pred_check_branch
      %31 = sbr.rel (0) target = $region5
    $region4: #{generator_forward.1} parent=1 // pred_region
      _
    $region5: #{generator_forward.1} parent=1 // pred_fallthru
      _
    // Predicated region
    $region6: #{generator_forward.1} parent=1 // pred_check
      _
    $region7: #{generator_forward.1} parent=1 // pred_check_branch
      %33 = sbr.rel (0) target = $region9
    $region8: #{generator_forward.1} parent=1 // pred_region
      %35 = vsyncadd [#allocation5], 0
      %s36 = sshll.u32 %s1, 4
      %s37 = int_to_ptr.hbm [resolvable:$true] %s36
      %s38 = sshll.u32 [#allocation4], 4
      %s39 = int_to_ptr.vmem [resolvable:$true] %s38
      %44 = dma.hbm_to_vmem [thread:$0]  %s37, 1024, %s39, [#allocation5], 64, 64, 4
    $region9: #{generator_forward.1} parent=1 // pred_fallthru
      _
    // Predicated region
    $region10: #{generator_forward.1} parent=1 // pred_check
      _
    $region11: #{generator_forward.1} parent=1 // pred_check_branch
      %46 = sbr.rel (0) target = $region13
    $region12: #{generator_forward.1} parent=1 // pred_region
      %48 = vsyncadd [#allocation7], 0
      %s50 = sshll.u32 %s2, 4
      %s51 = int_to_ptr.hbm [resolvable:$true] %s50
      %s52 = sshll.u32 [#allocation6], 4
      %s53 = int_to_ptr.vmem [resolvable:$true] %s52
      %55 = dma.hbm_to_vmem [thread:$0]  %s51, 16, %s53, [#allocation7]
    $region13: #{generator_forward.1} parent=1 // pred_fallthru
      _
    // Predicated region
    $region14: #{generator_forward.1} parent=1 // pred_check
      _
    $region15: #{generator_forward.1} parent=1 // pred_check_branch
      %57 = sbr.rel (0) target = $region17
    $region16: #{generator_forward.1} parent=1 // pred_region
      %59 = vsyncadd [#allocation7], 0
      %s60 = sshll.u32 %s3, 4
      %s61 = int_to_ptr.hbm [resolvable:$true] %s60
      %s62 = sshll.u32 [#allocation8], 4
      %s63 = int_to_ptr.vmem [resolvable:$true] %s62
      %68 = dma.hbm_to_vmem [thread:$0]  %s61, 2048, %s63, [#allocation7], 128, 128, 8
    $region17: #{generator_forward.1} parent=1 // pred_fallthru
      _
    // Predicated region
    $region18: #{generator_forward.1} parent=1 // pred_check
      _
    $region19: #{generator_forward.1} parent=1 // pred_check_branch
      %70 = sbr.rel (0) target = $region21
    $region20: #{generator_forward.1} parent=1 // pred_region
      %72 = vsyncadd [#allocation10], 0
      %s74 = sshll.u32 %s4, 4
      %s75 = int_to_ptr.hbm [resolvable:$true] %s74
      %s76 = sshll.u32 [#allocation9], 4
      %s77 = int_to_ptr.vmem [resolvable:$true] %s76
      %79 = dma.hbm_to_vmem [thread:$0]  %s75, 32, %s77, [#allocation10]
    $region21: #{generator_forward.1} parent=1 // pred_fallthru
      _
    // Predicated region
    $region22: #{generator_forward.1} parent=1 // pred_check
      _
    $region23: #{generator_forward.1} parent=1 // pred_check_branch
      %81 = sbr.rel (0) target = $region25
    $region24: #{generator_forward.1} parent=1 // pred_region
      %83 = vsyncadd [#allocation10], 0
      %s85 = sshll.u32 %s5, 4
      %s86 = int_to_ptr.hbm [resolvable:$true] %s85
      %s87 = sshll.u32 [#allocation11], 4
      %s88 = int_to_ptr.vmem [resolvable:$true] %s87
      %90 = dma.hbm_to_vmem [thread:$0]  %s86, 32, %s88, [#allocation10]
    $region25: #{generator_forward.1} parent=1 // pred_fallthru
      _
    // Predicated region
    $region26: #{generator_forward.1} parent=1 // pred_check
      _
    $region27: #{generator_forward.1} parent=1 // pred_check_branch
      %92 = sbr.rel (0) target = $region29
    $region28: #{generator_forward.1} parent=1 // pred_region
      %94 = vsyncadd [#allocation13], 0
      %s96 = sshll.u32 %s6, 4
      %s97 = int_to_ptr.hbm [resolvable:$true] %s96
      %s98 = sshll.u32 [#allocation12], 4
      %s99 = int_to_ptr.vmem [resolvable:$true] %s98
      %101 = dma.hbm_to_vmem [thread:$0]  %s97, 32, %s99, [#allocation13]
    $region29: #{generator_forward.1} parent=1 // pred_fallthru
      _
    // Predicated region
    $region30: #{generator_forward.1} parent=1 // pred_check
      _
    $region31: #{generator_forward.1} parent=1 // pred_check_branch
      %103 = sbr.rel (0) target = $region33
    $region32: #{generator_forward.1} parent=1 // pred_region
      %105 = vsyncadd [#allocation13], 0
      %s106 = sshll.u32 %s7, 4
      %s107 = int_to_ptr.hbm [resolvable:$true] %s106
      %s108 = sshll.u32 [#allocation14], 4
      %s109 = int_to_ptr.vmem [resolvable:$true] %s108
      %114 = dma.hbm_to_vmem [thread:$0]  %s107, 8192, %s109, [#allocation13], 256, 256, 16
    $region33: #{generator_forward.1} parent=1 // pred_fallthru
      _
    // Predicated region
    $region34: #{generator_forward.1} parent=1 // pred_check
      _
    $region35: #{generator_forward.1} parent=1 // pred_check_branch
      %116 = sbr.rel (0) target = $region37
    $region36: #{generator_forward.1} parent=1 // pred_region
      %118 = vsyncadd [#allocation16], 0
      %s120 = sshll.u32 %s8, 4
      %s121 = int_to_ptr.hbm [resolvable:$true] %s120
      %s122 = sshll.u32 [#allocation15], 4
      %s123 = int_to_ptr.vmem [resolvable:$true] %s122
      %125 = dma.hbm_to_vmem [thread:$0]  %s121, 64, %s123, [#allocation16]
    $region37: #{generator_forward.1} parent=1 // pred_fallthru
      _
    // Predicated region
    $region38: #{generator_forward.1} parent=1 // pred_check
      _
    $region39: #{generator_forward.1} parent=1 // pred_check_branch
      %127 = sbr.rel (0) target = $region41
    $region40: #{generator_forward.1} parent=1 // pred_region
      %129 = vsyncadd [#allocation16], 0
      %s131 = sshll.u32 %s9, 4
      %s132 = int_to_ptr.hbm [resolvable:$true] %s131
      %s133 = sshll.u32 [#allocation17], 4
      %s134 = int_to_ptr.vmem [resolvable:$true] %s133
      %136 = dma.hbm_to_vmem [thread:$0]  %s132, 64, %s134, [#allocation16]
    $region41: #{generator_forward.1} parent=1 // pred_fallthru
      _
    // Predicated region
    $region42: #{generator_forward.1} parent=1 // pred_check
      _
    $region43: #{generator_forward.1} parent=1 // pred_check_branch
      %138 = sbr.rel (0) target = $region45
    $region44: #{generator_forward.1} parent=1 // pred_region
      %140 = vsyncadd [#allocation19], 0
      %s142 = sshll.u32 %s10, 4
      %s143 = int_to_ptr.hbm [resolvable:$true] %s142
      %s144 = sshll.u32 [#allocation18], 4
      %s145 = int_to_ptr.vmem [resolvable:$true] %s144
      %147 = dma.hbm_to_vmem [thread:$0]  %s143, 64, %s145, [#allocation19]
    $region45: #{generator_forward.1} parent=1 // pred_fallthru
      _
    // Predicated region
    $region46: #{generator_forward.1} parent=1 // pred_check
      _
    $region47: #{generator_forward.1} parent=1 // pred_check_branch
      %149 = sbr.rel (0) target = $region49
    $region48: #{generator_forward.1} parent=1 // pred_region
      %151 = vsyncadd [#allocation19], 0
      %s152 = sshll.u32 %s11, 4
      %s153 = int_to_ptr.hbm [resolvable:$true] %s152
      %s154 = sshll.u32 [#allocation20], 4
      %s155 = int_to_ptr.vmem [resolvable:$true] %s154
      %160 = dma.hbm_to_vmem [thread:$0]  %s153, 32768, %s155, [#allocation19], 512, 512, 32
    $region49: #{generator_forward.1} parent=1 // pred_fallthru
      _
    // Predicated region
    $region50: #{generator_forward.1} parent=1 // pred_check
      _
    $region51: #{generator_forward.1} parent=1 // pred_check_branch
      %162 = sbr.rel (0) target = $region53
    $region52: #{generator_forward.1} parent=1 // pred_region
      %164 = vsyncadd [#allocation22], 0
      %s166 = sshll.u32 %s12, 4
      %s167 = int_to_ptr.hbm [resolvable:$true] %s166
      %s168 = sshll.u32 [#allocation21], 4
      %s169 = int_to_ptr.vmem [resolvable:$true] %s168
      %171 = dma.hbm_to_vmem [thread:$0]  %s167, 128, %s169, [#allocation22]
    $region53: #{generator_forward.1} parent=1 // pred_fallthru
      _
    // Predicated region
    $region54: #{generator_forward.1} parent=1 // pred_check
      _
    $region55: #{generator_forward.1} parent=1 // pred_check_branch
      %173 = sbr.rel (0) target = $region57
    $region56: #{generator_forward.1} parent=1 // pred_region
      %175 = vsyncadd [#allocation22], 0
      %s177 = sshll.u32 %s13, 4
      %s178 = int_to_ptr.hbm [resolvable:$true] %s177
      %s179 = sshll.u32 [#allocation23], 4
      %s180 = int_to_ptr.vmem [resolvable:$true] %s179
      %182 = dma.hbm_to_vmem [thread:$0]  %s178, 128, %s180, [#allocation22]
    $region57: #{generator_forward.1} parent=1 // pred_fallthru
      _
    // Predicated region
    $region58: #{generator_forward.1} parent=1 // pred_check
      _
    $region59: #{generator_forward.1} parent=1 // pred_check_branch
      %184 = sbr.rel (0) target = $region61
    $region60: #{generator_forward.1} parent=1 // pred_region
      %186 = vsyncadd [#allocation25], 0
      %s188 = sshll.u32 %s14, 4
      %s189 = int_to_ptr.hbm [resolvable:$true] %s188
      %s190 = sshll.u32 [#allocation24], 4
      %s191 = int_to_ptr.vmem [resolvable:$true] %s190
      %193 = dma.hbm_to_vmem [thread:$0]  %s189, 128, %s191, [#allocation25]
    $region61: #{generator_forward.1} parent=1 // pred_fallthru
      _
    // Predicated region
    $region62: #{generator_forward.1} parent=1 // pred_check
      _
    $region63: #{generator_forward.1} parent=1 // pred_check_branch
      %195 = sbr.rel (0) target = $region65
    $region64: #{generator_forward.1} parent=1 // pred_region
      %197 = vsyncadd [#allocation25], 0
      %s199 = sshll.u32 %s16, 4
      %s200 = int_to_ptr.hbm [resolvable:$true] %s199
      %s201 = sshll.u32 [#allocation26], 4
      %s202 = int_to_ptr.vmem [resolvable:$true] %s201
      %204 = dma.hbm_to_vmem [thread:$0]  %s200, 112, %s202, [#allocation25]
    $region65: #{generator_forward.1} parent=1 // pred_fallthru
      _
    // Predicated region
    $region66: #{generator_forward.1} parent=1 // pred_check
      _
    $region67: #{generator_forward.1} parent=1 // pred_check_branch
      %206 = sbr.rel (0) target = $region69
    $region68: #{generator_forward.1} parent=1 // pred_region
      %208 = dma.done [#allocation5], 1024
    $region69: #{generator_forward.1} parent=1 // pred_fallthru
      _
    // Predicated region
    $region70: #{generator_forward.1} parent=1 // pred_check
      _
    $region71: #{generator_forward.1} parent=1 // pred_check_branch
      %210 = sbr.rel (0) target = $region73
    $region72: #{generator_forward.1} parent=1 // pred_region
      %212 = dma.done [#allocation7], 16
    $region73: #{generator_forward.1} parent=1 // pred_fallthru
      _
    // Predicated region
    $region74: #{generator_forward.1} parent=1 // pred_check
      _
    $region75: #{generator_forward.1} parent=1 // pred_check_branch
      %214 = sbr.rel (0) target = $region77
    $region76: #{generator_forward.1} parent=1 // pred_region
      %216 = dma.done [#allocation7], 2048
    $region77: #{generator_forward.1} parent=1 // pred_fallthru
      _
    // Predicated region
    $region78: #{generator_forward.1} parent=1 // pred_check
      _
    $region79: #{generator_forward.1} parent=1 // pred_check_branch
      %218 = sbr.rel (0) target = $region81
    $region80: #{generator_forward.1} parent=1 // pred_region
      %220 = dma.done [#allocation10], 32
    $region81: #{generator_forward.1} parent=1 // pred_fallthru
      _
    // Predicated region
    $region82: #{generator_forward.1} parent=1 // pred_check
      _
    $region83: #{generator_forward.1} parent=1 // pred_check_branch
      %222 = sbr.rel (0) target = $region85
    $region84: #{generator_forward.1} parent=1 // pred_region
      %224 = dma.done [#allocation10], 32
    $region85: #{generator_forward.1} parent=1 // pred_fallthru
      _
    // Predicated region
    $region86: #{generator_forward.1} parent=1 // pred_check
      _
    $region87: #{generator_forward.1} parent=1 // pred_check_branch
      %226 = sbr.rel (0) target = $region89
    $region88: #{generator_forward.1} parent=1 // pred_region
      %228 = dma.done [#allocation13], 32
    $region89: #{generator_forward.1} parent=1 // pred_fallthru
      _
    // Predicated region
    $region90: #{generator_forward.1} parent=1 // pred_check
      _
    $region91: #{generator_forward.1} parent=1 // pred_check_branch
      %230 = sbr.rel (0) target = $region93
    $region92: #{generator_forward.1} parent=1 // pred_region
      %232 = dma.done [#allocation13], 8192
    $region93: #{generator_forward.1} parent=1 // pred_fallthru
      _
    // Predicated region
    $region94: #{generator_forward.1} parent=1 // pred_check
      _
    $region95: #{generator_forward.1} parent=1 // pred_check_branch
      %234 = sbr.rel (0) target = $region97
    $region96: #{generator_forward.1} parent=1 // pred_region
      %236 = dma.done [#allocation16], 64
    $region97: #{generator_forward.1} parent=1 // pred_fallthru
      _
    // Predicated region
    $region98: #{generator_forward.1} parent=1 // pred_check
      _
    $region99: #{generator_forward.1} parent=1 // pred_check_branch
      %238 = sbr.rel (0) target = $region101
    $region100: #{generator_forward.1} parent=1 // pred_region
      %240 = dma.done [#allocation16], 64
    $region101: #{generator_forward.1} parent=1 // pred_fallthru
      _
    // Predicated region
    $region102: #{generator_forward.1} parent=1 // pred_check
      _
    $region103: #{generator_forward.1} parent=1 // pred_check_branch
      %242 = sbr.rel (0) target = $region105
    $region104: #{generator_forward.1} parent=1 // pred_region
      %244 = dma.done [#allocation19], 64
    $region105: #{generator_forward.1} parent=1 // pred_fallthru
      _
    // Predicated region
    $region106: #{generator_forward.1} parent=1 // pred_check
      _
    $region107: #{generator_forward.1} parent=1 // pred_check_branch
      %246 = sbr.rel (0) target = $region109
    $region108: #{generator_forward.1} parent=1 // pred_region
      %248 = dma.done [#allocation19], 32768
    $region109: #{generator_forward.1} parent=1 // pred_fallthru
      _
    // Predicated region
    $region110: #{generator_forward.1} parent=1 // pred_check
      _
    $region111: #{generator_forward.1} parent=1 // pred_check_branch
      %250 = sbr.rel (0) target = $region113
    $region112: #{generator_forward.1} parent=1 // pred_region
      %252 = dma.done [#allocation22], 128
    $region113: #{generator_forward.1} parent=1 // pred_fallthru
      _
    // Predicated region
    $region114: #{generator_forward.1} parent=1 // pred_check
      _
    $region115: #{generator_forward.1} parent=1 // pred_check_branch
      %254 = sbr.rel (0) target = $region117
    $region116: #{generator_forward.1} parent=1 // pred_region
      %256 = dma.done [#allocation22], 128
    $region117: #{generator_forward.1} parent=1 // pred_fallthru
      _
    // Predicated region
    $region118: #{generator_forward.1} parent=1 // pred_check
      _
    $region119: #{generator_forward.1} parent=1 // pred_check_branch
      %258 = sbr.rel (0) target = $region121
    $region120: #{generator_forward.1} parent=1 // pred_region
      %260 = dma.done [#allocation25], 128
    $region121: #{generator_forward.1} parent=1 // pred_fallthru
      _
    // Predicated region
    $region122: #{generator_forward.1} parent=1 // pred_check
      _
    $region123: #{generator_forward.1} parent=1 // pred_check_branch
      %262 = sbr.rel (0) target = $region125
    $region124: #{generator_forward.1} parent=1 // pred_region
      %264 = dma.done [#allocation25], 112
    $region125: #{generator_forward.1} parent=1 // pred_fallthru
      _
    // Predicated region
    $region126: #{generator_forward.1} parent=1 // pred_check
      _
    $region127: #{generator_forward.1} parent=1 // pred_check_branch
      %266 = sbr.rel target = $region129
    $region128: #{generator_forward.1} parent=1 // pred_region
      %267 = sst [smem:[#allocation29]] [#allocation28]
      %268 = sst [smem:[#allocation30]] [#allocation27]
    $region129: #{generator_forward.1} parent=1 // pred_fallthru
      _
    %270 = shalt.err (0)
    %s272 = sshll.u32 %s15, 4
    %s273 = int_to_ptr.hbm [resolvable:$true] %s272
    %s274 = sshll.u32 [#allocation2], 4
    %s275 = int_to_ptr.vmem [resolvable:$true] %s274
    %277 = dma.hbm_to_vmem [thread:$0]  %s273, 57344, %s275, [#allocation3]
    %v278 = vld [vmem:[%s0] sm:$0xff]
    %v279 = vpack.c.bf16 %v278, %v278
    %v280 = vld [vmem:[#allocation4] sm:$0xf]
    %v281 = vld [vmem:[#allocation4 + $0x4] sm:$0xf]
    %v282 = vld [vmem:[#allocation4 + $0x8] sm:$0xf]
    %v283 = vld [vmem:[#allocation4 + $0xc] sm:$0xf]
    %v284 = vld [vmem:[#allocation4 + $0x10] sm:$0xf]
    %v285 = vld [vmem:[#allocation4 + $0x14] sm:$0xf]
    %v286 = vld [vmem:[#allocation4 + $0x18] sm:$0xf]
    %v287 = vld [vmem:[#allocation4 + $0x1c] sm:$0xf]
    %v288 = vld [vmem:[#allocation4 + $0x20] sm:$0xf]
    %v289 = vld [vmem:[#allocation4 + $0x24] sm:$0xf]
    %v290 = vld [vmem:[#allocation4 + $0x28] sm:$0xf]
    %v291 = vld [vmem:[#allocation4 + $0x2c] sm:$0xf]
    %v292 = vld [vmem:[#allocation4 + $0x30] sm:$0xf]
    %v293 = vld [vmem:[#allocation4 + $0x34] sm:$0xf]
    %v294 = vld [vmem:[#allocation4 + $0x38] sm:$0xf]
    %v295 = vld [vmem:[#allocation4 + $0x3c] sm:$0xf]
    %v296 = vld [vmem:[#allocation6] sm:$0x1]
    %v298 = vperm.slane %v296, 0
    %v316 = vunpack.c.l.b16 %v280
    %v317 = vunpack.c.l.b16 %v281
    %v318 = vunpack.c.l.b16 %v282
    %v319 = vunpack.c.l.b16 %v283
    %v320 = vunpack.c.l.b16 %v284
    %v321 = vunpack.c.l.b16 %v285
    %v322 = vunpack.c.l.b16 %v286
    %v323 = vunpack.c.l.b16 %v287
    %v324 = vunpack.c.l.b16 %v288
    %v325 = vunpack.c.l.b16 %v289
    %v326 = vunpack.c.l.b16 %v290
    %v327 = vunpack.c.l.b16 %v291
    %v328 = vunpack.c.l.b16 %v292
    %v329 = vunpack.c.l.b16 %v293
    %v330 = vunpack.c.l.b16 %v294
    %v331 = vunpack.c.l.b16 %v295
    %v332 = vpack.c.b16 %v317, %v316
    %v333 = vpack.c.b16 %v319, %v318
    %v334 = vpack.c.b16 %v321, %v320
    %v335 = vpack.c.b16 %v323, %v322
    %v336 = vpack.c.b16 %v325, %v324
    %v337 = vpack.c.b16 %v327, %v326
    %v338 = vpack.c.b16 %v329, %v328
    %v339 = vpack.c.b16 %v331, %v330
    %348 = vmatpush.bf16.msra.mxu0 %v339
    %349 = vmatpush.bf16.msra.mxu0 %v338
    %350 = vmatpush.bf16.msra.mxu0 %v337
    %351 = vmatpush.bf16.msra.mxu0 %v336
    %352 = vmatpush.bf16.msra.mxu0 %v335
    %353 = vmatpush.bf16.msra.mxu0 %v334
    %354 = vmatpush.bf16.msra.mxu0 %v333
    %355 = vmatpush.bf16.msra.mxu0 %v332
    %356 = vmatmul.bf16.gmra.mxu0 %v279
    %v357 = vpop.f32.mrf.mxu0
    %v358 = vadd.f32 %v298, %v357
    %v359 = vpop.f32.mrf.mxu0
    %360 = vdwg.mxu0
    %v361 = vmax.f32 %v358, 0.0
    %v362 = vpack.c.bf16 %v361, %v361
    %v363 = vld [vmem:[#allocation8] sm:$0xff]
    %v364 = vld [vmem:[#allocation8 + $0x8] sm:$0xff]
    %v365 = vld [vmem:[#allocation8 + $0x10] sm:$0xff]
    %v366 = vld [vmem:[#allocation8 + $0x18] sm:$0xff]
    %v367 = vld [vmem:[#allocation8 + $0x20] sm:$0xff]
    %v368 = vld [vmem:[#allocation8 + $0x28] sm:$0xff]
    %v369 = vld [vmem:[#allocation8 + $0x30] sm:$0xff]
    %v370 = vld [vmem:[#allocation8 + $0x38] sm:$0xff]
    %v371 = vld [vmem:[#allocation8 + $0x40] sm:$0xff]
    %v372 = vld [vmem:[#allocation8 + $0x48] sm:$0xff]
    %v373 = vld [vmem:[#allocation8 + $0x50] sm:$0xff]
    %v374 = vld [vmem:[#allocation8 + $0x58] sm:$0xff]
    %v375 = vld [vmem:[#allocation8 + $0x60] sm:$0xff]
    %v376 = vld [vmem:[#allocation8 + $0x68] sm:$0xff]
    %v377 = vld [vmem:[#allocation8 + $0x70] sm:$0xff]
    %v378 = vld [vmem:[#allocation8 + $0x78] sm:$0xff]
    %v379 = vld [vmem:[#allocation9] sm:$0x3]
    %v381 = vperm.slane %v379, 0
    %v382 = vperm.slane %v379, 1
    %v401 = vunpack.c.l.b16 %v363
    %v402 = vunpack.c.h.b16 %v363
    %v403 = vunpack.c.l.b16 %v364
    %v404 = vunpack.c.h.b16 %v364
    %v405 = vunpack.c.l.b16 %v365
    %v406 = vunpack.c.h.b16 %v365
    %v407 = vunpack.c.l.b16 %v366
    %v408 = vunpack.c.h.b16 %v366
    %v409 = vunpack.c.l.b16 %v367
    %v410 = vunpack.c.h.b16 %v367
    %v411 = vunpack.c.l.b16 %v368
    %v412 = vunpack.c.h.b16 %v368
    %v413 = vunpack.c.l.b16 %v369
    %v414 = vunpack.c.h.b16 %v369
    %v415 = vunpack.c.l.b16 %v370
    %v416 = vunpack.c.h.b16 %v370
    %v417 = vunpack.c.l.b16 %v371
    %v418 = vunpack.c.h.b16 %v371
    %v419 = vunpack.c.l.b16 %v372
    %v420 = vunpack.c.h.b16 %v372
    %v421 = vunpack.c.l.b16 %v373
    %v422 = vunpack.c.h.b16 %v373
    %v423 = vunpack.c.l.b16 %v374
    %v424 = vunpack.c.h.b16 %v374
    %v425 = vunpack.c.l.b16 %v375
    %v426 = vunpack.c.h.b16 %v375
    %v427 = vunpack.c.l.b16 %v376
    %v428 = vunpack.c.h.b16 %v376
    %v429 = vunpack.c.l.b16 %v377
    %v430 = vunpack.c.h.b16 %v377
    %v431 = vunpack.c.l.b16 %v378
    %v432 = vunpack.c.h.b16 %v378
    %v433 = vpack.c.b16 %v403, %v401
    %v434 = vpack.c.b16 %v404, %v402
    %v435 = vpack.c.b16 %v407, %v405
    %v436 = vpack.c.b16 %v408, %v406
    %v437 = vpack.c.b16 %v411, %v409
    %v438 = vpack.c.b16 %v412, %v410
    %v439 = vpack.c.b16 %v415, %v413
    %v440 = vpack.c.b16 %v416, %v414
    %v441 = vpack.c.b16 %v419, %v417
    %v442 = vpack.c.b16 %v420, %v418
    %v443 = vpack.c.b16 %v423, %v421
    %v444 = vpack.c.b16 %v424, %v422
    %v445 = vpack.c.b16 %v427, %v425
    %v446 = vpack.c.b16 %v428, %v426
    %v447 = vpack.c.b16 %v431, %v429
    %v448 = vpack.c.b16 %v432, %v430
    %465 = vmatpush.bf16.msra.mxu0 %v447
    %466 = vmatpush.bf16.msra.mxu0 %v445
    %467 = vmatpush.bf16.msra.mxu0 %v443
    %468 = vmatpush.bf16.msra.mxu0 %v441
    %469 = vmatpush.bf16.msra.mxu0 %v439
    %470 = vmatpush.bf16.msra.mxu0 %v437
    %471 = vmatpush.bf16.msra.mxu0 %v435
    %472 = vmatpush.bf16.msra.mxu0 %v433
    %473 = vmatmul.bf16.gmra.mxu0 %v362
    %v474 = vpop.f32.mrf.mxu0
    %v475 = vadd.f32 %v381, %v474
    %v476 = vpop.f32.mrf.mxu0
    %477 = vdwg.mxu0
    %478 = vmatpush.bf16.msra.mxu0 %v448
    %479 = vmatpush.bf16.msra.mxu0 %v446
    %480 = vmatpush.bf16.msra.mxu0 %v444
    %481 = vmatpush.bf16.msra.mxu0 %v442
    %482 = vmatpush.bf16.msra.mxu0 %v440
    %483 = vmatpush.bf16.msra.mxu0 %v438
    %484 = vmatpush.bf16.msra.mxu0 %v436
    %485 = vmatpush.bf16.msra.mxu0 %v434
    %486 = vmatmul.bf16.gmra.mxu0 %v362
    %v487 = vpop.f32.mrf.mxu0
    %v488 = vadd.f32 %v382, %v487
    %v489 = vpop.f32.mrf.mxu0
    %490 = vdwg.mxu0
    %v491 = vld [vmem:[#allocation11] sm:$0x3]
    %v492 = vld [vmem:[#allocation12] sm:$0x3]
    %v493 = vrot.slane %v475, 4
    %v494 = vadd.f32 %v475, %v493
    %v495 = vrot.slane %v494, 2
    %v496 = vadd.f32 %v494, %v495
    %v497 = vrot.slane %v496, 1
    %v498 = vadd.f32 %v496, %v497
    %v499 = vrot.slane %v488, 4
    %v500 = vadd.f32 %v488, %v499
    %v501 = vrot.slane %v500, 2
    %v502 = vadd.f32 %v500, %v501
    %v503 = vrot.slane %v502, 1
    %v504 = vadd.f32 %v502, %v503
    %v505 = vrcp.pop 8.0
    %v506 = vmul.f32 8.0, %v505
    %v507 = vsub.f32 1.0, %v506
    %v508 = vmul.f32 %v505, %v507
    %v509 = vadd.f32 %v505, %v508
    %vm510 = vweird.f32 %v505
    %v511 = vsel %vm510, %v505, %v509
    %v512 = vmul.f32 %v498, %v511
    %v513 = vmul.f32 %v504, %v511
    %v514 = vmul.f32 %v475, %v475
    %v515 = vmul.f32 %v488, %v488
    %v516 = vrot.slane %v514, 4
    %v517 = vadd.f32 %v514, %v516
    %v518 = vrot.slane %v517, 2
    %v519 = vadd.f32 %v517, %v518
    %v520 = vrot.slane %v519, 1
    %v521 = vadd.f32 %v519, %v520
    %v522 = vrot.slane %v515, 4
    %v523 = vadd.f32 %v515, %v522
    %v524 = vrot.slane %v523, 2
    %v525 = vadd.f32 %v523, %v524
    %v526 = vrot.slane %v525, 1
    %v527 = vadd.f32 %v525, %v526
    %v528 = vmul.f32 %v521, %v511
    %v529 = vmul.f32 %v527, %v511
    %v530 = vmul.f32 %v512, %v512
    %v531 = vmul.f32 %v513, %v513
    %v532 = vsub.f32 %v528, %v530
    %v533 = vsub.f32 %v529, %v531
    %v534 = vmax.f32 %v532, 0.0
    %v535 = vmax.f32 %v533, 0.0
    %v536 = vadd.f32 %v534, 1e-05
    %v537 = vadd.f32 %v535, 1e-05
    %v538 = vrsqrt.pop %v536
    %v539 = vmul.f32 %v538, %v536
    %v540 = vmul.f32 %v539, %v538
    %v541 = vmul.f32 0.5, %v540
    %v542 = vsub.f32 1.5, %v541
    %v543 = vmul.f32 %v538, %v542
    %vm544 = vweird.f32 %v536
    %vm545 = vweird.f32 %v538
    %vm546 = vmor %vm544, %vm545
    %v547 = vsel %vm546, %v538, %v543
    %v548 = vrsqrt.pop %v537
    %v549 = vmul.f32 %v548, %v537
    %v550 = vmul.f32 %v549, %v548
    %v551 = vmul.f32 0.5, %v550
    %v552 = vsub.f32 1.5, %v551
    %v553 = vmul.f32 %v548, %v552
    %vm554 = vweird.f32 %v537
    %vm555 = vweird.f32 %v548
    %vm556 = vmor %vm554, %vm555
    %v557 = vsel %vm556, %v548, %v553
    %v560 = vrot.slane %v557, 7
    %vm561 = vcmask 1040384
    %v562 = vsel %vm561, %v547, %v560
    %v564 = vmul.f32 %v491, %v562
    %v566 = vperm.slane %v564, 0
    %v567 = vperm.slane %v564, 1
    %v570 = vmul.f32 %v512, %v566
    %v571 = vmul.f32 %v513, %v567
    %v574 = vrot.slane %v571, 7
    %v575 = vsel %vm561, %v570, %v574
    %v577 = vsub.f32 %v492, %v575
    %v578 = vmul.f32 %v475, %v566
    %v579 = vmul.f32 %v488, %v567
    %v581 = vperm.slane %v577, 0
    %v582 = vperm.slane %v577, 1
    %v585 = vadd.f32 %v578, %v581
    %v586 = vadd.f32 %v579, %v582
    %v587 = vmax.f32 %v585, 0.0
    %v588 = vmax.f32 %v586, 0.0
    %v589 = vpack.c.bf16 %v587, %v587
    %v590 = vpack.c.bf16 %v588, %v588
    %v591 = vld [vmem:[#allocation14] sm:$0xff]
    %v592 = vld [vmem:[#allocation14 + $0x8] sm:$0xff]
    %v593 = vld [vmem:[#allocation14 + $0x10] sm:$0xff]
    %v594 = vld [vmem:[#allocation14 + $0x18] sm:$0xff]
    %v595 = vld [vmem:[#allocation14 + $0x20] sm:$0xff]
    %v596 = vld [vmem:[#allocation14 + $0x28] sm:$0xff]
    %v597 = vld [vmem:[#allocation14 + $0x30] sm:$0xff]
    %v598 = vld [vmem:[#allocation14 + $0x38] sm:$0xff]
    %v599 = vld [vmem:[#allocation14 + $0x40] sm:$0xff]
    %v600 = vld [vmem:[#allocation14 + $0x48] sm:$0xff]
    %v601 = vld [vmem:[#allocation14 + $0x50] sm:$0xff]
    %v602 = vld [vmem:[#allocation14 + $0x58] sm:$0xff]
    %v603 = vld [vmem:[#allocation14 + $0x60] sm:$0xff]
    %v604 = vld [vmem:[#allocation14 + $0x68] sm:$0xff]
    %v605 = vld [vmem:[#allocation14 + $0x70] sm:$0xff]
    %v606 = vld [vmem:[#allocation14 + $0x78] sm:$0xff]
    %v607 = vld [vmem:[#allocation14 + $0x80] sm:$0xff]
    %v608 = vld [vmem:[#allocation14 + $0x88] sm:$0xff]
    %v609 = vld [vmem:[#allocation14 + $0x90] sm:$0xff]
    %v610 = vld [vmem:[#allocation14 + $0x98] sm:$0xff]
    %v611 = vld [vmem:[#allocation14 + $0xa0] sm:$0xff]
    %v612 = vld [vmem:[#allocation14 + $0xa8] sm:$0xff]
    %v613 = vld [vmem:[#allocation14 + $0xb0] sm:$0xff]
    %v614 = vld [vmem:[#allocation14 + $0xb8] sm:$0xff]
    %v615 = vld [vmem:[#allocation14 + $0xc0] sm:$0xff]
    %v616 = vld [vmem:[#allocation14 + $0xc8] sm:$0xff]
    %v617 = vld [vmem:[#allocation14 + $0xd0] sm:$0xff]
    %v618 = vld [vmem:[#allocation14 + $0xd8] sm:$0xff]
    %v619 = vld [vmem:[#allocation14 + $0xe0] sm:$0xff]
    %v620 = vld [vmem:[#allocation14 + $0xe8] sm:$0xff]
    %v621 = vld [vmem:[#allocation14 + $0xf0] sm:$0xff]
    %v622 = vld [vmem:[#allocation14 + $0xf8] sm:$0xff]
    %v623 = vld [vmem:[#allocation14 + $0x100] sm:$0xff]
    %v624 = vld [vmem:[#allocation14 + $0x108] sm:$0xff]
    %v625 = vld [vmem:[#allocation14 + $0x110] sm:$0xff]
    %v626 = vld [vmem:[#allocation14 + $0x118] sm:$0xff]
    %v627 = vld [vmem:[#allocation14 + $0x120] sm:$0xff]
    %v628 = vld [vmem:[#allocation14 + $0x128] sm:$0xff]
    %v629 = vld [vmem:[#allocation14 + $0x130] sm:$0xff]
    %v630 = vld [vmem:[#allocation14 + $0x138] sm:$0xff]
    %v631 = vld [vmem:[#allocation14 + $0x140] sm:$0xff]
    %v632 = vld [vmem:[#allocation14 + $0x148] sm:$0xff]
    %v633 = vld [vmem:[#allocation14 + $0x150] sm:$0xff]
    %v634 = vld [vmem:[#allocation14 + $0x158] sm:$0xff]
    %v635 = vld [vmem:[#allocation14 + $0x160] sm:$0xff]
    %v636 = vld [vmem:[#allocation14 + $0x168] sm:$0xff]
    %v637 = vld [vmem:[#allocation14 + $0x170] sm:$0xff]
    %v638 = vld [vmem:[#allocation14 + $0x178] sm:$0xff]
    %v639 = vld [vmem:[#allocation14 + $0x180] sm:$0xff]
    %v640 = vld [vmem:[#allocation14 + $0x188] sm:$0xff]
    %v641 = vld [vmem:[#allocation14 + $0x190] sm:$0xff]
    %v642 = vld [vmem:[#allocation14 + $0x198] sm:$0xff]
    %v643 = vld [vmem:[#allocation14 + $0x1a0] sm:$0xff]
    %v644 = vld [vmem:[#allocation14 + $0x1a8] sm:$0xff]
    %v645 = vld [vmem:[#allocation14 + $0x1b0] sm:$0xff]
    %v646 = vld [vmem:[#allocation14 + $0x1b8] sm:$0xff]
    %v647 = vld [vmem:[#allocation14 + $0x1c0] sm:$0xff]
    %v648 = vld [vmem:[#allocation14 + $0x1c8] sm:$0xff]
    %v649 = vld [vmem:[#allocation14 + $0x1d0] sm:$0xff]
    %v650 = vld [vmem:[#allocation14 + $0x1d8] sm:$0xff]
    %v651 = vld [vmem:[#allocation14 + $0x1e0] sm:$0xff]
    %v652 = vld [vmem:[#allocation14 + $0x1e8] sm:$0xff]
    %v653 = vld [vmem:[#allocation14 + $0x1f0] sm:$0xff]
    %v654 = vld [vmem:[#allocation14 + $0x1f8] sm:$0xff]
    %v655 = vld [vmem:[#allocation15] sm:$0xf]
    %v657 = vperm.slane %v655, 0
    %v658 = vperm.slane %v655, 1
    %v659 = vperm.slane %v655, 2
    %v660 = vperm.slane %v655, 3
    %v729 = vunpack.c.l.b16 %v591
    %v730 = vunpack.c.h.b16 %v591
    %v731 = vunpack.c.l.b16 %v592
    %v732 = vunpack.c.h.b16 %v592
    %v733 = vunpack.c.l.b16 %v593
    %v734 = vunpack.c.h.b16 %v593
    %v735 = vunpack.c.l.b16 %v594
    %v736 = vunpack.c.h.b16 %v594
    %v737 = vunpack.c.l.b16 %v595
    %v738 = vunpack.c.h.b16 %v595
    %v739 = vunpack.c.l.b16 %v596
    %v740 = vunpack.c.h.b16 %v596
    %v741 = vunpack.c.l.b16 %v597
    %v742 = vunpack.c.h.b16 %v597
    %v743 = vunpack.c.l.b16 %v598
    %v744 = vunpack.c.h.b16 %v598
    %v745 = vunpack.c.l.b16 %v599
    %v746 = vunpack.c.h.b16 %v599
    %v747 = vunpack.c.l.b16 %v600
    %v748 = vunpack.c.h.b16 %v600
    %v749 = vunpack.c.l.b16 %v601
    %v750 = vunpack.c.h.b16 %v601
    %v751 = vunpack.c.l.b16 %v602
    %v752 = vunpack.c.h.b16 %v602
    %v753 = vunpack.c.l.b16 %v603
    %v754 = vunpack.c.h.b16 %v603
    %v755 = vunpack.c.l.b16 %v604
    %v756 = vunpack.c.h.b16 %v604
    %v757 = vunpack.c.l.b16 %v605
    %v758 = vunpack.c.h.b16 %v605
    %v759 = vunpack.c.l.b16 %v606
    %v760 = vunpack.c.h.b16 %v606
    %v761 = vunpack.c.l.b16 %v607
    %v762 = vunpack.c.h.b16 %v607
    %v763 = vunpack.c.l.b16 %v608
    %v764 = vunpack.c.h.b16 %v608
    %v765 = vunpack.c.l.b16 %v609
    %v766 = vunpack.c.h.b16 %v609
    %v767 = vunpack.c.l.b16 %v610
    %v768 = vunpack.c.h.b16 %v610
    %v769 = vunpack.c.l.b16 %v611
    %v770 = vunpack.c.h.b16 %v611
    %v771 = vunpack.c.l.b16 %v612
    %v772 = vunpack.c.h.b16 %v612
    %v773 = vunpack.c.l.b16 %v613
    %v774 = vunpack.c.h.b16 %v613
    %v775 = vunpack.c.l.b16 %v614
    %v776 = vunpack.c.h.b16 %v614
    %v777 = vunpack.c.l.b16 %v615
    %v778 = vunpack.c.h.b16 %v615
    %v779 = vunpack.c.l.b16 %v616
    %v780 = vunpack.c.h.b16 %v616
    %v781 = vunpack.c.l.b16 %v617
    %v782 = vunpack.c.h.b16 %v617
    %v783 = vunpack.c.l.b16 %v618
    %v784 = vunpack.c.h.b16 %v618
    %v785 = vunpack.c.l.b16 %v619
    %v786 = vunpack.c.h.b16 %v619
    %v787 = vunpack.c.l.b16 %v620
    %v788 = vunpack.c.h.b16 %v620
    %v789 = vunpack.c.l.b16 %v621
    %v790 = vunpack.c.h.b16 %v621
    %v791 = vunpack.c.l.b16 %v622
    %v792 = vunpack.c.h.b16 %v622
    %v793 = vunpack.c.l.b16 %v623
    %v794 = vunpack.c.h.b16 %v623
    %v795 = vunpack.c.l.b16 %v624
    %v796 = vunpack.c.h.b16 %v624
    %v797 = vunpack.c.l.b16 %v625
    %v798 = vunpack.c.h.b16 %v625
    %v799 = vunpack.c.l.b16 %v626
    %v800 = vunpack.c.h.b16 %v626
    %v801 = vunpack.c.l.b16 %v627
    %v802 = vunpack.c.h.b16 %v627
    %v803 = vunpack.c.l.b16 %v628
    %v804 = vunpack.c.h.b16 %v628
    %v805 = vunpack.c.l.b16 %v629
    %v806 = vunpack.c.h.b16 %v629
    %v807 = vunpack.c.l.b16 %v630
    %v808 = vunpack.c.h.b16 %v630
    %v809 = vunpack.c.l.b16 %v631
    %v810 = vunpack.c.h.b16 %v631
    %v811 = vunpack.c.l.b16 %v632
    %v812 = vunpack.c.h.b16 %v632
    %v813 = vunpack.c.l.b16 %v633
    %v814 = vunpack.c.h.b16 %v633
    %v815 = vunpack.c.l.b16 %v634
    %v816 = vunpack.c.h.b16 %v634
    %v817 = vunpack.c.l.b16 %v635
    %v818 = vunpack.c.h.b16 %v635
    %v819 = vunpack.c.l.b16 %v636
    %v820 = vunpack.c.h.b16 %v636
    %v821 = vunpack.c.l.b16 %v637
    %v822 = vunpack.c.h.b16 %v637
    %v823 = vunpack.c.l.b16 %v638
    %v824 = vunpack.c.h.b16 %v638
    %v825 = vunpack.c.l.b16 %v639
    %v826 = vunpack.c.h.b16 %v639
    %v827 = vunpack.c.l.b16 %v640
    %v828 = vunpack.c.h.b16 %v640
    %v829 = vunpack.c.l.b16 %v641
    %v830 = vunpack.c.h.b16 %v641
    %v831 = vunpack.c.l.b16 %v642
    %v832 = vunpack.c.h.b16 %v642
    %v833 = vunpack.c.l.b16 %v643
    %v834 = vunpack.c.h.b16 %v643
    %v835 = vunpack.c.l.b16 %v644
    %v836 = vunpack.c.h.b16 %v644
    %v837 = vunpack.c.l.b16 %v645
    %v838 = vunpack.c.h.b16 %v645
    %v839 = vunpack.c.l.b16 %v646
    %v840 = vunpack.c.h.b16 %v646
    %v841 = vunpack.c.l.b16 %v647
    %v842 = vunpack.c.h.b16 %v647
    %v843 = vunpack.c.l.b16 %v648
    %v844 = vunpack.c.h.b16 %v648
    %v845 = vunpack.c.l.b16 %v649
    %v846 = vunpack.c.h.b16 %v649
    %v847 = vunpack.c.l.b16 %v650
    %v848 = vunpack.c.h.b16 %v650
    %v849 = vunpack.c.l.b16 %v651
    %v850 = vunpack.c.h.b16 %v651
    %v851 = vunpack.c.l.b16 %v652
    %v852 = vunpack.c.h.b16 %v652
    %v853 = vunpack.c.l.b16 %v653
    %v854 = vunpack.c.h.b16 %v653
    %v855 = vunpack.c.l.b16 %v654
    %v856 = vunpack.c.h.b16 %v654
    %v857 = vpack.c.b16 %v733, %v729
    %v858 = vpack.c.b16 %v734, %v730
    %v859 = vpack.c.b16 %v735, %v731
    %v860 = vpack.c.b16 %v736, %v732
    %v861 = vpack.c.b16 %v741, %v737
    %v862 = vpack.c.b16 %v742, %v738
    %v863 = vpack.c.b16 %v743, %v739
    %v864 = vpack.c.b16 %v744, %v740
    %v865 = vpack.c.b16 %v749, %v745
    %v866 = vpack.c.b16 %v750, %v746
    %v867 = vpack.c.b16 %v751, %v747
    %v868 = vpack.c.b16 %v752, %v748
    %v869 = vpack.c.b16 %v757, %v753
    %v870 = vpack.c.b16 %v758, %v754
    %v871 = vpack.c.b16 %v759, %v755
    %v872 = vpack.c.b16 %v760, %v756
    %v873 = vpack.c.b16 %v765, %v761
    %v874 = vpack.c.b16 %v766, %v762
    %v875 = vpack.c.b16 %v767, %v763
    %v876 = vpack.c.b16 %v768, %v764
    %v877 = vpack.c.b16 %v773, %v769
    %v878 = vpack.c.b16 %v774, %v770
    %v879 = vpack.c.b16 %v775, %v771
    %v880 = vpack.c.b16 %v776, %v772
    %v881 = vpack.c.b16 %v781, %v777
    %v882 = vpack.c.b16 %v782, %v778
    %v883 = vpack.c.b16 %v783, %v779
    %v884 = vpack.c.b16 %v784, %v780
    %v885 = vpack.c.b16 %v789, %v785
    %v886 = vpack.c.b16 %v790, %v786
    %v887 = vpack.c.b16 %v791, %v787
    %v888 = vpack.c.b16 %v792, %v788
    %v889 = vpack.c.b16 %v797, %v793
    %v890 = vpack.c.b16 %v798, %v794
    %v891 = vpack.c.b16 %v799, %v795
    %v892 = vpack.c.b16 %v800, %v796
    %v893 = vpack.c.b16 %v805, %v801
    %v894 = vpack.c.b16 %v806, %v802
    %v895 = vpack.c.b16 %v807, %v803
    %v896 = vpack.c.b16 %v808, %v804
    %v897 = vpack.c.b16 %v813, %v809
    %v898 = vpack.c.b16 %v814, %v810
    %v899 = vpack.c.b16 %v815, %v811
    %v900 = vpack.c.b16 %v816, %v812
    %v901 = vpack.c.b16 %v821, %v817
    %v902 = vpack.c.b16 %v822, %v818
    %v903 = vpack.c.b16 %v823, %v819
    %v904 = vpack.c.b16 %v824, %v820
    %v905 = vpack.c.b16 %v829, %v825
    %v906 = vpack.c.b16 %v830, %v826
    %v907 = vpack.c.b16 %v831, %v827
    %v908 = vpack.c.b16 %v832, %v828
    %v909 = vpack.c.b16 %v837, %v833
    %v910 = vpack.c.b16 %v838, %v834
    %v911 = vpack.c.b16 %v839, %v835
    %v912 = vpack.c.b16 %v840, %v836
    %v913 = vpack.c.b16 %v845, %v841
    %v914 = vpack.c.b16 %v846, %v842
    %v915 = vpack.c.b16 %v847, %v843
    %v916 = vpack.c.b16 %v848, %v844
    %v917 = vpack.c.b16 %v853, %v849
    %v918 = vpack.c.b16 %v854, %v850
    %v919 = vpack.c.b16 %v855, %v851
    %v920 = vpack.c.b16 %v856, %v852
    %985 = vmatpush.bf16.msra.mxu0 %v885
    %986 = vmatpush.bf16.msra.mxu0 %v881
    %987 = vmatpush.bf16.msra.mxu0 %v877
    %988 = vmatpush.bf16.msra.mxu0 %v873
    %989 = vmatpush.bf16.msra.mxu0 %v869
    %990 = vmatpush.bf16.msra.mxu0 %v865
    %991 = vmatpush.bf16.msra.mxu0 %v861
    %992 = vmatpush.bf16.msra.mxu0 %v857
    %993 = vmatmul.bf16.gmra.mxu0 %v589
    %v994 = vpop.f32.mrf.mxu0
    %v995 = vadd.f32 %v657, %v994
    %v996 = vpop.f32.mrf.mxu0
    %997 = vdwg.mxu0
    %998 = vmatpush.bf16.msra.mxu0 %v917
    %999 = vmatpush.bf16.msra.mxu0 %v913
    %1000 = vmatpush.bf16.msra.mxu0 %v909
    %1001 = vmatpush.bf16.msra.mxu0 %v905
    %1002 = vmatpush.bf16.msra.mxu0 %v901
    %1003 = vmatpush.bf16.msra.mxu0 %v897
    %1004 = vmatpush.bf16.msra.mxu0 %v893
    %1005 = vmatpush.bf16.msra.mxu0 %v889
    %1006 = vmatmul.bf16.gmra.mxu0 %v590
    %v1007 = vpop.f32.mrf.mxu0
    %v1008 = vadd.f32 %v995, %v1007
    %v1009 = vpop.f32.mrf.mxu0
    %1010 = vdwg.mxu0
    %1011 = vmatpush.bf16.msra.mxu0 %v886
    %1012 = vmatpush.bf16.msra.mxu0 %v882
    %1013 = vmatpush.bf16.msra.mxu0 %v878
    %1014 = vmatpush.bf16.msra.mxu0 %v874
    %1015 = vmatpush.bf16.msra.mxu0 %v870
    %1016 = vmatpush.bf16.msra.mxu0 %v866
    %1017 = vmatpush.bf16.msra.mxu0 %v862
    %1018 = vmatpush.bf16.msra.mxu0 %v858
    %1019 = vmatmul.bf16.gmra.mxu0 %v589
    %v1020 = vpop.f32.mrf.mxu0
    %v1021 = vadd.f32 %v658, %v1020
    %v1022 = vpop.f32.mrf.mxu0
    %1023 = vdwg.mxu0
    %1024 = vmatpush.bf16.msra.mxu0 %v918
    %1025 = vmatpush.bf16.msra.mxu0 %v914
    %1026 = vmatpush.bf16.msra.mxu0 %v910
    %1027 = vmatpush.bf16.msra.mxu0 %v906
    %1028 = vmatpush.bf16.msra.mxu0 %v902
    %1029 = vmatpush.bf16.msra.mxu0 %v898
    %1030 = vmatpush.bf16.msra.mxu0 %v894
    %1031 = vmatpush.bf16.msra.mxu0 %v890
    %1032 = vmatmul.bf16.gmra.mxu0 %v590
    %v1033 = vpop.f32.mrf.mxu0
    %v1034 = vadd.f32 %v1021, %v1033
    %v1035 = vpop.f32.mrf.mxu0
    %1036 = vdwg.mxu0
    %1037 = vmatpush.bf16.msra.mxu0 %v887
    %1038 = vmatpush.bf16.msra.mxu0 %v883
    %1039 = vmatpush.bf16.msra.mxu0 %v879
    %1040 = vmatpush.bf16.msra.mxu0 %v875
    %1041 = vmatpush.bf16.msra.mxu0 %v871
    %1042 = vmatpush.bf16.msra.mxu0 %v867
    %1043 = vmatpush.bf16.msra.mxu0 %v863
    %1044 = vmatpush.bf16.msra.mxu0 %v859
    %1045 = vmatmul.bf16.gmra.mxu0 %v589
    %v1046 = vpop.f32.mrf.mxu0
    %v1047 = vadd.f32 %v659, %v1046
    %v1048 = vpop.f32.mrf.mxu0
    %1049 = vdwg.mxu0
    %1050 = vmatpush.bf16.msra.mxu0 %v919
    %1051 = vmatpush.bf16.msra.mxu0 %v915
    %1052 = vmatpush.bf16.msra.mxu0 %v911
    %1053 = vmatpush.bf16.msra.mxu0 %v907
    %1054 = vmatpush.bf16.msra.mxu0 %v903
    %1055 = vmatpush.bf16.msra.mxu0 %v899
    %1056 = vmatpush.bf16.msra.mxu0 %v895
    %1057 = vmatpush.bf16.msra.mxu0 %v891
    %1058 = vmatmul.bf16.gmra.mxu0 %v590
    %v1059 = vpop.f32.mrf.mxu0
    %v1060 = vadd.f32 %v1047, %v1059
    %v1061 = vpop.f32.mrf.mxu0
    %1062 = vdwg.mxu0
    %1063 = vmatpush.bf16.msra.mxu0 %v888
    %1064 = vmatpush.bf16.msra.mxu0 %v884
    %1065 = vmatpush.bf16.msra.mxu0 %v880
    %1066 = vmatpush.bf16.msra.mxu0 %v876
    %1067 = vmatpush.bf16.msra.mxu0 %v872
    %1068 = vmatpush.bf16.msra.mxu0 %v868
    %1069 = vmatpush.bf16.msra.mxu0 %v864
    %1070 = vmatpush.bf16.msra.mxu0 %v860
    %1071 = vmatmul.bf16.gmra.mxu0 %v589
    %v1072 = vpop.f32.mrf.mxu0
    %v1073 = vadd.f32 %v660, %v1072
    %v1074 = vpop.f32.mrf.mxu0
    %1075 = vdwg.mxu0
    %1076 = vmatpush.bf16.msra.mxu0 %v920
    %1077 = vmatpush.bf16.msra.mxu0 %v916
    %1078 = vmatpush.bf16.msra.mxu0 %v912
    %1079 = vmatpush.bf16.msra.mxu0 %v908
    %1080 = vmatpush.bf16.msra.mxu0 %v904
    %1081 = vmatpush.bf16.msra.mxu0 %v900
    %1082 = vmatpush.bf16.msra.mxu0 %v896
    %1083 = vmatpush.bf16.msra.mxu0 %v892
    %1084 = vmatmul.bf16.gmra.mxu0 %v590
    %v1085 = vpop.f32.mrf.mxu0
    %v1086 = vadd.f32 %v1073, %v1085
    %v1087 = vpop.f32.mrf.mxu0
    %1088 = vdwg.mxu0
    %v1089 = vld [vmem:[#allocation17] sm:$0xf]
    %v1090 = vld [vmem:[#allocation18] sm:$0xf]
    %v1091 = vrot.slane %v1008, 4
    %v1092 = vadd.f32 %v1008, %v1091
    %v1093 = vrot.slane %v1092, 2
    %v1094 = vadd.f32 %v1092, %v1093
    %v1095 = vrot.slane %v1094, 1
    %v1096 = vadd.f32 %v1094, %v1095
    %v1097 = vrot.slane %v1034, 4
    %v1098 = vadd.f32 %v1034, %v1097
    %v1099 = vrot.slane %v1098, 2
    %v1100 = vadd.f32 %v1098, %v1099
    %v1101 = vrot.slane %v1100, 1
    %v1102 = vadd.f32 %v1100, %v1101
    %v1103 = vrot.slane %v1060, 4
    %v1104 = vadd.f32 %v1060, %v1103
    %v1105 = vrot.slane %v1104, 2
    %v1106 = vadd.f32 %v1104, %v1105
    %v1107 = vrot.slane %v1106, 1
    %v1108 = vadd.f32 %v1106, %v1107
    %v1109 = vrot.slane %v1086, 4
    %v1110 = vadd.f32 %v1086, %v1109
    %v1111 = vrot.slane %v1110, 2
    %v1112 = vadd.f32 %v1110, %v1111
    %v1113 = vrot.slane %v1112, 1
    %v1114 = vadd.f32 %v1112, %v1113
    %v1115 = vmul.f32 %v1096, %v511
    %v1116 = vmul.f32 %v1102, %v511
    %v1117 = vmul.f32 %v1108, %v511
    %v1118 = vmul.f32 %v1114, %v511
    %v1119 = vmul.f32 %v1008, %v1008
    %v1120 = vmul.f32 %v1034, %v1034
    %v1121 = vmul.f32 %v1060, %v1060
    %v1122 = vmul.f32 %v1086, %v1086
    %v1123 = vrot.slane %v1119, 4
    %v1124 = vadd.f32 %v1119, %v1123
    %v1125 = vrot.slane %v1124, 2
    %v1126 = vadd.f32 %v1124, %v1125
    %v1127 = vrot.slane %v1126, 1
    %v1128 = vadd.f32 %v1126, %v1127
    %v1129 = vrot.slane %v1120, 4
    %v1130 = vadd.f32 %v1120, %v1129
    %v1131 = vrot.slane %v1130, 2
    %v1132 = vadd.f32 %v1130, %v1131
    %v1133 = vrot.slane %v1132, 1
    %v1134 = vadd.f32 %v1132, %v1133
    %v1135 = vrot.slane %v1121, 4
    %v1136 = vadd.f32 %v1121, %v1135
    %v1137 = vrot.slane %v1136, 2
    %v1138 = vadd.f32 %v1136, %v1137
    %v1139 = vrot.slane %v1138, 1
    %v1140 = vadd.f32 %v1138, %v1139
    %v1141 = vrot.slane %v1122, 4
    %v1142 = vadd.f32 %v1122, %v1141
    %v1143 = vrot.slane %v1142, 2
    %v1144 = vadd.f32 %v1142, %v1143
    %v1145 = vrot.slane %v1144, 1
    %v1146 = vadd.f32 %v1144, %v1145
    %v1147 = vmul.f32 %v1128, %v511
    %v1148 = vmul.f32 %v1134, %v511
    %v1149 = vmul.f32 %v1140, %v511
    %v1150 = vmul.f32 %v1146, %v511
    %v1151 = vmul.f32 %v1115, %v1115
    %v1152 = vmul.f32 %v1116, %v1116
    %v1153 = vmul.f32 %v1117, %v1117
    %v1154 = vmul.f32 %v1118, %v1118
    %v1155 = vsub.f32 %v1147, %v1151
    %v1156 = vsub.f32 %v1148, %v1152
    %v1157 = vsub.f32 %v1149, %v1153
    %v1158 = vsub.f32 %v1150, %v1154
    %v1159 = vmax.f32 %v1155, 0.0
    %v1160 = vmax.f32 %v1156, 0.0
    %v1161 = vmax.f32 %v1157, 0.0
    %v1162 = vmax.f32 %v1158, 0.0
    %v1163 = vadd.f32 %v1159, 1e-05
    %v1164 = vadd.f32 %v1160, 1e-05
    %v1165 = vadd.f32 %v1161, 1e-05
    %v1166 = vadd.f32 %v1162, 1e-05
    %v1167 = vrsqrt.pop %v1163
    %v1168 = vmul.f32 %v1167, %v1163
    %v1169 = vmul.f32 %v1168, %v1167
    %v1170 = vmul.f32 0.5, %v1169
    %v1171 = vsub.f32 1.5, %v1170
    %v1172 = vmul.f32 %v1167, %v1171
    %vm1173 = vweird.f32 %v1163
    %vm1174 = vweird.f32 %v1167
    %vm1175 = vmor %vm1173, %vm1174
    %v1176 = vsel %vm1175, %v1167, %v1172
    %v1177 = vrsqrt.pop %v1164
    %v1178 = vmul.f32 %v1177, %v1164
    %v1179 = vmul.f32 %v1178, %v1177
    %v1180 = vmul.f32 0.5, %v1179
    %v1181 = vsub.f32 1.5, %v1180
    %v1182 = vmul.f32 %v1177, %v1181
    %vm1183 = vweird.f32 %v1164
    %vm1184 = vweird.f32 %v1177
    %vm1185 = vmor %vm1183, %vm1184
    %v1186 = vsel %vm1185, %v1177, %v1182
    %v1187 = vrsqrt.pop %v1165
    %v1188 = vmul.f32 %v1187, %v1165
    %v1189 = vmul.f32 %v1188, %v1187
    %v1190 = vmul.f32 0.5, %v1189
    %v1191 = vsub.f32 1.5, %v1190
    %v1192 = vmul.f32 %v1187, %v1191
    %vm1193 = vweird.f32 %v1165
    %vm1194 = vweird.f32 %v1187
    %vm1195 = vmor %vm1193, %vm1194
    %v1196 = vsel %vm1195, %v1187, %v1192
    %v1197 = vrsqrt.pop %v1166
    %v1198 = vmul.f32 %v1197, %v1166
    %v1199 = vmul.f32 %v1198, %v1197
    %v1200 = vmul.f32 0.5, %v1199
    %v1201 = vsub.f32 1.5, %v1200
    %v1202 = vmul.f32 %v1197, %v1201
    %vm1203 = vweird.f32 %v1166
    %vm1204 = vweird.f32 %v1197
    %vm1205 = vmor %vm1203, %vm1204
    %v1206 = vsel %vm1205, %v1197, %v1202
    %v1211 = vrot.slane %v1186, 7
    %v1212 = vrot.slane %v1196, 6
    %v1213 = vrot.slane %v1206, 5
    %v1214 = vsel %vm561, %v1176, %v1211
    %vm1215 = vcmask 1042434
    %v1216 = vsel %vm1215, %v1212, %v1213
    %vm1217 = vcmask 1041408
    %v1218 = vsel %vm1217, %v1214, %v1216
    %v1220 = vmul.f32 %v1089, %v1218
    %v1222 = vperm.slane %v1220, 0
    %v1223 = vperm.slane %v1220, 1
    %v1224 = vperm.slane %v1220, 2
    %v1225 = vperm.slane %v1220, 3
    %v1230 = vmul.f32 %v1115, %v1222
    %v1231 = vmul.f32 %v1116, %v1223
    %v1232 = vmul.f32 %v1117, %v1224
    %v1233 = vmul.f32 %v1118, %v1225
    %v1238 = vrot.slane %v1231, 7
    %v1239 = vrot.slane %v1232, 6
    %v1240 = vrot.slane %v1233, 5
    %v1241 = vsel %vm561, %v1230, %v1238
    %v1242 = vsel %vm1215, %v1239, %v1240
    %v1243 = vsel %vm1217, %v1241, %v1242
    %v1245 = vsub.f32 %v1090, %v1243
    %v1246 = vmul.f32 %v1008, %v1222
    %v1247 = vmul.f32 %v1034, %v1223
    %v1248 = vmul.f32 %v1060, %v1224
    %v1249 = vmul.f32 %v1086, %v1225
    %v1251 = vperm.slane %v1245, 0
    %v1252 = vperm.slane %v1245, 1
    %v1253 = vperm.slane %v1245, 2
    %v1254 = vperm.slane %v1245, 3
    %v1259 = vadd.f32 %v1246, %v1251
    %v1260 = vadd.f32 %v1247, %v1252
    %v1261 = vadd.f32 %v1248, %v1253
    %v1262 = vadd.f32 %v1249, %v1254
    %v1263 = vmax.f32 %v1259, 0.0
    %v1264 = vmax.f32 %v1260, 0.0
    %v1265 = vmax.f32 %v1261, 0.0
    %v1266 = vmax.f32 %v1262, 0.0
    %v1267 = vpack.c.bf16 %v1263, %v1263
    %v1268 = vpack.c.bf16 %v1264, %v1264
    %v1269 = vpack.c.bf16 %v1265, %v1265
    %v1270 = vpack.c.bf16 %v1266, %v1266
    %v1271 = vld [vmem:[#allocation20] sm:$0xff]
    %v1272 = vld [vmem:[#allocation20 + $0x8] sm:$0xff]
    %v1273 = vld [vmem:[#allocation20 + $0x10] sm:$0xff]
    %v1274 = vld [vmem:[#allocation20 + $0x18] sm:$0xff]
    %v1275 = vld [vmem:[#allocation20 + $0x20] sm:$0xff]
    %v1276 = vld [vmem:[#allocation20 + $0x28] sm:$0xff]
    %v1277 = vld [vmem:[#allocation20 + $0x30] sm:$0xff]
    %v1278 = vld [vmem:[#allocation20 + $0x38] sm:$0xff]
    %v1279 = vld [vmem:[#allocation20 + $0x40] sm:$0xff]
    %v1280 = vld [vmem:[#allocation20 + $0x48] sm:$0xff]
    %v1281 = vld [vmem:[#allocation20 + $0x50] sm:$0xff]
    %v1282 = vld [vmem:[#allocation20 + $0x58] sm:$0xff]
    %v1283 = vld [vmem:[#allocation20 + $0x60] sm:$0xff]
    %v1284 = vld [vmem:[#allocation20 + $0x68] sm:$0xff]
    %v1285 = vld [vmem:[#allocation20 + $0x70] sm:$0xff]
    %v1286 = vld [vmem:[#allocation20 + $0x78] sm:$0xff]
    %v1287 = vld [vmem:[#allocation20 + $0x80] sm:$0xff]
    %v1288 = vld [vmem:[#allocation20 + $0x88] sm:$0xff]
    %v1289 = vld [vmem:[#allocation20 + $0x90] sm:$0xff]
    %v1290 = vld [vmem:[#allocation20 + $0x98] sm:$0xff]
    %v1291 = vld [vmem:[#allocation20 + $0xa0] sm:$0xff]
    %v1292 = vld [vmem:[#allocation20 + $0xa8] sm:$0xff]
    %v1293 = vld [vmem:[#allocation20 + $0xb0] sm:$0xff]
    %v1294 = vld [vmem:[#allocation20 + $0xb8] sm:$0xff]
    %v1295 = vld [vmem:[#allocation20 + $0xc0] sm:$0xff]
    %v1296 = vld [vmem:[#allocation20 + $0xc8] sm:$0xff]
    %v1297 = vld [vmem:[#allocation20 + $0xd0] sm:$0xff]
    %v1298 = vld [vmem:[#allocation20 + $0xd8] sm:$0xff]
    %v1299 = vld [vmem:[#allocation20 + $0xe0] sm:$0xff]
    %v1300 = vld [vmem:[#allocation20 + $0xe8] sm:$0xff]
    %v1301 = vld [vmem:[#allocation20 + $0xf0] sm:$0xff]
    %v1302 = vld [vmem:[#allocation20 + $0xf8] sm:$0xff]
    %v1303 = vld [vmem:[#allocation20 + $0x100] sm:$0xff]
    %v1304 = vld [vmem:[#allocation20 + $0x108] sm:$0xff]
    %v1305 = vld [vmem:[#allocation20 + $0x110] sm:$0xff]
    %v1306 = vld [vmem:[#allocation20 + $0x118] sm:$0xff]
    %v1307 = vld [vmem:[#allocation20 + $0x120] sm:$0xff]
    %v1308 = vld [vmem:[#allocation20 + $0x128] sm:$0xff]
    %v1309 = vld [vmem:[#allocation20 + $0x130] sm:$0xff]
    %v1310 = vld [vmem:[#allocation20 + $0x138] sm:$0xff]
    %v1311 = vld [vmem:[#allocation20 + $0x140] sm:$0xff]
    %v1312 = vld [vmem:[#allocation20 + $0x148] sm:$0xff]
    %v1313 = vld [vmem:[#allocation20 + $0x150] sm:$0xff]
    %v1314 = vld [vmem:[#allocation20 + $0x158] sm:$0xff]
    %v1315 = vld [vmem:[#allocation20 + $0x160] sm:$0xff]
    %v1316 = vld [vmem:[#allocation20 + $0x168] sm:$0xff]
    %v1317 = vld [vmem:[#allocation20 + $0x170] sm:$0xff]
    %v1318 = vld [vmem:[#allocation20 + $0x178] sm:$0xff]
    %v1319 = vld [vmem:[#allocation20 + $0x180] sm:$0xff]
    %v1320 = vld [vmem:[#allocation20 + $0x188] sm:$0xff]
    %v1321 = vld [vmem:[#allocation20 + $0x190] sm:$0xff]
    %v1322 = vld [vmem:[#allocation20 + $0x198] sm:$0xff]
    %v1323 = vld [vmem:[#allocation20 + $0x1a0] sm:$0xff]
    %v1324 = vld [vmem:[#allocation20 + $0x1a8] sm:$0xff]
    %v1325 = vld [vmem:[#allocation20 + $0x1b0] sm:$0xff]
    %v1326 = vld [vmem:[#allocation20 + $0x1b8] sm:$0xff]
    %v1327 = vld [vmem:[#allocation20 + $0x1c0] sm:$0xff]
    %v1328 = vld [vmem:[#allocation20 + $0x1c8] sm:$0xff]
    %v1329 = vld [vmem:[#allocation20 + $0x1d0] sm:$0xff]
    %v1330 = vld [vmem:[#allocation20 + $0x1d8] sm:$0xff]
    %v1331 = vld [vmem:[#allocation20 + $0x1e0] sm:$0xff]
    %v1332 = vld [vmem:[#allocation20 + $0x1e8] sm:$0xff]
    %v1333 = vld [vmem:[#allocation20 + $0x1f0] sm:$0xff]
    %v1334 = vld [vmem:[#allocation20 + $0x1f8] sm:$0xff]
    %v1335 = vld [vmem:[#allocation20 + $0x200] sm:$0xff]
    %v1336 = vld [vmem:[#allocation20 + $0x208] sm:$0xff]
    %v1337 = vld [vmem:[#allocation20 + $0x210] sm:$0xff]
    %v1338 = vld [vmem:[#allocation20 + $0x218] sm:$0xff]
    %v1339 = vld [vmem:[#allocation20 + $0x220] sm:$0xff]
    %v1340 = vld [vmem:[#allocation20 + $0x228] sm:$0xff]
    %v1341 = vld [vmem:[#allocation20 + $0x230] sm:$0xff]
    %v1342 = vld [vmem:[#allocation20 + $0x238] sm:$0xff]
    %v1343 = vld [vmem:[#allocation20 + $0x240] sm:$0xff]
    %v1344 = vld [vmem:[#allocation20 + $0x248] sm:$0xff]
    %v1345 = vld [vmem:[#allocation20 + $0x250] sm:$0xff]
    %v1346 = vld [vmem:[#allocation20 + $0x258] sm:$0xff]
    %v1347 = vld [vmem:[#allocation20 + $0x260] sm:$0xff]
    %v1348 = vld [vmem:[#allocation20 + $0x268] sm:$0xff]
    %v1349 = vld [vmem:[#allocation20 + $0x270] sm:$0xff]
    %v1350 = vld [vmem:[#allocation20 + $0x278] sm:$0xff]
    %v1351 = vld [vmem:[#allocation20 + $0x280] sm:$0xff]
    %v1352 = vld [vmem:[#allocation20 + $0x288] sm:$0xff]
    %v1353 = vld [vmem:[#allocation20 + $0x290] sm:$0xff]
    %v1354 = vld [vmem:[#allocation20 + $0x298] sm:$0xff]
    %v1355 = vld [vmem:[#allocation20 + $0x2a0] sm:$0xff]
    %v1356 = vld [vmem:[#allocation20 + $0x2a8] sm:$0xff]
    %v1357 = vld [vmem:[#allocation20 + $0x2b0] sm:$0xff]
    %v1358 = vld [vmem:[#allocation20 + $0x2b8] sm:$0xff]
    %v1359 = vld [vmem:[#allocation20 + $0x2c0] sm:$0xff]
    %v1360 = vld [vmem:[#allocation20 + $0x2c8] sm:$0xff]
    %v1361 = vld [vmem:[#allocation20 + $0x2d0] sm:$0xff]
    %v1362 = vld [vmem:[#allocation20 + $0x2d8] sm:$0xff]
    %v1363 = vld [vmem:[#allocation20 + $0x2e0] sm:$0xff]
    %v1364 = vld [vmem:[#allocation20 + $0x2e8] sm:$0xff]
    %v1365 = vld [vmem:[#allocation20 + $0x2f0] sm:$0xff]
    %v1366 = vld [vmem:[#allocation20 + $0x2f8] sm:$0xff]
    %v1367 = vld [vmem:[#allocation20 + $0x300] sm:$0xff]
    %v1368 = vld [vmem:[#allocation20 + $0x308] sm:$0xff]
    %v1369 = vld [vmem:[#allocation20 + $0x310] sm:$0xff]
    %v1370 = vld [vmem:[#allocation20 + $0x318] sm:$0xff]
    %v1371 = vld [vmem:[#allocation20 + $0x320] sm:$0xff]
    %v1372 = vld [vmem:[#allocation20 + $0x328] sm:$0xff]
    %v1373 = vld [vmem:[#allocation20 + $0x330] sm:$0xff]
    %v1374 = vld [vmem:[#allocation20 + $0x338] sm:$0xff]
    %v1375 = vld [vmem:[#allocation20 + $0x340] sm:$0xff]
    %v1376 = vld [vmem:[#allocation20 + $0x348] sm:$0xff]
    %v1377 = vld [vmem:[#allocation20 + $0x350] sm:$0xff]
    %v1378 = vld [vmem:[#allocation20 + $0x358] sm:$0xff]
    %v1379 = vld [vmem:[#allocation20 + $0x360] sm:$0xff]
    %v1380 = vld [vmem:[#allocation20 + $0x368] sm:$0xff]
    %v1381 = vld [vmem:[#allocation20 + $0x370] sm:$0xff]
    %v1382 = vld [vmem:[#allocation20 + $0x378] sm:$0xff]
    %v1383 = vld [vmem:[#allocation20 + $0x380] sm:$0xff]
    %v1384 = vld [vmem:[#allocation20 + $0x388] sm:$0xff]
    %v1385 = vld [vmem:[#allocation20 + $0x390] sm:$0xff]
    %v1386 = vld [vmem:[#allocation20 + $0x398] sm:$0xff]
    %v1387 = vld [vmem:[#allocation20 + $0x3a0] sm:$0xff]
    %v1388 = vld [vmem:[#allocation20 + $0x3a8] sm:$0xff]
    %v1389 = vld [vmem:[#allocation20 + $0x3b0] sm:$0xff]
    %v1390 = vld [vmem:[#allocation20 + $0x3b8] sm:$0xff]
    %v1391 = vld [vmem:[#allocation20 + $0x3c0] sm:$0xff]
    %v1392 = vld [vmem:[#allocation20 + $0x3c8] sm:$0xff]
    %v1393 = vld [vmem:[#allocation20 + $0x3d0] sm:$0xff]
    %v1394 = vld [vmem:[#allocation20 + $0x3d8] sm:$0xff]
    %v1395 = vld [vmem:[#allocation20 + $0x3e0] sm:$0xff]
    %v1396 = vld [vmem:[#allocation20 + $0x3e8] sm:$0xff]
    %v1397 = vld [vmem:[#allocation20 + $0x3f0] sm:$0xff]
    %v1398 = vld [vmem:[#allocation20 + $0x3f8] sm:$0xff]
    %v1399 = vld [vmem:[#allocation20 + $0x400] sm:$0xff]
    %v1400 = vld [vmem:[#allocation20 + $0x408] sm:$0xff]
    %v1401 = vld [vmem:[#allocation20 + $0x410] sm:$0xff]
    %v1402 = vld [vmem:[#allocation20 + $0x418] sm:$0xff]
    %v1403 = vld [vmem:[#allocation20 + $0x420] sm:$0xff]
    %v1404 = vld [vmem:[#allocation20 + $0x428] sm:$0xff]
    %v1405 = vld [vmem:[#allocation20 + $0x430] sm:$0xff]
    %v1406 = vld [vmem:[#allocation20 + $0x438] sm:$0xff]
    %v1407 = vld [vmem:[#allocation20 + $0x440] sm:$0xff]
    %v1408 = vld [vmem:[#allocation20 + $0x448] sm:$0xff]
    %v1409 = vld [vmem:[#allocation20 + $0x450] sm:$0xff]
    %v1410 = vld [vmem:[#allocation20 + $0x458] sm:$0xff]
    %v1411 = vld [vmem:[#allocation20 + $0x460] sm:$0xff]
    %v1412 = vld [vmem:[#allocation20 + $0x468] sm:$0xff]
    %v1413 = vld [vmem:[#allocation20 + $0x470] sm:$0xff]
    %v1414 = vld [vmem:[#allocation20 + $0x478] sm:$0xff]
    %v1415 = vld [vmem:[#allocation20 + $0x480] sm:$0xff]
    %v1416 = vld [vmem:[#allocation20 + $0x488] sm:$0xff]
    %v1417 = vld [vmem:[#allocation20 + $0x490] sm:$0xff]
    %v1418 = vld [vmem:[#allocation20 + $0x498] sm:$0xff]
    %v1419 = vld [vmem:[#allocation20 + $0x4a0] sm:$0xff]
    %v1420 = vld [vmem:[#allocation20 + $0x4a8] sm:$0xff]
    %v1421 = vld [vmem:[#allocation20 + $0x4b0] sm:$0xff]
    %v1422 = vld [vmem:[#allocation20 + $0x4b8] sm:$0xff]
    %v1423 = vld [vmem:[#allocation20 + $0x4c0] sm:$0xff]
    %v1424 = vld [vmem:[#allocation20 + $0x4c8] sm:$0xff]
    %v1425 = vld [vmem:[#allocation20 + $0x4d0] sm:$0xff]
    %v1426 = vld [vmem:[#allocation20 + $0x4d8] sm:$0xff]
    %v1427 = vld [vmem:[#allocation20 + $0x4e0] sm:$0xff]
    %v1428 = vld [vmem:[#allocation20 + $0x4e8] sm:$0xff]
    %v1429 = vld [vmem:[#allocation20 + $0x4f0] sm:$0xff]
    %v1430 = vld [vmem:[#allocation20 + $0x4f8] sm:$0xff]
    %v1431 = vld [vmem:[#allocation20 + $0x500] sm:$0xff]
    %v1432 = vld [vmem:[#allocation20 + $0x508] sm:$0xff]
    %v1433 = vld [vmem:[#allocation20 + $0x510] sm:$0xff]
    %v1434 = vld [vmem:[#allocation20 + $0x518] sm:$0xff]
    %v1435 = vld [vmem:[#allocation20 + $0x520] sm:$0xff]
    %v1436 = vld [vmem:[#allocation20 + $0x528] sm:$0xff]
    %v1437 = vld [vmem:[#allocation20 + $0x530] sm:$0xff]
    %v1438 = vld [vmem:[#allocation20 + $0x538] sm:$0xff]
    %v1439 = vld [vmem:[#allocation20 + $0x540] sm:$0xff]
    %v1440 = vld [vmem:[#allocation20 + $0x548] sm:$0xff]
    %v1441 = vld [vmem:[#allocation20 + $0x550] sm:$0xff]
    %v1442 = vld [vmem:[#allocation20 + $0x558] sm:$0xff]
    %v1443 = vld [vmem:[#allocation20 + $0x560] sm:$0xff]
    %v1444 = vld [vmem:[#allocation20 + $0x568] sm:$0xff]
    %v1445 = vld [vmem:[#allocation20 + $0x570] sm:$0xff]
    %v1446 = vld [vmem:[#allocation20 + $0x578] sm:$0xff]
    %v1447 = vld [vmem:[#allocation20 + $0x580] sm:$0xff]
    %v1448 = vld [vmem:[#allocation20 + $0x588] sm:$0xff]
    %v1449 = vld [vmem:[#allocation20 + $0x590] sm:$0xff]
    %v1450 = vld [vmem:[#allocation20 + $0x598] sm:$0xff]
    %v1451 = vld [vmem:[#allocation20 + $0x5a0] sm:$0xff]
    %v1452 = vld [vmem:[#allocation20 + $0x5a8] sm:$0xff]
    %v1453 = vld [vmem:[#allocation20 + $0x5b0] sm:$0xff]
    %v1454 = vld [vmem:[#allocation20 + $0x5b8] sm:$0xff]
    %v1455 = vld [vmem:[#allocation20 + $0x5c0] sm:$0xff]
    %v1456 = vld [vmem:[#allocation20 + $0x5c8] sm:$0xff]
    %v1457 = vld [vmem:[#allocation20 + $0x5d0] sm:$0xff]
    %v1458 = vld [vmem:[#allocation20 + $0x5d8] sm:$0xff]
    %v1459 = vld [vmem:[#allocation20 + $0x5e0] sm:$0xff]
    %v1460 = vld [vmem:[#allocation20 + $0x5e8] sm:$0xff]
    %v1461 = vld [vmem:[#allocation20 + $0x5f0] sm:$0xff]
    %v1462 = vld [vmem:[#allocation20 + $0x5f8] sm:$0xff]
    %v1463 = vld [vmem:[#allocation20 + $0x600] sm:$0xff]
    %v1464 = vld [vmem:[#allocation20 + $0x608] sm:$0xff]
    %v1465 = vld [vmem:[#allocation20 + $0x610] sm:$0xff]
    %v1466 = vld [vmem:[#allocation20 + $0x618] sm:$0xff]
    %v1467 = vld [vmem:[#allocation20 + $0x620] sm:$0xff]
    %v1468 = vld [vmem:[#allocation20 + $0x628] sm:$0xff]
    %v1469 = vld [vmem:[#allocation20 + $0x630] sm:$0xff]
    %v1470 = vld [vmem:[#allocation20 + $0x638] sm:$0xff]
    %v1471 = vld [vmem:[#allocation20 + $0x640] sm:$0xff]
    %v1472 = vld [vmem:[#allocation20 + $0x648] sm:$0xff]
    %v1473 = vld [vmem:[#allocation20 + $0x650] sm:$0xff]
    %v1474 = vld [vmem:[#allocation20 + $0x658] sm:$0xff]
    %v1475 = vld [vmem:[#allocation20 + $0x660] sm:$0xff]
    %v1476 = vld [vmem:[#allocation20 + $0x668] sm:$0xff]
    %v1477 = vld [vmem:[#allocation20 + $0x670] sm:$0xff]
    %v1478 = vld [vmem:[#allocation20 + $0x678] sm:$0xff]
    %v1479 = vld [vmem:[#allocation20 + $0x680] sm:$0xff]
    %v1480 = vld [vmem:[#allocation20 + $0x688] sm:$0xff]
    %v1481 = vld [vmem:[#allocation20 + $0x690] sm:$0xff]
    %v1482 = vld [vmem:[#allocation20 + $0x698] sm:$0xff]
    %v1483 = vld [vmem:[#allocation20 + $0x6a0] sm:$0xff]
    %v1484 = vld [vmem:[#allocation20 + $0x6a8] sm:$0xff]
    %v1485 = vld [vmem:[#allocation20 + $0x6b0] sm:$0xff]
    %v1486 = vld [vmem:[#allocation20 + $0x6b8] sm:$0xff]
    %v1487 = vld [vmem:[#allocation20 + $0x6c0] sm:$0xff]
    %v1488 = vld [vmem:[#allocation20 + $0x6c8] sm:$0xff]
    %v1489 = vld [vmem:[#allocation20 + $0x6d0] sm:$0xff]
    %v1490 = vld [vmem:[#allocation20 + $0x6d8] sm:$0xff]
    %v1491 = vld [vmem:[#allocation20 + $0x6e0] sm:$0xff]
    %v1492 = vld [vmem:[#allocation20 + $0x6e8] sm:$0xff]
    %v1493 = vld [vmem:[#allocation20 + $0x6f0] sm:$0xff]
    %v1494 = vld [vmem:[#allocation20 + $0x6f8] sm:$0xff]
    %v1495 = vld [vmem:[#allocation20 + $0x700] sm:$0xff]
    %v1496 = vld [vmem:[#allocation20 + $0x708] sm:$0xff]
    %v1497 = vld [vmem:[#allocation20 + $0x710] sm:$0xff]
    %v1498 = vld [vmem:[#allocation20 + $0x718] sm:$0xff]
    %v1499 = vld [vmem:[#allocation20 + $0x720] sm:$0xff]
    %v1500 = vld [vmem:[#allocation20 + $0x728] sm:$0xff]
    %v1501 = vld [vmem:[#allocation20 + $0x730] sm:$0xff]
    %v1502 = vld [vmem:[#allocation20 + $0x738] sm:$0xff]
    %v1503 = vld [vmem:[#allocation20 + $0x740] sm:$0xff]
    %v1504 = vld [vmem:[#allocation20 + $0x748] sm:$0xff]
    %v1505 = vld [vmem:[#allocation20 + $0x750] sm:$0xff]
    %v1506 = vld [vmem:[#allocation20 + $0x758] sm:$0xff]
    %v1507 = vld [vmem:[#allocation20 + $0x760] sm:$0xff]
    %v1508 = vld [vmem:[#allocation20 + $0x768] sm:$0xff]
    %v1509 = vld [vmem:[#allocation20 + $0x770] sm:$0xff]
    %v1510 = vld [vmem:[#allocation20 + $0x778] sm:$0xff]
    %v1511 = vld [vmem:[#allocation20 + $0x780] sm:$0xff]
    %v1512 = vld [vmem:[#allocation20 + $0x788] sm:$0xff]
    %v1513 = vld [vmem:[#allocation20 + $0x790] sm:$0xff]
    %v1514 = vld [vmem:[#allocation20 + $0x798] sm:$0xff]
    %v1515 = vld [vmem:[#allocation20 + $0x7a0] sm:$0xff]
    %v1516 = vld [vmem:[#allocation20 + $0x7a8] sm:$0xff]
    %v1517 = vld [vmem:[#allocation20 + $0x7b0] sm:$0xff]
    %v1518 = vld [vmem:[#allocation20 + $0x7b8] sm:$0xff]
    %v1519 = vld [vmem:[#allocation20 + $0x7c0] sm:$0xff]
    %v1520 = vld [vmem:[#allocation20 + $0x7c8] sm:$0xff]
    %v1521 = vld [vmem:[#allocation20 + $0x7d0] sm:$0xff]
    %v1522 = vld [vmem:[#allocation20 + $0x7d8] sm:$0xff]
    %v1523 = vld [vmem:[#allocation20 + $0x7e0] sm:$0xff]
    %v1524 = vld [vmem:[#allocation20 + $0x7e8] sm:$0xff]
    %v1525 = vld [vmem:[#allocation20 + $0x7f0] sm:$0xff]
    %v1526 = vld [vmem:[#allocation20 + $0x7f8] sm:$0xff]
    %v1527 = vld [vmem:[#allocation21] sm:$0xff]
    %v1529 = vperm.slane %v1527, 0
    %v1530 = vperm.slane %v1527, 1
    %v1531 = vperm.slane %v1527, 2
    %v1532 = vperm.slane %v1527, 3
    %v1533 = vperm.slane %v1527, 4
    %v1534 = vperm.slane %v1527, 5
    %v1535 = vperm.slane %v1527, 6
    %v1536 = vperm.slane %v1527, 7
    %v1801 = vunpack.c.l.b16 %v1271
    %v1802 = vunpack.c.h.b16 %v1271
    %v1803 = vunpack.c.l.b16 %v1272
    %v1804 = vunpack.c.h.b16 %v1272
    %v1805 = vunpack.c.l.b16 %v1273
    %v1806 = vunpack.c.h.b16 %v1273
    %v1807 = vunpack.c.l.b16 %v1274
    %v1808 = vunpack.c.h.b16 %v1274
    %v1809 = vunpack.c.l.b16 %v1275
    %v1810 = vunpack.c.h.b16 %v1275
    %v1811 = vunpack.c.l.b16 %v1276
    %v1812 = vunpack.c.h.b16 %v1276
    %v1813 = vunpack.c.l.b16 %v1277
    %v1814 = vunpack.c.h.b16 %v1277
    %v1815 = vunpack.c.l.b16 %v1278
    %v1816 = vunpack.c.h.b16 %v1278
    %v1817 = vunpack.c.l.b16 %v1279
    %v1818 = vunpack.c.h.b16 %v1279
    %v1819 = vunpack.c.l.b16 %v1280
    %v1820 = vunpack.c.h.b16 %v1280
    %v1821 = vunpack.c.l.b16 %v1281
    %v1822 = vunpack.c.h.b16 %v1281
    %v1823 = vunpack.c.l.b16 %v1282
    %v1824 = vunpack.c.h.b16 %v1282
    %v1825 = vunpack.c.l.b16 %v1283
    %v1826 = vunpack.c.h.b16 %v1283
    %v1827 = vunpack.c.l.b16 %v1284
    %v1828 = vunpack.c.h.b16 %v1284
    %v1829 = vunpack.c.l.b16 %v1285
    %v1830 = vunpack.c.h.b16 %v1285
    %v1831 = vunpack.c.l.b16 %v1286
    %v1832 = vunpack.c.h.b16 %v1286
    %v1833 = vunpack.c.l.b16 %v1287
    %v1834 = vunpack.c.h.b16 %v1287
    %v1835 = vunpack.c.l.b16 %v1288
    %v1836 = vunpack.c.h.b16 %v1288
    %v1837 = vunpack.c.l.b16 %v1289
    %v1838 = vunpack.c.h.b16 %v1289
    %v1839 = vunpack.c.l.b16 %v1290
    %v1840 = vunpack.c.h.b16 %v1290
    %v1841 = vunpack.c.l.b16 %v1291
    %v1842 = vunpack.c.h.b16 %v1291
    %v1843 = vunpack.c.l.b16 %v1292
    %v1844 = vunpack.c.h.b16 %v1292
    %v1845 = vunpack.c.l.b16 %v1293
    %v1846 = vunpack.c.h.b16 %v1293
    %v1847 = vunpack.c.l.b16 %v1294
    %v1848 = vunpack.c.h.b16 %v1294
    %v1849 = vunpack.c.l.b16 %v1295
    %v1850 = vunpack.c.h.b16 %v1295
    %v1851 = vunpack.c.l.b16 %v1296
    %v1852 = vunpack.c.h.b16 %v1296
    %v1853 = vunpack.c.l.b16 %v1297
    %v1854 = vunpack.c.h.b16 %v1297
    %v1855 = vunpack.c.l.b16 %v1298
    %v1856 = vunpack.c.h.b16 %v1298
    %v1857 = vunpack.c.l.b16 %v1299
    %v1858 = vunpack.c.h.b16 %v1299
    %v1859 = vunpack.c.l.b16 %v1300
    %v1860 = vunpack.c.h.b16 %v1300
    %v1861 = vunpack.c.l.b16 %v1301
    %v1862 = vunpack.c.h.b16 %v1301
    %v1863 = vunpack.c.l.b16 %v1302
    %v1864 = vunpack.c.h.b16 %v1302
    %v1865 = vunpack.c.l.b16 %v1303
    %v1866 = vunpack.c.h.b16 %v1303
    %v1867 = vunpack.c.l.b16 %v1304
    %v1868 = vunpack.c.h.b16 %v1304
    %v1869 = vunpack.c.l.b16 %v1305
    %v1870 = vunpack.c.h.b16 %v1305
    %v1871 = vunpack.c.l.b16 %v1306
    %v1872 = vunpack.c.h.b16 %v1306
    %v1873 = vunpack.c.l.b16 %v1307
    %v1874 = vunpack.c.h.b16 %v1307
    %v1875 = vunpack.c.l.b16 %v1308
    %v1876 = vunpack.c.h.b16 %v1308
    %v1877 = vunpack.c.l.b16 %v1309
    %v1878 = vunpack.c.h.b16 %v1309
    %v1879 = vunpack.c.l.b16 %v1310
    %v1880 = vunpack.c.h.b16 %v1310
    %v1881 = vunpack.c.l.b16 %v1311
    %v1882 = vunpack.c.h.b16 %v1311
    %v1883 = vunpack.c.l.b16 %v1312
    %v1884 = vunpack.c.h.b16 %v1312
    %v1885 = vunpack.c.l.b16 %v1313
    %v1886 = vunpack.c.h.b16 %v1313
    %v1887 = vunpack.c.l.b16 %v1314
    %v1888 = vunpack.c.h.b16 %v1314
    %v1889 = vunpack.c.l.b16 %v1315
    %v1890 = vunpack.c.h.b16 %v1315
    %v1891 = vunpack.c.l.b16 %v1316
    %v1892 = vunpack.c.h.b16 %v1316
    %v1893 = vunpack.c.l.b16 %v1317
    %v1894 = vunpack.c.h.b16 %v1317
    %v1895 = vunpack.c.l.b16 %v1318
    %v1896 = vunpack.c.h.b16 %v1318
    %v1897 = vunpack.c.l.b16 %v1319
    %v1898 = vunpack.c.h.b16 %v1319
    %v1899 = vunpack.c.l.b16 %v1320
    %v1900 = vunpack.c.h.b16 %v1320
    %v1901 = vunpack.c.l.b16 %v1321
    %v1902 = vunpack.c.h.b16 %v1321
    %v1903 = vunpack.c.l.b16 %v1322
    %v1904 = vunpack.c.h.b16 %v1322
    %v1905 = vunpack.c.l.b16 %v1323
    %v1906 = vunpack.c.h.b16 %v1323
    %v1907 = vunpack.c.l.b16 %v1324
    %v1908 = vunpack.c.h.b16 %v1324
    %v1909 = vunpack.c.l.b16 %v1325
    %v1910 = vunpack.c.h.b16 %v1325
    %v1911 = vunpack.c.l.b16 %v1326
    %v1912 = vunpack.c.h.b16 %v1326
    %v1913 = vunpack.c.l.b16 %v1327
    %v1914 = vunpack.c.h.b16 %v1327
    %v1915 = vunpack.c.l.b16 %v1328
    %v1916 = vunpack.c.h.b16 %v1328
    %v1917 = vunpack.c.l.b16 %v1329
    %v1918 = vunpack.c.h.b16 %v1329
    %v1919 = vunpack.c.l.b16 %v1330
    %v1920 = vunpack.c.h.b16 %v1330
    %v1921 = vunpack.c.l.b16 %v1331
    %v1922 = vunpack.c.h.b16 %v1331
    %v1923 = vunpack.c.l.b16 %v1332
    %v1924 = vunpack.c.h.b16 %v1332
    %v1925 = vunpack.c.l.b16 %v1333
    %v1926 = vunpack.c.h.b16 %v1333
    %v1927 = vunpack.c.l.b16 %v1334
    %v1928 = vunpack.c.h.b16 %v1334
    %v1929 = vunpack.c.l.b16 %v1335
    %v1930 = vunpack.c.h.b16 %v1335
    %v1931 = vunpack.c.l.b16 %v1336
    %v1932 = vunpack.c.h.b16 %v1336
    %v1933 = vunpack.c.l.b16 %v1337
    %v1934 = vunpack.c.h.b16 %v1337
    %v1935 = vunpack.c.l.b16 %v1338
    %v1936 = vunpack.c.h.b16 %v1338
    %v1937 = vunpack.c.l.b16 %v1339
    %v1938 = vunpack.c.h.b16 %v1339
    %v1939 = vunpack.c.l.b16 %v1340
    %v1940 = vunpack.c.h.b16 %v1340
    %v1941 = vunpack.c.l.b16 %v1341
    %v1942 = vunpack.c.h.b16 %v1341
    %v1943 = vunpack.c.l.b16 %v1342
    %v1944 = vunpack.c.h.b16 %v1342
    %v1945 = vunpack.c.l.b16 %v1343
    %v1946 = vunpack.c.h.b16 %v1343
    %v1947 = vunpack.c.l.b16 %v1344
    %v1948 = vunpack.c.h.b16 %v1344
    %v1949 = vunpack.c.l.b16 %v1345
    %v1950 = vunpack.c.h.b16 %v1345
    %v1951 = vunpack.c.l.b16 %v1346
    %v1952 = vunpack.c.h.b16 %v1346
    %v1953 = vunpack.c.l.b16 %v1347
    %v1954 = vunpack.c.h.b16 %v1347
    %v1955 = vunpack.c.l.b16 %v1348
    %v1956 = vunpack.c.h.b16 %v1348
    %v1957 = vunpack.c.l.b16 %v1349
    %v1958 = vunpack.c.h.b16 %v1349
    %v1959 = vunpack.c.l.b16 %v1350
    %v1960 = vunpack.c.h.b16 %v1350
    %v1961 = vunpack.c.l.b16 %v1351
    %v1962 = vunpack.c.h.b16 %v1351
    %v1963 = vunpack.c.l.b16 %v1352
    %v1964 = vunpack.c.h.b16 %v1352
    %v1965 = vunpack.c.l.b16 %v1353
    %v1966 = vunpack.c.h.b16 %v1353
    %v1967 = vunpack.c.l.b16 %v1354
    %v1968 = vunpack.c.h.b16 %v1354
    %v1969 = vunpack.c.l.b16 %v1355
    %v1970 = vunpack.c.h.b16 %v1355
    %v1971 = vunpack.c.l.b16 %v1356
    %v1972 = vunpack.c.h.b16 %v1356
    %v1973 = vunpack.c.l.b16 %v1357
    %v1974 = vunpack.c.h.b16 %v1357
    %v1975 = vunpack.c.l.b16 %v1358
    %v1976 = vunpack.c.h.b16 %v1358
    %v1977 = vunpack.c.l.b16 %v1359
    %v1978 = vunpack.c.h.b16 %v1359
    %v1979 = vunpack.c.l.b16 %v1360
    %v1980 = vunpack.c.h.b16 %v1360
    %v1981 = vunpack.c.l.b16 %v1361
    %v1982 = vunpack.c.h.b16 %v1361
    %v1983 = vunpack.c.l.b16 %v1362
    %v1984 = vunpack.c.h.b16 %v1362
    %v1985 = vunpack.c.l.b16 %v1363
    %v1986 = vunpack.c.h.b16 %v1363
    %v1987 = vunpack.c.l.b16 %v1364
    %v1988 = vunpack.c.h.b16 %v1364
    %v1989 = vunpack.c.l.b16 %v1365
    %v1990 = vunpack.c.h.b16 %v1365
    %v1991 = vunpack.c.l.b16 %v1366
    %v1992 = vunpack.c.h.b16 %v1366
    %v1993 = vunpack.c.l.b16 %v1367
    %v1994 = vunpack.c.h.b16 %v1367
    %v1995 = vunpack.c.l.b16 %v1368
    %v1996 = vunpack.c.h.b16 %v1368
    %v1997 = vunpack.c.l.b16 %v1369
    %v1998 = vunpack.c.h.b16 %v1369
    %v1999 = vunpack.c.l.b16 %v1370
    %v2000 = vunpack.c.h.b16 %v1370
    %v2001 = vunpack.c.l.b16 %v1371
    %v2002 = vunpack.c.h.b16 %v1371
    %v2003 = vunpack.c.l.b16 %v1372
    %v2004 = vunpack.c.h.b16 %v1372
    %v2005 = vunpack.c.l.b16 %v1373
    %v2006 = vunpack.c.h.b16 %v1373
    %v2007 = vunpack.c.l.b16 %v1374
    %v2008 = vunpack.c.h.b16 %v1374
    %v2009 = vunpack.c.l.b16 %v1375
    %v2010 = vunpack.c.h.b16 %v1375
    %v2011 = vunpack.c.l.b16 %v1376
    %v2012 = vunpack.c.h.b16 %v1376
    %v2013 = vunpack.c.l.b16 %v1377
    %v2014 = vunpack.c.h.b16 %v1377
    %v2015 = vunpack.c.l.b16 %v1378
    %v2016 = vunpack.c.h.b16 %v1378
    %v2017 = vunpack.c.l.b16 %v1379
    %v2018 = vunpack.c.h.b16 %v1379
    %v2019 = vunpack.c.l.b16 %v1380
    %v2020 = vunpack.c.h.b16 %v1380
    %v2021 = vunpack.c.l.b16 %v1381
    %v2022 = vunpack.c.h.b16 %v1381
    %v2023 = vunpack.c.l.b16 %v1382
    %v2024 = vunpack.c.h.b16 %v1382
    %v2025 = vunpack.c.l.b16 %v1383
    %v2026 = vunpack.c.h.b16 %v1383
    %v2027 = vunpack.c.l.b16 %v1384
    %v2028 = vunpack.c.h.b16 %v1384
    %v2029 = vunpack.c.l.b16 %v1385
    %v2030 = vunpack.c.h.b16 %v1385
    %v2031 = vunpack.c.l.b16 %v1386
    %v2032 = vunpack.c.h.b16 %v1386
    %v2033 = vunpack.c.l.b16 %v1387
    %v2034 = vunpack.c.h.b16 %v1387
    %v2035 = vunpack.c.l.b16 %v1388
    %v2036 = vunpack.c.h.b16 %v1388
    %v2037 = vunpack.c.l.b16 %v1389
    %v2038 = vunpack.c.h.b16 %v1389
    %v2039 = vunpack.c.l.b16 %v1390
    %v2040 = vunpack.c.h.b16 %v1390
    %v2041 = vunpack.c.l.b16 %v1391
    %v2042 = vunpack.c.h.b16 %v1391
    %v2043 = vunpack.c.l.b16 %v1392
    %v2044 = vunpack.c.h.b16 %v1392
    %v2045 = vunpack.c.l.b16 %v1393
    %v2046 = vunpack.c.h.b16 %v1393
    %v2047 = vunpack.c.l.b16 %v1394
    %v2048 = vunpack.c.h.b16 %v1394
    %v2049 = vunpack.c.l.b16 %v1395
    %v2050 = vunpack.c.h.b16 %v1395
    %v2051 = vunpack.c.l.b16 %v1396
    %v2052 = vunpack.c.h.b16 %v1396
    %v2053 = vunpack.c.l.b16 %v1397
    %v2054 = vunpack.c.h.b16 %v1397
    %v2055 = vunpack.c.l.b16 %v1398
    %v2056 = vunpack.c.h.b16 %v1398
    %v2057 = vunpack.c.l.b16 %v1399
    %v2058 = vunpack.c.h.b16 %v1399
    %v2059 = vunpack.c.l.b16 %v1400
    %v2060 = vunpack.c.h.b16 %v1400
    %v2061 = vunpack.c.l.b16 %v1401
    %v2062 = vunpack.c.h.b16 %v1401
    %v2063 = vunpack.c.l.b16 %v1402
    %v2064 = vunpack.c.h.b16 %v1402
    %v2065 = vunpack.c.l.b16 %v1403
    %v2066 = vunpack.c.h.b16 %v1403
    %v2067 = vunpack.c.l.b16 %v1404
    %v2068 = vunpack.c.h.b16 %v1404
    %v2069 = vunpack.c.l.b16 %v1405
    %v2070 = vunpack.c.h.b16 %v1405
    %v2071 = vunpack.c.l.b16 %v1406
    %v2072 = vunpack.c.h.b16 %v1406
    %v2073 = vunpack.c.l.b16 %v1407
    %v2074 = vunpack.c.h.b16 %v1407
    %v2075 = vunpack.c.l.b16 %v1408
    %v2076 = vunpack.c.h.b16 %v1408
    %v2077 = vunpack.c.l.b16 %v1409
    %v2078 = vunpack.c.h.b16 %v1409
    %v2079 = vunpack.c.l.b16 %v1410
    %v2080 = vunpack.c.h.b16 %v1410
    %v2081 = vunpack.c.l.b16 %v1411
    %v2082 = vunpack.c.h.b16 %v1411
    %v2083 = vunpack.c.l.b16 %v1412
    %v2084 = vunpack.c.h.b16 %v1412
    %v2085 = vunpack.c.l.b16 %v1413
    %v2086 = vunpack.c.h.b16 %v1413
    %v2087 = vunpack.c.l.b16 %v1414
    %v2088 = vunpack.c.h.b16 %v1414
    %v2089 = vunpack.c.l.b16 %v1415
    %v2090 = vunpack.c.h.b16 %v1415
    %v2091 = vunpack.c.l.b16 %v1416
    %v2092 = vunpack.c.h.b16 %v1416
    %v2093 = vunpack.c.l.b16 %v1417
    %v2094 = vunpack.c.h.b16 %v1417
    %v2095 = vunpack.c.l.b16 %v1418
    %v2096 = vunpack.c.h.b16 %v1418
    %v2097 = vunpack.c.l.b16 %v1419
    %v2098 = vunpack.c.h.b16 %v1419
    %v2099 = vunpack.c.l.b16 %v1420
    %v2100 = vunpack.c.h.b16 %v1420
    %v2101 = vunpack.c.l.b16 %v1421
    %v2102 = vunpack.c.h.b16 %v1421
    %v2103 = vunpack.c.l.b16 %v1422
    %v2104 = vunpack.c.h.b16 %v1422
    %v2105 = vunpack.c.l.b16 %v1423
    %v2106 = vunpack.c.h.b16 %v1423
    %v2107 = vunpack.c.l.b16 %v1424
    %v2108 = vunpack.c.h.b16 %v1424
    %v2109 = vunpack.c.l.b16 %v1425
    %v2110 = vunpack.c.h.b16 %v1425
    %v2111 = vunpack.c.l.b16 %v1426
    %v2112 = vunpack.c.h.b16 %v1426
    %v2113 = vunpack.c.l.b16 %v1427
    %v2114 = vunpack.c.h.b16 %v1427
    %v2115 = vunpack.c.l.b16 %v1428
    %v2116 = vunpack.c.h.b16 %v1428
    %v2117 = vunpack.c.l.b16 %v1429
    %v2118 = vunpack.c.h.b16 %v1429
    %v2119 = vunpack.c.l.b16 %v1430
    %v2120 = vunpack.c.h.b16 %v1430
    %v2121 = vunpack.c.l.b16 %v1431
    %v2122 = vunpack.c.h.b16 %v1431
    %v2123 = vunpack.c.l.b16 %v1432
    %v2124 = vunpack.c.h.b16 %v1432
    %v2125 = vunpack.c.l.b16 %v1433
    %v2126 = vunpack.c.h.b16 %v1433
    %v2127 = vunpack.c.l.b16 %v1434
    %v2128 = vunpack.c.h.b16 %v1434
    %v2129 = vunpack.c.l.b16 %v1435
    %v2130 = vunpack.c.h.b16 %v1435
    %v2131 = vunpack.c.l.b16 %v1436
    %v2132 = vunpack.c.h.b16 %v1436
    %v2133 = vunpack.c.l.b16 %v1437
    %v2134 = vunpack.c.h.b16 %v1437
    %v2135 = vunpack.c.l.b16 %v1438
    %v2136 = vunpack.c.h.b16 %v1438
    %v2137 = vunpack.c.l.b16 %v1439
    %v2138 = vunpack.c.h.b16 %v1439
    %v2139 = vunpack.c.l.b16 %v1440
    %v2140 = vunpack.c.h.b16 %v1440
    %v2141 = vunpack.c.l.b16 %v1441
    %v2142 = vunpack.c.h.b16 %v1441
    %v2143 = vunpack.c.l.b16 %v1442
    %v2144 = vunpack.c.h.b16 %v1442
    %v2145 = vunpack.c.l.b16 %v1443
    %v2146 = vunpack.c.h.b16 %v1443
    %v2147 = vunpack.c.l.b16 %v1444
    %v2148 = vunpack.c.h.b16 %v1444
    %v2149 = vunpack.c.l.b16 %v1445
    %v2150 = vunpack.c.h.b16 %v1445
    %v2151 = vunpack.c.l.b16 %v1446
    %v2152 = vunpack.c.h.b16 %v1446
    %v2153 = vunpack.c.l.b16 %v1447
    %v2154 = vunpack.c.h.b16 %v1447
    %v2155 = vunpack.c.l.b16 %v1448
    %v2156 = vunpack.c.h.b16 %v1448
    %v2157 = vunpack.c.l.b16 %v1449
    %v2158 = vunpack.c.h.b16 %v1449
    %v2159 = vunpack.c.l.b16 %v1450
    %v2160 = vunpack.c.h.b16 %v1450
    %v2161 = vunpack.c.l.b16 %v1451
    %v2162 = vunpack.c.h.b16 %v1451
    %v2163 = vunpack.c.l.b16 %v1452
    %v2164 = vunpack.c.h.b16 %v1452
    %v2165 = vunpack.c.l.b16 %v1453
    %v2166 = vunpack.c.h.b16 %v1453
    %v2167 = vunpack.c.l.b16 %v1454
    %v2168 = vunpack.c.h.b16 %v1454
    %v2169 = vunpack.c.l.b16 %v1455
    %v2170 = vunpack.c.h.b16 %v1455
    %v2171 = vunpack.c.l.b16 %v1456
    %v2172 = vunpack.c.h.b16 %v1456
    %v2173 = vunpack.c.l.b16 %v1457
    %v2174 = vunpack.c.h.b16 %v1457
    %v2175 = vunpack.c.l.b16 %v1458
    %v2176 = vunpack.c.h.b16 %v1458
    %v2177 = vunpack.c.l.b16 %v1459
    %v2178 = vunpack.c.h.b16 %v1459
    %v2179 = vunpack.c.l.b16 %v1460
    %v2180 = vunpack.c.h.b16 %v1460
    %v2181 = vunpack.c.l.b16 %v1461
    %v2182 = vunpack.c.h.b16 %v1461
    %v2183 = vunpack.c.l.b16 %v1462
    %v2184 = vunpack.c.h.b16 %v1462
    %v2185 = vunpack.c.l.b16 %v1463
    %v2186 = vunpack.c.h.b16 %v1463
    %v2187 = vunpack.c.l.b16 %v1464
    %v2188 = vunpack.c.h.b16 %v1464
    %v2189 = vunpack.c.l.b16 %v1465
    %v2190 = vunpack.c.h.b16 %v1465
    %v2191 = vunpack.c.l.b16 %v1466
    %v2192 = vunpack.c.h.b16 %v1466
    %v2193 = vunpack.c.l.b16 %v1467
    %v2194 = vunpack.c.h.b16 %v1467
    %v2195 = vunpack.c.l.b16 %v1468
    %v2196 = vunpack.c.h.b16 %v1468
    %v2197 = vunpack.c.l.b16 %v1469
    %v2198 = vunpack.c.h.b16 %v1469
    %v2199 = vunpack.c.l.b16 %v1470
    %v2200 = vunpack.c.h.b16 %v1470
    %v2201 = vunpack.c.l.b16 %v1471
    %v2202 = vunpack.c.h.b16 %v1471
    %v2203 = vunpack.c.l.b16 %v1472
    %v2204 = vunpack.c.h.b16 %v1472
    %v2205 = vunpack.c.l.b16 %v1473
    %v2206 = vunpack.c.h.b16 %v1473
    %v2207 = vunpack.c.l.b16 %v1474
    %v2208 = vunpack.c.h.b16 %v1474
    %v2209 = vunpack.c.l.b16 %v1475
    %v2210 = vunpack.c.h.b16 %v1475
    %v2211 = vunpack.c.l.b16 %v1476
    %v2212 = vunpack.c.h.b16 %v1476
    %v2213 = vunpack.c.l.b16 %v1477
    %v2214 = vunpack.c.h.b16 %v1477
    %v2215 = vunpack.c.l.b16 %v1478
    %v2216 = vunpack.c.h.b16 %v1478
    %v2217 = vunpack.c.l.b16 %v1479
    %v2218 = vunpack.c.h.b16 %v1479
    %v2219 = vunpack.c.l.b16 %v1480
    %v2220 = vunpack.c.h.b16 %v1480
    %v2221 = vunpack.c.l.b16 %v1481
    %v2222 = vunpack.c.h.b16 %v1481
    %v2223 = vunpack.c.l.b16 %v1482
    %v2224 = vunpack.c.h.b16 %v1482
    %v2225 = vunpack.c.l.b16 %v1483
    %v2226 = vunpack.c.h.b16 %v1483
    %v2227 = vunpack.c.l.b16 %v1484
    %v2228 = vunpack.c.h.b16 %v1484
    %v2229 = vunpack.c.l.b16 %v1485
    %v2230 = vunpack.c.h.b16 %v1485
    %v2231 = vunpack.c.l.b16 %v1486
    %v2232 = vunpack.c.h.b16 %v1486
    %v2233 = vunpack.c.l.b16 %v1487
    %v2234 = vunpack.c.h.b16 %v1487
    %v2235 = vunpack.c.l.b16 %v1488
    %v2236 = vunpack.c.h.b16 %v1488
    %v2237 = vunpack.c.l.b16 %v1489
    %v2238 = vunpack.c.h.b16 %v1489
    %v2239 = vunpack.c.l.b16 %v1490
    %v2240 = vunpack.c.h.b16 %v1490
    %v2241 = vunpack.c.l.b16 %v1491
    %v2242 = vunpack.c.h.b16 %v1491
    %v2243 = vunpack.c.l.b16 %v1492
    %v2244 = vunpack.c.h.b16 %v1492
    %v2245 = vunpack.c.l.b16 %v1493
    %v2246 = vunpack.c.h.b16 %v1493
    %v2247 = vunpack.c.l.b16 %v1494
    %v2248 = vunpack.c.h.b16 %v1494
    %v2249 = vunpack.c.l.b16 %v1495
    %v2250 = vunpack.c.h.b16 %v1495
    %v2251 = vunpack.c.l.b16 %v1496
    %v2252 = vunpack.c.h.b16 %v1496
    %v2253 = vunpack.c.l.b16 %v1497
    %v2254 = vunpack.c.h.b16 %v1497
    %v2255 = vunpack.c.l.b16 %v1498
    %v2256 = vunpack.c.h.b16 %v1498
    %v2257 = vunpack.c.l.b16 %v1499
    %v2258 = vunpack.c.h.b16 %v1499
    %v2259 = vunpack.c.l.b16 %v1500
    %v2260 = vunpack.c.h.b16 %v1500
    %v2261 = vunpack.c.l.b16 %v1501
    %v2262 = vunpack.c.h.b16 %v1501
    %v2263 = vunpack.c.l.b16 %v1502
    %v2264 = vunpack.c.h.b16 %v1502
    %v2265 = vunpack.c.l.b16 %v1503
    %v2266 = vunpack.c.h.b16 %v1503
    %v2267 = vunpack.c.l.b16 %v1504
    %v2268 = vunpack.c.h.b16 %v1504
    %v2269 = vunpack.c.l.b16 %v1505
    %v2270 = vunpack.c.h.b16 %v1505
    %v2271 = vunpack.c.l.b16 %v1506
    %v2272 = vunpack.c.h.b16 %v1506
    %v2273 = vunpack.c.l.b16 %v1507
    %v2274 = vunpack.c.h.b16 %v1507
    %v2275 = vunpack.c.l.b16 %v1508
    %v2276 = vunpack.c.h.b16 %v1508
    %v2277 = vunpack.c.l.b16 %v1509
    %v2278 = vunpack.c.h.b16 %v1509
    %v2279 = vunpack.c.l.b16 %v1510
    %v2280 = vunpack.c.h.b16 %v1510
    %v2281 = vunpack.c.l.b16 %v1511
    %v2282 = vunpack.c.h.b16 %v1511
    %v2283 = vunpack.c.l.b16 %v1512
    %v2284 = vunpack.c.h.b16 %v1512
    %v2285 = vunpack.c.l.b16 %v1513
    %v2286 = vunpack.c.h.b16 %v1513
    %v2287 = vunpack.c.l.b16 %v1514
    %v2288 = vunpack.c.h.b16 %v1514
    %v2289 = vunpack.c.l.b16 %v1515
    %v2290 = vunpack.c.h.b16 %v1515
    %v2291 = vunpack.c.l.b16 %v1516
    %v2292 = vunpack.c.h.b16 %v1516
    %v2293 = vunpack.c.l.b16 %v1517
    %v2294 = vunpack.c.h.b16 %v1517
    %v2295 = vunpack.c.l.b16 %v1518
    %v2296 = vunpack.c.h.b16 %v1518
    %v2297 = vunpack.c.l.b16 %v1519
    %v2298 = vunpack.c.h.b16 %v1519
    %v2299 = vunpack.c.l.b16 %v1520
    %v2300 = vunpack.c.h.b16 %v1520
    %v2301 = vunpack.c.l.b16 %v1521
    %v2302 = vunpack.c.h.b16 %v1521
    %v2303 = vunpack.c.l.b16 %v1522
    %v2304 = vunpack.c.h.b16 %v1522
    %v2305 = vunpack.c.l.b16 %v1523
    %v2306 = vunpack.c.h.b16 %v1523
    %v2307 = vunpack.c.l.b16 %v1524
    %v2308 = vunpack.c.h.b16 %v1524
    %v2309 = vunpack.c.l.b16 %v1525
    %v2310 = vunpack.c.h.b16 %v1525
    %v2311 = vunpack.c.l.b16 %v1526
    %v2312 = vunpack.c.h.b16 %v1526
    %v2313 = vpack.c.b16 %v1809, %v1801
    %v2314 = vpack.c.b16 %v1810, %v1802
    %v2315 = vpack.c.b16 %v1811, %v1803
    %v2316 = vpack.c.b16 %v1812, %v1804
    %v2317 = vpack.c.b16 %v1813, %v1805
    %v2318 = vpack.c.b16 %v1814, %v1806
    %v2319 = vpack.c.b16 %v1815, %v1807
    %v2320 = vpack.c.b16 %v1816, %v1808
    %v2321 = vpack.c.b16 %v1825, %v1817
    %v2322 = vpack.c.b16 %v1826, %v1818
    %v2323 = vpack.c.b16 %v1827, %v1819
    %v2324 = vpack.c.b16 %v1828, %v1820
    %v2325 = vpack.c.b16 %v1829, %v1821
    %v2326 = vpack.c.b16 %v1830, %v1822
    %v2327 = vpack.c.b16 %v1831, %v1823
    %v2328 = vpack.c.b16 %v1832, %v1824
    %v2329 = vpack.c.b16 %v1841, %v1833
    %v2330 = vpack.c.b16 %v1842, %v1834
    %v2331 = vpack.c.b16 %v1843, %v1835
    %v2332 = vpack.c.b16 %v1844, %v1836
    %v2333 = vpack.c.b16 %v1845, %v1837
    %v2334 = vpack.c.b16 %v1846, %v1838
    %v2335 = vpack.c.b16 %v1847, %v1839
    %v2336 = vpack.c.b16 %v1848, %v1840
    %v2337 = vpack.c.b16 %v1857, %v1849
    %v2338 = vpack.c.b16 %v1858, %v1850
    %v2339 = vpack.c.b16 %v1859, %v1851
    %v2340 = vpack.c.b16 %v1860, %v1852
    %v2341 = vpack.c.b16 %v1861, %v1853
    %v2342 = vpack.c.b16 %v1862, %v1854
    %v2343 = vpack.c.b16 %v1863, %v1855
    %v2344 = vpack.c.b16 %v1864, %v1856
    %v2345 = vpack.c.b16 %v1873, %v1865
    %v2346 = vpack.c.b16 %v1874, %v1866
    %v2347 = vpack.c.b16 %v1875, %v1867
    %v2348 = vpack.c.b16 %v1876, %v1868
    %v2349 = vpack.c.b16 %v1877, %v1869
    %v2350 = vpack.c.b16 %v1878, %v1870
    %v2351 = vpack.c.b16 %v1879, %v1871
    %v2352 = vpack.c.b16 %v1880, %v1872
    %v2353 = vpack.c.b16 %v1889, %v1881
    %v2354 = vpack.c.b16 %v1890, %v1882
    %v2355 = vpack.c.b16 %v1891, %v1883
    %v2356 = vpack.c.b16 %v1892, %v1884
    %v2357 = vpack.c.b16 %v1893, %v1885
    %v2358 = vpack.c.b16 %v1894, %v1886
    %v2359 = vpack.c.b16 %v1895, %v1887
    %v2360 = vpack.c.b16 %v1896, %v1888
    %v2361 = vpack.c.b16 %v1905, %v1897
    %v2362 = vpack.c.b16 %v1906, %v1898
    %v2363 = vpack.c.b16 %v1907, %v1899
    %v2364 = vpack.c.b16 %v1908, %v1900
    %v2365 = vpack.c.b16 %v1909, %v1901
    %v2366 = vpack.c.b16 %v1910, %v1902
    %v2367 = vpack.c.b16 %v1911, %v1903
    %v2368 = vpack.c.b16 %v1912, %v1904
    %v2369 = vpack.c.b16 %v1921, %v1913
    %v2370 = vpack.c.b16 %v1922, %v1914
    %v2371 = vpack.c.b16 %v1923, %v1915
    %v2372 = vpack.c.b16 %v1924, %v1916
    %v2373 = vpack.c.b16 %v1925, %v1917
    %v2374 = vpack.c.b16 %v1926, %v1918
    %v2375 = vpack.c.b16 %v1927, %v1919
    %v2376 = vpack.c.b16 %v1928, %v1920
    %v2377 = vpack.c.b16 %v1937, %v1929
    %v2378 = vpack.c.b16 %v1938, %v1930
    %v2379 = vpack.c.b16 %v1939, %v1931
    %v2380 = vpack.c.b16 %v1940, %v1932
    %v2381 = vpack.c.b16 %v1941, %v1933
    %v2382 = vpack.c.b16 %v1942, %v1934
    %v2383 = vpack.c.b16 %v1943, %v1935
    %v2384 = vpack.c.b16 %v1944, %v1936
    %v2385 = vpack.c.b16 %v1953, %v1945
    %v2386 = vpack.c.b16 %v1954, %v1946
    %v2387 = vpack.c.b16 %v1955, %v1947
    %v2388 = vpack.c.b16 %v1956, %v1948
    %v2389 = vpack.c.b16 %v1957, %v1949
    %v2390 = vpack.c.b16 %v1958, %v1950
    %v2391 = vpack.c.b16 %v1959, %v1951
    %v2392 = vpack.c.b16 %v1960, %v1952
    %v2393 = vpack.c.b16 %v1969, %v1961
    %v2394 = vpack.c.b16 %v1970, %v1962
    %v2395 = vpack.c.b16 %v1971, %v1963
    %v2396 = vpack.c.b16 %v1972, %v1964
    %v2397 = vpack.c.b16 %v1973, %v1965
    %v2398 = vpack.c.b16 %v1974, %v1966
    %v2399 = vpack.c.b16 %v1975, %v1967
    %v2400 = vpack.c.b16 %v1976, %v1968
    %v2401 = vpack.c.b16 %v1985, %v1977
    %v2402 = vpack.c.b16 %v1986, %v1978
    %v2403 = vpack.c.b16 %v1987, %v1979
    %v2404 = vpack.c.b16 %v1988, %v1980
    %v2405 = vpack.c.b16 %v1989, %v1981
    %v2406 = vpack.c.b16 %v1990, %v1982
    %v2407 = vpack.c.b16 %v1991, %v1983
    %v2408 = vpack.c.b16 %v1992, %v1984
    %v2409 = vpack.c.b16 %v2001, %v1993
    %v2410 = vpack.c.b16 %v2002, %v1994
    %v2411 = vpack.c.b16 %v2003, %v1995
    %v2412 = vpack.c.b16 %v2004, %v1996
    %v2413 = vpack.c.b16 %v2005, %v1997
    %v2414 = vpack.c.b16 %v2006, %v1998
    %v2415 = vpack.c.b16 %v2007, %v1999
    %v2416 = vpack.c.b16 %v2008, %v2000
    %v2417 = vpack.c.b16 %v2017, %v2009
    %v2418 = vpack.c.b16 %v2018, %v2010
    %v2419 = vpack.c.b16 %v2019, %v2011
    %v2420 = vpack.c.b16 %v2020, %v2012
    %v2421 = vpack.c.b16 %v2021, %v2013
    %v2422 = vpack.c.b16 %v2022, %v2014
    %v2423 = vpack.c.b16 %v2023, %v2015
    %v2424 = vpack.c.b16 %v2024, %v2016
    %v2425 = vpack.c.b16 %v2033, %v2025
    %v2426 = vpack.c.b16 %v2034, %v2026
    %v2427 = vpack.c.b16 %v2035, %v2027
    %v2428 = vpack.c.b16 %v2036, %v2028
    %v2429 = vpack.c.b16 %v2037, %v2029
    %v2430 = vpack.c.b16 %v2038, %v2030
    %v2431 = vpack.c.b16 %v2039, %v2031
    %v2432 = vpack.c.b16 %v2040, %v2032
    %v2433 = vpack.c.b16 %v2049, %v2041
    %v2434 = vpack.c.b16 %v2050, %v2042
    %v2435 = vpack.c.b16 %v2051, %v2043
    %v2436 = vpack.c.b16 %v2052, %v2044
    %v2437 = vpack.c.b16 %v2053, %v2045
    %v2438 = vpack.c.b16 %v2054, %v2046
    %v2439 = vpack.c.b16 %v2055, %v2047
    %v2440 = vpack.c.b16 %v2056, %v2048
    %v2441 = vpack.c.b16 %v2065, %v2057
    %v2442 = vpack.c.b16 %v2066, %v2058
    %v2443 = vpack.c.b16 %v2067, %v2059
    %v2444 = vpack.c.b16 %v2068, %v2060
    %v2445 = vpack.c.b16 %v2069, %v2061
    %v2446 = vpack.c.b16 %v2070, %v2062
    %v2447 = vpack.c.b16 %v2071, %v2063
    %v2448 = vpack.c.b16 %v2072, %v2064
    %v2449 = vpack.c.b16 %v2081, %v2073
    %v2450 = vpack.c.b16 %v2082, %v2074
    %v2451 = vpack.c.b16 %v2083, %v2075
    %v2452 = vpack.c.b16 %v2084, %v2076
    %v2453 = vpack.c.b16 %v2085, %v2077
    %v2454 = vpack.c.b16 %v2086, %v2078
    %v2455 = vpack.c.b16 %v2087, %v2079
    %v2456 = vpack.c.b16 %v2088, %v2080
    %v2457 = vpack.c.b16 %v2097, %v2089
    %v2458 = vpack.c.b16 %v2098, %v2090
    %v2459 = vpack.c.b16 %v2099, %v2091
    %v2460 = vpack.c.b16 %v2100, %v2092
    %v2461 = vpack.c.b16 %v2101, %v2093
    %v2462 = vpack.c.b16 %v2102, %v2094
    %v2463 = vpack.c.b16 %v2103, %v2095
    %v2464 = vpack.c.b16 %v2104, %v2096
    %v2465 = vpack.c.b16 %v2113, %v2105
    %v2466 = vpack.c.b16 %v2114, %v2106
    %v2467 = vpack.c.b16 %v2115, %v2107
    %v2468 = vpack.c.b16 %v2116, %v2108
    %v2469 = vpack.c.b16 %v2117, %v2109
    %v2470 = vpack.c.b16 %v2118, %v2110
    %v2471 = vpack.c.b16 %v2119, %v2111
    %v2472 = vpack.c.b16 %v2120, %v2112
    %v2473 = vpack.c.b16 %v2129, %v2121
    %v2474 = vpack.c.b16 %v2130, %v2122
    %v2475 = vpack.c.b16 %v2131, %v2123
    %v2476 = vpack.c.b16 %v2132, %v2124
    %v2477 = vpack.c.b16 %v2133, %v2125
    %v2478 = vpack.c.b16 %v2134, %v2126
    %v2479 = vpack.c.b16 %v2135, %v2127
    %v2480 = vpack.c.b16 %v2136, %v2128
    %v2481 = vpack.c.b16 %v2145, %v2137
    %v2482 = vpack.c.b16 %v2146, %v2138
    %v2483 = vpack.c.b16 %v2147, %v2139
    %v2484 = vpack.c.b16 %v2148, %v2140
    %v2485 = vpack.c.b16 %v2149, %v2141
    %v2486 = vpack.c.b16 %v2150, %v2142
    %v2487 = vpack.c.b16 %v2151, %v2143
    %v2488 = vpack.c.b16 %v2152, %v2144
    %v2489 = vpack.c.b16 %v2161, %v2153
    %v2490 = vpack.c.b16 %v2162, %v2154
    %v2491 = vpack.c.b16 %v2163, %v2155
    %v2492 = vpack.c.b16 %v2164, %v2156
    %v2493 = vpack.c.b16 %v2165, %v2157
    %v2494 = vpack.c.b16 %v2166, %v2158
    %v2495 = vpack.c.b16 %v2167, %v2159
    %v2496 = vpack.c.b16 %v2168, %v2160
    %v2497 = vpack.c.b16 %v2177, %v2169
    %v2498 = vpack.c.b16 %v2178, %v2170
    %v2499 = vpack.c.b16 %v2179, %v2171
    %v2500 = vpack.c.b16 %v2180, %v2172
    %v2501 = vpack.c.b16 %v2181, %v2173
    %v2502 = vpack.c.b16 %v2182, %v2174
    %v2503 = vpack.c.b16 %v2183, %v2175
    %v2504 = vpack.c.b16 %v2184, %v2176
    %v2505 = vpack.c.b16 %v2193, %v2185
    %v2506 = vpack.c.b16 %v2194, %v2186
    %v2507 = vpack.c.b16 %v2195, %v2187
    %v2508 = vpack.c.b16 %v2196, %v2188
    %v2509 = vpack.c.b16 %v2197, %v2189
    %v2510 = vpack.c.b16 %v2198, %v2190
    %v2511 = vpack.c.b16 %v2199, %v2191
    %v2512 = vpack.c.b16 %v2200, %v2192
    %v2513 = vpack.c.b16 %v2209, %v2201
    %v2514 = vpack.c.b16 %v2210, %v2202
    %v2515 = vpack.c.b16 %v2211, %v2203
    %v2516 = vpack.c.b16 %v2212, %v2204
    %v2517 = vpack.c.b16 %v2213, %v2205
    %v2518 = vpack.c.b16 %v2214, %v2206
    %v2519 = vpack.c.b16 %v2215, %v2207
    %v2520 = vpack.c.b16 %v2216, %v2208
    %v2521 = vpack.c.b16 %v2225, %v2217
    %v2522 = vpack.c.b16 %v2226, %v2218
    %v2523 = vpack.c.b16 %v2227, %v2219
    %v2524 = vpack.c.b16 %v2228, %v2220
    %v2525 = vpack.c.b16 %v2229, %v2221
    %v2526 = vpack.c.b16 %v2230, %v2222
    %v2527 = vpack.c.b16 %v2231, %v2223
    %v2528 = vpack.c.b16 %v2232, %v2224
    %v2529 = vpack.c.b16 %v2241, %v2233
    %v2530 = vpack.c.b16 %v2242, %v2234
    %v2531 = vpack.c.b16 %v2243, %v2235
    %v2532 = vpack.c.b16 %v2244, %v2236
    %v2533 = vpack.c.b16 %v2245, %v2237
    %v2534 = vpack.c.b16 %v2246, %v2238
    %v2535 = vpack.c.b16 %v2247, %v2239
    %v2536 = vpack.c.b16 %v2248, %v2240
    %v2537 = vpack.c.b16 %v2257, %v2249
    %v2538 = vpack.c.b16 %v2258, %v2250
    %v2539 = vpack.c.b16 %v2259, %v2251
    %v2540 = vpack.c.b16 %v2260, %v2252
    %v2541 = vpack.c.b16 %v2261, %v2253
    %v2542 = vpack.c.b16 %v2262, %v2254
    %v2543 = vpack.c.b16 %v2263, %v2255
    %v2544 = vpack.c.b16 %v2264, %v2256
    %v2545 = vpack.c.b16 %v2273, %v2265
    %v2546 = vpack.c.b16 %v2274, %v2266
    %v2547 = vpack.c.b16 %v2275, %v2267
    %v2548 = vpack.c.b16 %v2276, %v2268
    %v2549 = vpack.c.b16 %v2277, %v2269
    %v2550 = vpack.c.b16 %v2278, %v2270
    %v2551 = vpack.c.b16 %v2279, %v2271
    %v2552 = vpack.c.b16 %v2280, %v2272
    %v2553 = vpack.c.b16 %v2289, %v2281
    %v2554 = vpack.c.b16 %v2290, %v2282
    %v2555 = vpack.c.b16 %v2291, %v2283
    %v2556 = vpack.c.b16 %v2292, %v2284
    %v2557 = vpack.c.b16 %v2293, %v2285
    %v2558 = vpack.c.b16 %v2294, %v2286
    %v2559 = vpack.c.b16 %v2295, %v2287
    %v2560 = vpack.c.b16 %v2296, %v2288
    %v2561 = vpack.c.b16 %v2305, %v2297
    %v2562 = vpack.c.b16 %v2306, %v2298
    %v2563 = vpack.c.b16 %v2307, %v2299
    %v2564 = vpack.c.b16 %v2308, %v2300
    %v2565 = vpack.c.b16 %v2309, %v2301
    %v2566 = vpack.c.b16 %v2310, %v2302
    %v2567 = vpack.c.b16 %v2311, %v2303
    %v2568 = vpack.c.b16 %v2312, %v2304
    %2825 = vmatpush.bf16.msra.mxu0 %v2369
    %2826 = vmatpush.bf16.msra.mxu0 %v2361
    %2827 = vmatpush.bf16.msra.mxu0 %v2353
    %2828 = vmatpush.bf16.msra.mxu0 %v2345
    %2829 = vmatpush.bf16.msra.mxu0 %v2337
    %2830 = vmatpush.bf16.msra.mxu0 %v2329
    %2831 = vmatpush.bf16.msra.mxu0 %v2321
    %2832 = vmatpush.bf16.msra.mxu0 %v2313
    %2833 = vmatmul.bf16.gmra.mxu0 %v1267
    %v2834 = vpop.f32.mrf.mxu0
    %v2835 = vadd.f32 %v1529, %v2834
    %v2836 = vpop.f32.mrf.mxu0
    %2837 = vdwg.mxu0
    %2838 = vmatpush.bf16.msra.mxu0 %v2433
    %2839 = vmatpush.bf16.msra.mxu0 %v2425
    %2840 = vmatpush.bf16.msra.mxu0 %v2417
    %2841 = vmatpush.bf16.msra.mxu0 %v2409
    %2842 = vmatpush.bf16.msra.mxu0 %v2401
    %2843 = vmatpush.bf16.msra.mxu0 %v2393
    %2844 = vmatpush.bf16.msra.mxu0 %v2385
    %2845 = vmatpush.bf16.msra.mxu0 %v2377
    %2846 = vmatmul.bf16.gmra.mxu0 %v1268
    %v2847 = vpop.f32.mrf.mxu0
    %v2848 = vadd.f32 %v2835, %v2847
    %v2849 = vpop.f32.mrf.mxu0
    %2850 = vdwg.mxu0
    %2851 = vmatpush.bf16.msra.mxu0 %v2497
    %2852 = vmatpush.bf16.msra.mxu0 %v2489
    %2853 = vmatpush.bf16.msra.mxu0 %v2481
    %2854 = vmatpush.bf16.msra.mxu0 %v2473
    %2855 = vmatpush.bf16.msra.mxu0 %v2465
    %2856 = vmatpush.bf16.msra.mxu0 %v2457
    %2857 = vmatpush.bf16.msra.mxu0 %v2449
    %2858 = vmatpush.bf16.msra.mxu0 %v2441
    %2859 = vmatmul.bf16.gmra.mxu0 %v1269
    %v2860 = vpop.f32.mrf.mxu0
    %v2861 = vadd.f32 %v2848, %v2860
    %v2862 = vpop.f32.mrf.mxu0
    %2863 = vdwg.mxu0
    %2864 = vmatpush.bf16.msra.mxu0 %v2561
    %2865 = vmatpush.bf16.msra.mxu0 %v2553
    %2866 = vmatpush.bf16.msra.mxu0 %v2545
    %2867 = vmatpush.bf16.msra.mxu0 %v2537
    %2868 = vmatpush.bf16.msra.mxu0 %v2529
    %2869 = vmatpush.bf16.msra.mxu0 %v2521
    %2870 = vmatpush.bf16.msra.mxu0 %v2513
    %2871 = vmatpush.bf16.msra.mxu0 %v2505
    %2872 = vmatmul.bf16.gmra.mxu0 %v1270
    %v2873 = vpop.f32.mrf.mxu0
    %v2874 = vadd.f32 %v2861, %v2873
    %v2875 = vpop.f32.mrf.mxu0
    %2876 = vdwg.mxu0
    %2877 = vmatpush.bf16.msra.mxu0 %v2370
    %2878 = vmatpush.bf16.msra.mxu0 %v2362
    %2879 = vmatpush.bf16.msra.mxu0 %v2354
    %2880 = vmatpush.bf16.msra.mxu0 %v2346
    %2881 = vmatpush.bf16.msra.mxu0 %v2338
    %2882 = vmatpush.bf16.msra.mxu0 %v2330
    %2883 = vmatpush.bf16.msra.mxu0 %v2322
    %2884 = vmatpush.bf16.msra.mxu0 %v2314
    %2885 = vmatmul.bf16.gmra.mxu0 %v1267
    %v2886 = vpop.f32.mrf.mxu0
    %v2887 = vadd.f32 %v1530, %v2886
    %v2888 = vpop.f32.mrf.mxu0
    %2889 = vdwg.mxu0
    %2890 = vmatpush.bf16.msra.mxu0 %v2434
    %2891 = vmatpush.bf16.msra.mxu0 %v2426
    %2892 = vmatpush.bf16.msra.mxu0 %v2418
    %2893 = vmatpush.bf16.msra.mxu0 %v2410
    %2894 = vmatpush.bf16.msra.mxu0 %v2402
    %2895 = vmatpush.bf16.msra.mxu0 %v2394
    %2896 = vmatpush.bf16.msra.mxu0 %v2386
    %2897 = vmatpush.bf16.msra.mxu0 %v2378
    %2898 = vmatmul.bf16.gmra.mxu0 %v1268
    %v2899 = vpop.f32.mrf.mxu0
    %v2900 = vadd.f32 %v2887, %v2899
    %v2901 = vpop.f32.mrf.mxu0
    %2902 = vdwg.mxu0
    %2903 = vmatpush.bf16.msra.mxu0 %v2498
    %2904 = vmatpush.bf16.msra.mxu0 %v2490
    %2905 = vmatpush.bf16.msra.mxu0 %v2482
    %2906 = vmatpush.bf16.msra.mxu0 %v2474
    %2907 = vmatpush.bf16.msra.mxu0 %v2466
    %2908 = vmatpush.bf16.msra.mxu0 %v2458
    %2909 = vmatpush.bf16.msra.mxu0 %v2450
    %2910 = vmatpush.bf16.msra.mxu0 %v2442
    %2911 = vmatmul.bf16.gmra.mxu0 %v1269
    %v2912 = vpop.f32.mrf.mxu0
    %v2913 = vadd.f32 %v2900, %v2912
    %v2914 = vpop.f32.mrf.mxu0
    %2915 = vdwg.mxu0
    %2916 = vmatpush.bf16.msra.mxu0 %v2562
    %2917 = vmatpush.bf16.msra.mxu0 %v2554
    %2918 = vmatpush.bf16.msra.mxu0 %v2546
    %2919 = vmatpush.bf16.msra.mxu0 %v2538
    %2920 = vmatpush.bf16.msra.mxu0 %v2530
    %2921 = vmatpush.bf16.msra.mxu0 %v2522
    %2922 = vmatpush.bf16.msra.mxu0 %v2514
    %2923 = vmatpush.bf16.msra.mxu0 %v2506
    %2924 = vmatmul.bf16.gmra.mxu0 %v1270
    %v2925 = vpop.f32.mrf.mxu0
    %v2926 = vadd.f32 %v2913, %v2925
    %v2927 = vpop.f32.mrf.mxu0
    %2928 = vdwg.mxu0
    %2929 = vmatpush.bf16.msra.mxu0 %v2371
    %2930 = vmatpush.bf16.msra.mxu0 %v2363
    %2931 = vmatpush.bf16.msra.mxu0 %v2355
    %2932 = vmatpush.bf16.msra.mxu0 %v2347
    %2933 = vmatpush.bf16.msra.mxu0 %v2339
    %2934 = vmatpush.bf16.msra.mxu0 %v2331
    %2935 = vmatpush.bf16.msra.mxu0 %v2323
    %2936 = vmatpush.bf16.msra.mxu0 %v2315
    %2937 = vmatmul.bf16.gmra.mxu0 %v1267
    %v2938 = vpop.f32.mrf.mxu0
    %v2939 = vadd.f32 %v1531, %v2938
    %v2940 = vpop.f32.mrf.mxu0
    %2941 = vdwg.mxu0
    %2942 = vmatpush.bf16.msra.mxu0 %v2435
    %2943 = vmatpush.bf16.msra.mxu0 %v2427
    %2944 = vmatpush.bf16.msra.mxu0 %v2419
    %2945 = vmatpush.bf16.msra.mxu0 %v2411
    %2946 = vmatpush.bf16.msra.mxu0 %v2403
    %2947 = vmatpush.bf16.msra.mxu0 %v2395
    %2948 = vmatpush.bf16.msra.mxu0 %v2387
    %2949 = vmatpush.bf16.msra.mxu0 %v2379
    %2950 = vmatmul.bf16.gmra.mxu0 %v1268
    %v2951 = vpop.f32.mrf.mxu0
    %v2952 = vadd.f32 %v2939, %v2951
    %v2953 = vpop.f32.mrf.mxu0
    %2954 = vdwg.mxu0
    %2955 = vmatpush.bf16.msra.mxu0 %v2499
    %2956 = vmatpush.bf16.msra.mxu0 %v2491
    %2957 = vmatpush.bf16.msra.mxu0 %v2483
    %2958 = vmatpush.bf16.msra.mxu0 %v2475
    %2959 = vmatpush.bf16.msra.mxu0 %v2467
    %2960 = vmatpush.bf16.msra.mxu0 %v2459
    %2961 = vmatpush.bf16.msra.mxu0 %v2451
    %2962 = vmatpush.bf16.msra.mxu0 %v2443
    %2963 = vmatmul.bf16.gmra.mxu0 %v1269
    %v2964 = vpop.f32.mrf.mxu0
    %v2965 = vadd.f32 %v2952, %v2964
    %v2966 = vpop.f32.mrf.mxu0
    %2967 = vdwg.mxu0
    %2968 = vmatpush.bf16.msra.mxu0 %v2563
    %2969 = vmatpush.bf16.msra.mxu0 %v2555
    %2970 = vmatpush.bf16.msra.mxu0 %v2547
    %2971 = vmatpush.bf16.msra.mxu0 %v2539
    %2972 = vmatpush.bf16.msra.mxu0 %v2531
    %2973 = vmatpush.bf16.msra.mxu0 %v2523
    %2974 = vmatpush.bf16.msra.mxu0 %v2515
    %2975 = vmatpush.bf16.msra.mxu0 %v2507
    %2976 = vmatmul.bf16.gmra.mxu0 %v1270
    %v2977 = vpop.f32.mrf.mxu0
    %v2978 = vadd.f32 %v2965, %v2977
    %v2979 = vpop.f32.mrf.mxu0
    %2980 = vdwg.mxu0
    %2981 = vmatpush.bf16.msra.mxu0 %v2372
    %2982 = vmatpush.bf16.msra.mxu0 %v2364
    %2983 = vmatpush.bf16.msra.mxu0 %v2356
    %2984 = vmatpush.bf16.msra.mxu0 %v2348
    %2985 = vmatpush.bf16.msra.mxu0 %v2340
    %2986 = vmatpush.bf16.msra.mxu0 %v2332
    %2987 = vmatpush.bf16.msra.mxu0 %v2324
    %2988 = vmatpush.bf16.msra.mxu0 %v2316
    %2989 = vmatmul.bf16.gmra.mxu0 %v1267
    %v2990 = vpop.f32.mrf.mxu0
    %v2991 = vadd.f32 %v1532, %v2990
    %v2992 = vpop.f32.mrf.mxu0
    %2993 = vdwg.mxu0
    %2994 = vmatpush.bf16.msra.mxu0 %v2436
    %2995 = vmatpush.bf16.msra.mxu0 %v2428
    %2996 = vmatpush.bf16.msra.mxu0 %v2420
    %2997 = vmatpush.bf16.msra.mxu0 %v2412
    %2998 = vmatpush.bf16.msra.mxu0 %v2404
    %2999 = vmatpush.bf16.msra.mxu0 %v2396
    %3000 = vmatpush.bf16.msra.mxu0 %v2388
    %3001 = vmatpush.bf16.msra.mxu0 %v2380
    %3002 = vmatmul.bf16.gmra.mxu0 %v1268
    %v3003 = vpop.f32.mrf.mxu0
    %v3004 = vadd.f32 %v2991, %v3003
    %v3005 = vpop.f32.mrf.mxu0
    %3006 = vdwg.mxu0
    %3007 = vmatpush.bf16.msra.mxu0 %v2500
    %3008 = vmatpush.bf16.msra.mxu0 %v2492
    %3009 = vmatpush.bf16.msra.mxu0 %v2484
    %3010 = vmatpush.bf16.msra.mxu0 %v2476
    %3011 = vmatpush.bf16.msra.mxu0 %v2468
    %3012 = vmatpush.bf16.msra.mxu0 %v2460
    %3013 = vmatpush.bf16.msra.mxu0 %v2452
    %3014 = vmatpush.bf16.msra.mxu0 %v2444
    %3015 = vmatmul.bf16.gmra.mxu0 %v1269
    %v3016 = vpop.f32.mrf.mxu0
    %v3017 = vadd.f32 %v3004, %v3016
    %v3018 = vpop.f32.mrf.mxu0
    %3019 = vdwg.mxu0
    %3020 = vmatpush.bf16.msra.mxu0 %v2564
    %3021 = vmatpush.bf16.msra.mxu0 %v2556
    %3022 = vmatpush.bf16.msra.mxu0 %v2548
    %3023 = vmatpush.bf16.msra.mxu0 %v2540
    %3024 = vmatpush.bf16.msra.mxu0 %v2532
    %3025 = vmatpush.bf16.msra.mxu0 %v2524
    %3026 = vmatpush.bf16.msra.mxu0 %v2516
    %3027 = vmatpush.bf16.msra.mxu0 %v2508
    %3028 = vmatmul.bf16.gmra.mxu0 %v1270
    %v3029 = vpop.f32.mrf.mxu0
    %v3030 = vadd.f32 %v3017, %v3029
    %v3031 = vpop.f32.mrf.mxu0
    %3032 = vdwg.mxu0
    %3033 = vmatpush.bf16.msra.mxu0 %v2373
    %3034 = vmatpush.bf16.msra.mxu0 %v2365
    %3035 = vmatpush.bf16.msra.mxu0 %v2357
    %3036 = vmatpush.bf16.msra.mxu0 %v2349
    %3037 = vmatpush.bf16.msra.mxu0 %v2341
    %3038 = vmatpush.bf16.msra.mxu0 %v2333
    %3039 = vmatpush.bf16.msra.mxu0 %v2325
    %3040 = vmatpush.bf16.msra.mxu0 %v2317
    %3041 = vmatmul.bf16.gmra.mxu0 %v1267
    %v3042 = vpop.f32.mrf.mxu0
    %v3043 = vadd.f32 %v1533, %v3042
    %v3044 = vpop.f32.mrf.mxu0
    %3045 = vdwg.mxu0
    %3046 = vmatpush.bf16.msra.mxu0 %v2437
    %3047 = vmatpush.bf16.msra.mxu0 %v2429
    %3048 = vmatpush.bf16.msra.mxu0 %v2421
    %3049 = vmatpush.bf16.msra.mxu0 %v2413
    %3050 = vmatpush.bf16.msra.mxu0 %v2405
    %3051 = vmatpush.bf16.msra.mxu0 %v2397
    %3052 = vmatpush.bf16.msra.mxu0 %v2389
    %3053 = vmatpush.bf16.msra.mxu0 %v2381
    %3054 = vmatmul.bf16.gmra.mxu0 %v1268
    %v3055 = vpop.f32.mrf.mxu0
    %v3056 = vadd.f32 %v3043, %v3055
    %v3057 = vpop.f32.mrf.mxu0
    %3058 = vdwg.mxu0
    %3059 = vmatpush.bf16.msra.mxu0 %v2501
    %3060 = vmatpush.bf16.msra.mxu0 %v2493
    %3061 = vmatpush.bf16.msra.mxu0 %v2485
    %3062 = vmatpush.bf16.msra.mxu0 %v2477
    %3063 = vmatpush.bf16.msra.mxu0 %v2469
    %3064 = vmatpush.bf16.msra.mxu0 %v2461
    %3065 = vmatpush.bf16.msra.mxu0 %v2453
    %3066 = vmatpush.bf16.msra.mxu0 %v2445
    %3067 = vmatmul.bf16.gmra.mxu0 %v1269
    %v3068 = vpop.f32.mrf.mxu0
    %v3069 = vadd.f32 %v3056, %v3068
    %v3070 = vpop.f32.mrf.mxu0
    %3071 = vdwg.mxu0
    %3072 = vmatpush.bf16.msra.mxu0 %v2565
    %3073 = vmatpush.bf16.msra.mxu0 %v2557
    %3074 = vmatpush.bf16.msra.mxu0 %v2549
    %3075 = vmatpush.bf16.msra.mxu0 %v2541
    %3076 = vmatpush.bf16.msra.mxu0 %v2533
    %3077 = vmatpush.bf16.msra.mxu0 %v2525
    %3078 = vmatpush.bf16.msra.mxu0 %v2517
    %3079 = vmatpush.bf16.msra.mxu0 %v2509
    %3080 = vmatmul.bf16.gmra.mxu0 %v1270
    %v3081 = vpop.f32.mrf.mxu0
    %v3082 = vadd.f32 %v3069, %v3081
    %v3083 = vpop.f32.mrf.mxu0
    %3084 = vdwg.mxu0
    %3085 = vmatpush.bf16.msra.mxu0 %v2374
    %3086 = vmatpush.bf16.msra.mxu0 %v2366
    %3087 = vmatpush.bf16.msra.mxu0 %v2358
    %3088 = vmatpush.bf16.msra.mxu0 %v2350
    %3089 = vmatpush.bf16.msra.mxu0 %v2342
    %3090 = vmatpush.bf16.msra.mxu0 %v2334
    %3091 = vmatpush.bf16.msra.mxu0 %v2326
    %3092 = vmatpush.bf16.msra.mxu0 %v2318
    %3093 = vmatmul.bf16.gmra.mxu0 %v1267
    %v3094 = vpop.f32.mrf.mxu0
    %v3095 = vadd.f32 %v1534, %v3094
    %v3096 = vpop.f32.mrf.mxu0
    %3097 = vdwg.mxu0
    %3098 = vmatpush.bf16.msra.mxu0 %v2438
    %3099 = vmatpush.bf16.msra.mxu0 %v2430
    %3100 = vmatpush.bf16.msra.mxu0 %v2422
    %3101 = vmatpush.bf16.msra.mxu0 %v2414
    %3102 = vmatpush.bf16.msra.mxu0 %v2406
    %3103 = vmatpush.bf16.msra.mxu0 %v2398
    %3104 = vmatpush.bf16.msra.mxu0 %v2390
    %3105 = vmatpush.bf16.msra.mxu0 %v2382
    %3106 = vmatmul.bf16.gmra.mxu0 %v1268
    %v3107 = vpop.f32.mrf.mxu0
    %v3108 = vadd.f32 %v3095, %v3107
    %v3109 = vpop.f32.mrf.mxu0
    %3110 = vdwg.mxu0
    %3111 = vmatpush.bf16.msra.mxu0 %v2502
    %3112 = vmatpush.bf16.msra.mxu0 %v2494
    %3113 = vmatpush.bf16.msra.mxu0 %v2486
    %3114 = vmatpush.bf16.msra.mxu0 %v2478
    %3115 = vmatpush.bf16.msra.mxu0 %v2470
    %3116 = vmatpush.bf16.msra.mxu0 %v2462
    %3117 = vmatpush.bf16.msra.mxu0 %v2454
    %3118 = vmatpush.bf16.msra.mxu0 %v2446
    %3119 = vmatmul.bf16.gmra.mxu0 %v1269
    %v3120 = vpop.f32.mrf.mxu0
    %v3121 = vadd.f32 %v3108, %v3120
    %v3122 = vpop.f32.mrf.mxu0
    %3123 = vdwg.mxu0
    %3124 = vmatpush.bf16.msra.mxu0 %v2566
    %3125 = vmatpush.bf16.msra.mxu0 %v2558
    %3126 = vmatpush.bf16.msra.mxu0 %v2550
    %3127 = vmatpush.bf16.msra.mxu0 %v2542
    %3128 = vmatpush.bf16.msra.mxu0 %v2534
    %3129 = vmatpush.bf16.msra.mxu0 %v2526
    %3130 = vmatpush.bf16.msra.mxu0 %v2518
    %3131 = vmatpush.bf16.msra.mxu0 %v2510
    %3132 = vmatmul.bf16.gmra.mxu0 %v1270
    %v3133 = vpop.f32.mrf.mxu0
    %v3134 = vadd.f32 %v3121, %v3133
    %v3135 = vpop.f32.mrf.mxu0
    %3136 = vdwg.mxu0
    %3137 = vmatpush.bf16.msra.mxu0 %v2375
    %3138 = vmatpush.bf16.msra.mxu0 %v2367
    %3139 = vmatpush.bf16.msra.mxu0 %v2359
    %3140 = vmatpush.bf16.msra.mxu0 %v2351
    %3141 = vmatpush.bf16.msra.mxu0 %v2343
    %3142 = vmatpush.bf16.msra.mxu0 %v2335
    %3143 = vmatpush.bf16.msra.mxu0 %v2327
    %3144 = vmatpush.bf16.msra.mxu0 %v2319
    %3145 = vmatmul.bf16.gmra.mxu0 %v1267
    %v3146 = vpop.f32.mrf.mxu0
    %v3147 = vadd.f32 %v1535, %v3146
    %v3148 = vpop.f32.mrf.mxu0
    %3149 = vdwg.mxu0
    %3150 = vmatpush.bf16.msra.mxu0 %v2439
    %3151 = vmatpush.bf16.msra.mxu0 %v2431
    %3152 = vmatpush.bf16.msra.mxu0 %v2423
    %3153 = vmatpush.bf16.msra.mxu0 %v2415
    %3154 = vmatpush.bf16.msra.mxu0 %v2407
    %3155 = vmatpush.bf16.msra.mxu0 %v2399
    %3156 = vmatpush.bf16.msra.mxu0 %v2391
    %3157 = vmatpush.bf16.msra.mxu0 %v2383
    %3158 = vmatmul.bf16.gmra.mxu0 %v1268
    %v3159 = vpop.f32.mrf.mxu0
    %v3160 = vadd.f32 %v3147, %v3159
    %v3161 = vpop.f32.mrf.mxu0
    %3162 = vdwg.mxu0
    %3163 = vmatpush.bf16.msra.mxu0 %v2503
    %3164 = vmatpush.bf16.msra.mxu0 %v2495
    %3165 = vmatpush.bf16.msra.mxu0 %v2487
    %3166 = vmatpush.bf16.msra.mxu0 %v2479
    %3167 = vmatpush.bf16.msra.mxu0 %v2471
    %3168 = vmatpush.bf16.msra.mxu0 %v2463
    %3169 = vmatpush.bf16.msra.mxu0 %v2455
    %3170 = vmatpush.bf16.msra.mxu0 %v2447
    %3171 = vmatmul.bf16.gmra.mxu0 %v1269
    %v3172 = vpop.f32.mrf.mxu0
    %v3173 = vadd.f32 %v3160, %v3172
    %v3174 = vpop.f32.mrf.mxu0
    %3175 = vdwg.mxu0
    %3176 = vmatpush.bf16.msra.mxu0 %v2567
    %3177 = vmatpush.bf16.msra.mxu0 %v2559
    %3178 = vmatpush.bf16.msra.mxu0 %v2551
    %3179 = vmatpush.bf16.msra.mxu0 %v2543
    %3180 = vmatpush.bf16.msra.mxu0 %v2535
    %3181 = vmatpush.bf16.msra.mxu0 %v2527
    %3182 = vmatpush.bf16.msra.mxu0 %v2519
    %3183 = vmatpush.bf16.msra.mxu0 %v2511
    %3184 = vmatmul.bf16.gmra.mxu0 %v1270
    %v3185 = vpop.f32.mrf.mxu0
    %v3186 = vadd.f32 %v3173, %v3185
    %v3187 = vpop.f32.mrf.mxu0
    %3188 = vdwg.mxu0
    %3189 = vmatpush.bf16.msra.mxu0 %v2376
    %3190 = vmatpush.bf16.msra.mxu0 %v2368
    %3191 = vmatpush.bf16.msra.mxu0 %v2360
    %3192 = vmatpush.bf16.msra.mxu0 %v2352
    %3193 = vmatpush.bf16.msra.mxu0 %v2344
    %3194 = vmatpush.bf16.msra.mxu0 %v2336
    %3195 = vmatpush.bf16.msra.mxu0 %v2328
    %3196 = vmatpush.bf16.msra.mxu0 %v2320
    %3197 = vmatmul.bf16.gmra.mxu0 %v1267
    %v3198 = vpop.f32.mrf.mxu0
    %v3199 = vadd.f32 %v1536, %v3198
    %v3200 = vpop.f32.mrf.mxu0
    %3201 = vdwg.mxu0
    %3202 = vmatpush.bf16.msra.mxu0 %v2440
    %3203 = vmatpush.bf16.msra.mxu0 %v2432
    %3204 = vmatpush.bf16.msra.mxu0 %v2424
    %3205 = vmatpush.bf16.msra.mxu0 %v2416
    %3206 = vmatpush.bf16.msra.mxu0 %v2408
    %3207 = vmatpush.bf16.msra.mxu0 %v2400
    %3208 = vmatpush.bf16.msra.mxu0 %v2392
    %3209 = vmatpush.bf16.msra.mxu0 %v2384
    %3210 = vmatmul.bf16.gmra.mxu0 %v1268
    %v3211 = vpop.f32.mrf.mxu0
    %v3212 = vadd.f32 %v3199, %v3211
    %v3213 = vpop.f32.mrf.mxu0
    %3214 = vdwg.mxu0
    %3215 = vmatpush.bf16.msra.mxu0 %v2504
    %3216 = vmatpush.bf16.msra.mxu0 %v2496
    %3217 = vmatpush.bf16.msra.mxu0 %v2488
    %3218 = vmatpush.bf16.msra.mxu0 %v2480
    %3219 = vmatpush.bf16.msra.mxu0 %v2472
    %3220 = vmatpush.bf16.msra.mxu0 %v2464
    %3221 = vmatpush.bf16.msra.mxu0 %v2456
    %3222 = vmatpush.bf16.msra.mxu0 %v2448
    %3223 = vmatmul.bf16.gmra.mxu0 %v1269
    %v3224 = vpop.f32.mrf.mxu0
    %v3225 = vadd.f32 %v3212, %v3224
    %v3226 = vpop.f32.mrf.mxu0
    %3227 = vdwg.mxu0
    %3228 = vmatpush.bf16.msra.mxu0 %v2568
    %3229 = vmatpush.bf16.msra.mxu0 %v2560
    %3230 = vmatpush.bf16.msra.mxu0 %v2552
    %3231 = vmatpush.bf16.msra.mxu0 %v2544
    %3232 = vmatpush.bf16.msra.mxu0 %v2536
    %3233 = vmatpush.bf16.msra.mxu0 %v2528
    %3234 = vmatpush.bf16.msra.mxu0 %v2520
    %3235 = vmatpush.bf16.msra.mxu0 %v2512
    %3236 = vmatmul.bf16.gmra.mxu0 %v1270
    %v3237 = vpop.f32.mrf.mxu0
    %v3238 = vadd.f32 %v3225, %v3237
    %v3239 = vpop.f32.mrf.mxu0
    %3240 = vdwg.mxu0
    %v3241 = vld [vmem:[#allocation23] sm:$0xff]
    %v3242 = vld [vmem:[#allocation24] sm:$0xff]
    %v3243 = vrot.slane %v2874, 4
    %v3244 = vadd.f32 %v2874, %v3243
    %v3245 = vrot.slane %v3244, 2
    %v3246 = vadd.f32 %v3244, %v3245
    %v3247 = vrot.slane %v3246, 1
    %v3248 = vadd.f32 %v3246, %v3247
    %v3249 = vrot.slane %v2926, 4
    %v3250 = vadd.f32 %v2926, %v3249
    %v3251 = vrot.slane %v3250, 2
    %v3252 = vadd.f32 %v3250, %v3251
    %v3253 = vrot.slane %v3252, 1
    %v3254 = vadd.f32 %v3252, %v3253
    %v3255 = vrot.slane %v2978, 4
    %v3256 = vadd.f32 %v2978, %v3255
    %v3257 = vrot.slane %v3256, 2
    %v3258 = vadd.f32 %v3256, %v3257
    %v3259 = vrot.slane %v3258, 1
    %v3260 = vadd.f32 %v3258, %v3259
    %v3261 = vrot.slane %v3030, 4
    %v3262 = vadd.f32 %v3030, %v3261
    %v3263 = vrot.slane %v3262, 2
    %v3264 = vadd.f32 %v3262, %v3263
    %v3265 = vrot.slane %v3264, 1
    %v3266 = vadd.f32 %v3264, %v3265
    %v3267 = vrot.slane %v3082, 4
    %v3268 = vadd.f32 %v3082, %v3267
    %v3269 = vrot.slane %v3268, 2
    %v3270 = vadd.f32 %v3268, %v3269
    %v3271 = vrot.slane %v3270, 1
    %v3272 = vadd.f32 %v3270, %v3271
    %v3273 = vrot.slane %v3134, 4
    %v3274 = vadd.f32 %v3134, %v3273
    %v3275 = vrot.slane %v3274, 2
    %v3276 = vadd.f32 %v3274, %v3275
    %v3277 = vrot.slane %v3276, 1
    %v3278 = vadd.f32 %v3276, %v3277
    %v3279 = vrot.slane %v3186, 4
    %v3280 = vadd.f32 %v3186, %v3279
    %v3281 = vrot.slane %v3280, 2
    %v3282 = vadd.f32 %v3280, %v3281
    %v3283 = vrot.slane %v3282, 1
    %v3284 = vadd.f32 %v3282, %v3283
    %v3285 = vrot.slane %v3238, 4
    %v3286 = vadd.f32 %v3238, %v3285
    %v3287 = vrot.slane %v3286, 2
    %v3288 = vadd.f32 %v3286, %v3287
    %v3289 = vrot.slane %v3288, 1
    %v3290 = vadd.f32 %v3288, %v3289
    %v3291 = vmul.f32 %v3248, %v511
    %v3292 = vmul.f32 %v3254, %v511
    %v3293 = vmul.f32 %v3260, %v511
    %v3294 = vmul.f32 %v3266, %v511
    %v3295 = vmul.f32 %v3272, %v511
    %v3296 = vmul.f32 %v3278, %v511
    %v3297 = vmul.f32 %v3284, %v511
    %v3298 = vmul.f32 %v3290, %v511
    %v3299 = vmul.f32 %v2874, %v2874
    %v3300 = vmul.f32 %v2926, %v2926
    %v3301 = vmul.f32 %v2978, %v2978
    %v3302 = vmul.f32 %v3030, %v3030
    %v3303 = vmul.f32 %v3082, %v3082
    %v3304 = vmul.f32 %v3134, %v3134
    %v3305 = vmul.f32 %v3186, %v3186
    %v3306 = vmul.f32 %v3238, %v3238
    %v3307 = vrot.slane %v3299, 4
    %v3308 = vadd.f32 %v3299, %v3307
    %v3309 = vrot.slane %v3308, 2
    %v3310 = vadd.f32 %v3308, %v3309
    %v3311 = vrot.slane %v3310, 1
    %v3312 = vadd.f32 %v3310, %v3311
    %v3313 = vrot.slane %v3300, 4
    %v3314 = vadd.f32 %v3300, %v3313
    %v3315 = vrot.slane %v3314, 2
    %v3316 = vadd.f32 %v3314, %v3315
    %v3317 = vrot.slane %v3316, 1
    %v3318 = vadd.f32 %v3316, %v3317
    %v3319 = vrot.slane %v3301, 4
    %v3320 = vadd.f32 %v3301, %v3319
    %v3321 = vrot.slane %v3320, 2
    %v3322 = vadd.f32 %v3320, %v3321
    %v3323 = vrot.slane %v3322, 1
    %v3324 = vadd.f32 %v3322, %v3323
    %v3325 = vrot.slane %v3302, 4
    %v3326 = vadd.f32 %v3302, %v3325
    %v3327 = vrot.slane %v3326, 2
    %v3328 = vadd.f32 %v3326, %v3327
    %v3329 = vrot.slane %v3328, 1
    %v3330 = vadd.f32 %v3328, %v3329
    %v3331 = vrot.slane %v3303, 4
    %v3332 = vadd.f32 %v3303, %v3331
    %v3333 = vrot.slane %v3332, 2
    %v3334 = vadd.f32 %v3332, %v3333
    %v3335 = vrot.slane %v3334, 1
    %v3336 = vadd.f32 %v3334, %v3335
    %v3337 = vrot.slane %v3304, 4
    %v3338 = vadd.f32 %v3304, %v3337
    %v3339 = vrot.slane %v3338, 2
    %v3340 = vadd.f32 %v3338, %v3339
    %v3341 = vrot.slane %v3340, 1
    %v3342 = vadd.f32 %v3340, %v3341
    %v3343 = vrot.slane %v3305, 4
    %v3344 = vadd.f32 %v3305, %v3343
    %v3345 = vrot.slane %v3344, 2
    %v3346 = vadd.f32 %v3344, %v3345
    %v3347 = vrot.slane %v3346, 1
    %v3348 = vadd.f32 %v3346, %v3347
    %v3349 = vrot.slane %v3306, 4
    %v3350 = vadd.f32 %v3306, %v3349
    %v3351 = vrot.slane %v3350, 2
    %v3352 = vadd.f32 %v3350, %v3351
    %v3353 = vrot.slane %v3352, 1
    %v3354 = vadd.f32 %v3352, %v3353
    %v3355 = vmul.f32 %v3312, %v511
    %v3356 = vmul.f32 %v3318, %v511
    %v3357 = vmul.f32 %v3324, %v511
    %v3358 = vmul.f32 %v3330, %v511
    %v3359 = vmul.f32 %v3336, %v511
    %v3360 = vmul.f32 %v3342, %v511
    %v3361 = vmul.f32 %v3348, %v511
    %v3362 = vmul.f32 %v3354, %v511
    %v3363 = vmul.f32 %v3291, %v3291
    %v3364 = vmul.f32 %v3292, %v3292
    %v3365 = vmul.f32 %v3293, %v3293
    %v3366 = vmul.f32 %v3294, %v3294
    %v3367 = vmul.f32 %v3295, %v3295
    %v3368 = vmul.f32 %v3296, %v3296
    %v3369 = vmul.f32 %v3297, %v3297
    %v3370 = vmul.f32 %v3298, %v3298
    %v3371 = vsub.f32 %v3355, %v3363
    %v3372 = vsub.f32 %v3356, %v3364
    %v3373 = vsub.f32 %v3357, %v3365
    %v3374 = vsub.f32 %v3358, %v3366
    %v3375 = vsub.f32 %v3359, %v3367
    %v3376 = vsub.f32 %v3360, %v3368
    %v3377 = vsub.f32 %v3361, %v3369
    %v3378 = vsub.f32 %v3362, %v3370
    %v3379 = vmax.f32 %v3371, 0.0
    %v3380 = vmax.f32 %v3372, 0.0
    %v3381 = vmax.f32 %v3373, 0.0
    %v3382 = vmax.f32 %v3374, 0.0
    %v3383 = vmax.f32 %v3375, 0.0
    %v3384 = vmax.f32 %v3376, 0.0
    %v3385 = vmax.f32 %v3377, 0.0
    %v3386 = vmax.f32 %v3378, 0.0
    %v3387 = vadd.f32 %v3379, 1e-05
    %v3388 = vadd.f32 %v3380, 1e-05
    %v3389 = vadd.f32 %v3381, 1e-05
    %v3390 = vadd.f32 %v3382, 1e-05
    %v3391 = vadd.f32 %v3383, 1e-05
    %v3392 = vadd.f32 %v3384, 1e-05
    %v3393 = vadd.f32 %v3385, 1e-05
    %v3394 = vadd.f32 %v3386, 1e-05
    %v3395 = vrsqrt.pop %v3387
    %v3396 = vmul.f32 %v3395, %v3387
    %v3397 = vmul.f32 %v3396, %v3395
    %v3398 = vmul.f32 0.5, %v3397
    %v3399 = vsub.f32 1.5, %v3398
    %v3400 = vmul.f32 %v3395, %v3399
    %vm3401 = vweird.f32 %v3387
    %vm3402 = vweird.f32 %v3395
    %vm3403 = vmor %vm3401, %vm3402
    %v3404 = vsel %vm3403, %v3395, %v3400
    %v3405 = vrsqrt.pop %v3388
    %v3406 = vmul.f32 %v3405, %v3388
    %v3407 = vmul.f32 %v3406, %v3405
    %v3408 = vmul.f32 0.5, %v3407
    %v3409 = vsub.f32 1.5, %v3408
    %v3410 = vmul.f32 %v3405, %v3409
    %vm3411 = vweird.f32 %v3388
    %vm3412 = vweird.f32 %v3405
    %vm3413 = vmor %vm3411, %vm3412
    %v3414 = vsel %vm3413, %v3405, %v3410
    %v3415 = vrsqrt.pop %v3389
    %v3416 = vmul.f32 %v3415, %v3389
    %v3417 = vmul.f32 %v3416, %v3415
    %v3418 = vmul.f32 0.5, %v3417
    %v3419 = vsub.f32 1.5, %v3418
    %v3420 = vmul.f32 %v3415, %v3419
    %vm3421 = vweird.f32 %v3389
    %vm3422 = vweird.f32 %v3415
    %vm3423 = vmor %vm3421, %vm3422
    %v3424 = vsel %vm3423, %v3415, %v3420
    %v3425 = vrsqrt.pop %v3390
    %v3426 = vmul.f32 %v3425, %v3390
    %v3427 = vmul.f32 %v3426, %v3425
    %v3428 = vmul.f32 0.5, %v3427
    %v3429 = vsub.f32 1.5, %v3428
    %v3430 = vmul.f32 %v3425, %v3429
    %vm3431 = vweird.f32 %v3390
    %vm3432 = vweird.f32 %v3425
    %vm3433 = vmor %vm3431, %vm3432
    %v3434 = vsel %vm3433, %v3425, %v3430
    %v3435 = vrsqrt.pop %v3391
    %v3436 = vmul.f32 %v3435, %v3391
    %v3437 = vmul.f32 %v3436, %v3435
    %v3438 = vmul.f32 0.5, %v3437
    %v3439 = vsub.f32 1.5, %v3438
    %v3440 = vmul.f32 %v3435, %v3439
    %vm3441 = vweird.f32 %v3391
    %vm3442 = vweird.f32 %v3435
    %vm3443 = vmor %vm3441, %vm3442
    %v3444 = vsel %vm3443, %v3435, %v3440
    %v3445 = vrsqrt.pop %v3392
    %v3446 = vmul.f32 %v3445, %v3392
    %v3447 = vmul.f32 %v3446, %v3445
    %v3448 = vmul.f32 0.5, %v3447
    %v3449 = vsub.f32 1.5, %v3448
    %v3450 = vmul.f32 %v3445, %v3449
    %vm3451 = vweird.f32 %v3392
    %vm3452 = vweird.f32 %v3445
    %vm3453 = vmor %vm3451, %vm3452
    %v3454 = vsel %vm3453, %v3445, %v3450
    %v3455 = vrsqrt.pop %v3393
    %v3456 = vmul.f32 %v3455, %v3393
    %v3457 = vmul.f32 %v3456, %v3455
    %v3458 = vmul.f32 0.5, %v3457
    %v3459 = vsub.f32 1.5, %v3458
    %v3460 = vmul.f32 %v3455, %v3459
    %vm3461 = vweird.f32 %v3393
    %vm3462 = vweird.f32 %v3455
    %vm3463 = vmor %vm3461, %vm3462
    %v3464 = vsel %vm3463, %v3455, %v3460
    %v3465 = vrsqrt.pop %v3394
    %v3466 = vmul.f32 %v3465, %v3394
    %v3467 = vmul.f32 %v3466, %v3465
    %v3468 = vmul.f32 0.5, %v3467
    %v3469 = vsub.f32 1.5, %v3468
    %v3470 = vmul.f32 %v3465, %v3469
    %vm3471 = vweird.f32 %v3394
    %vm3472 = vweird.f32 %v3465
    %vm3473 = vmor %vm3471, %vm3472
    %v3474 = vsel %vm3473, %v3465, %v3470
    %v3483 = vrot.slane %v3414, 7
    %v3484 = vrot.slane %v3424, 6
    %v3485 = vrot.slane %v3434, 5
    %v3486 = vrot.slane %v3444, 4
    %v3487 = vrot.slane %v3454, 3
    %v3488 = vrot.slane %v3464, 2
    %v3489 = vrot.slane %v3474, 1
    %v3490 = vsel %vm561, %v3404, %v3483
    %v3491 = vsel %vm1215, %v3484, %v3485
    %v3492 = vsel %vm1217, %v3490, %v3491
    %vm3493 = vcmask 1044484
    %v3494 = vsel %vm3493, %v3486, %v3487
    %vm3495 = vcmask 1046534
    %v3496 = vsel %vm3495, %v3488, %v3489
    %vm3497 = vcmask 1045508
    %v3498 = vsel %vm3497, %v3494, %v3496
    %vm3499 = vcmask 1043456
    %v3500 = vsel %vm3499, %v3492, %v3498
    %v3502 = vmul.f32 %v3241, %v3500
    %v3504 = vperm.slane %v3502, 0
    %v3505 = vperm.slane %v3502, 1
    %v3506 = vperm.slane %v3502, 2
    %v3507 = vperm.slane %v3502, 3
    %v3508 = vperm.slane %v3502, 4
    %v3509 = vperm.slane %v3502, 5
    %v3510 = vperm.slane %v3502, 6
    %v3511 = vperm.slane %v3502, 7
    %v3520 = vmul.f32 %v3291, %v3504
    %v3521 = vmul.f32 %v3292, %v3505
    %v3522 = vmul.f32 %v3293, %v3506
    %v3523 = vmul.f32 %v3294, %v3507
    %v3524 = vmul.f32 %v3295, %v3508
    %v3525 = vmul.f32 %v3296, %v3509
    %v3526 = vmul.f32 %v3297, %v3510
    %v3527 = vmul.f32 %v3298, %v3511
    %v3536 = vrot.slane %v3521, 7
    %v3537 = vrot.slane %v3522, 6
    %v3538 = vrot.slane %v3523, 5
    %v3539 = vrot.slane %v3524, 4
    %v3540 = vrot.slane %v3525, 3
    %v3541 = vrot.slane %v3526, 2
    %v3542 = vrot.slane %v3527, 1
    %v3543 = vsel %vm561, %v3520, %v3536
    %v3544 = vsel %vm1215, %v3537, %v3538
    %v3545 = vsel %vm1217, %v3543, %v3544
    %v3546 = vsel %vm3493, %v3539, %v3540
    %v3547 = vsel %vm3495, %v3541, %v3542
    %v3548 = vsel %vm3497, %v3546, %v3547
    %v3549 = vsel %vm3499, %v3545, %v3548
    %v3551 = vsub.f32 %v3242, %v3549
    %v3552 = vmul.f32 %v2874, %v3504
    %v3553 = vmul.f32 %v2926, %v3505
    %v3554 = vmul.f32 %v2978, %v3506
    %v3555 = vmul.f32 %v3030, %v3507
    %v3556 = vmul.f32 %v3082, %v3508
    %v3557 = vmul.f32 %v3134, %v3509
    %v3558 = vmul.f32 %v3186, %v3510
    %v3559 = vmul.f32 %v3238, %v3511
    %v3561 = vperm.slane %v3551, 0
    %v3562 = vperm.slane %v3551, 1
    %v3563 = vperm.slane %v3551, 2
    %v3564 = vperm.slane %v3551, 3
    %v3565 = vperm.slane %v3551, 4
    %v3566 = vperm.slane %v3551, 5
    %v3567 = vperm.slane %v3551, 6
    %v3568 = vperm.slane %v3551, 7
    %v3577 = vadd.f32 %v3552, %v3561
    %v3578 = vadd.f32 %v3553, %v3562
    %v3579 = vadd.f32 %v3554, %v3563
    %v3580 = vadd.f32 %v3555, %v3564
    %v3581 = vadd.f32 %v3556, %v3565
    %v3582 = vadd.f32 %v3557, %v3566
    %v3583 = vadd.f32 %v3558, %v3567
    %v3584 = vadd.f32 %v3559, %v3568
    %v3585 = vmax.f32 %v3577, 0.0
    %v3586 = vmax.f32 %v3578, 0.0
    %v3587 = vmax.f32 %v3579, 0.0
    %v3588 = vmax.f32 %v3580, 0.0
    %v3589 = vmax.f32 %v3581, 0.0
    %v3590 = vmax.f32 %v3582, 0.0
    %v3591 = vmax.f32 %v3583, 0.0
    %v3592 = vmax.f32 %v3584, 0.0
    %s3593 = smul.u32 4, 128
    %s3594 = smul.u32 %s3593, 7
    %s3595 = sshll.u32 %s3594, 4
    %3596 = dma.done [#allocation3], %s3595
    %v3597 = vpack.c.bf16 %v3585, %v3585
    %v3598 = vpack.c.bf16 %v3586, %v3586
    %v3599 = vpack.c.bf16 %v3587, %v3587
    %v3600 = vpack.c.bf16 %v3588, %v3588
    %v3601 = vpack.c.bf16 %v3589, %v3589
    %v3602 = vpack.c.bf16 %v3590, %v3590
    %v3603 = vpack.c.bf16 %v3591, %v3591
    %v3604 = vpack.c.bf16 %v3592, %v3592
    %v3605 = vld [vmem:[#allocation2] sm:$0xff]
    %v3606 = vld [vmem:[#allocation2 + $0x8] sm:$0xff]
    %v3607 = vld [vmem:[#allocation2 + $0x10] sm:$0xff]
    %v3608 = vld [vmem:[#allocation2 + $0x18] sm:$0xf]
    %v3609 = vld [vmem:[#allocation2 + $0x1c] sm:$0xff]
    %v3610 = vld [vmem:[#allocation2 + $0x24] sm:$0xff]
    %v3611 = vld [vmem:[#allocation2 + $0x2c] sm:$0xff]
    %v3612 = vld [vmem:[#allocation2 + $0x34] sm:$0xf]
    %v3613 = vld [vmem:[#allocation2 + $0x38] sm:$0xff]
    %v3614 = vld [vmem:[#allocation2 + $0x40] sm:$0xff]
    %v3615 = vld [vmem:[#allocation2 + $0x48] sm:$0xff]
    %v3616 = vld [vmem:[#allocation2 + $0x50] sm:$0xf]
    %v3617 = vld [vmem:[#allocation2 + $0x54] sm:$0xff]
    %v3618 = vld [vmem:[#allocation2 + $0x5c] sm:$0xff]
    %v3619 = vld [vmem:[#allocation2 + $0x64] sm:$0xff]
    %v3620 = vld [vmem:[#allocation2 + $0x6c] sm:$0xf]
    %v3621 = vld [vmem:[#allocation2 + $0x70] sm:$0xff]
    %v3622 = vld [vmem:[#allocation2 + $0x78] sm:$0xff]
    %v3623 = vld [vmem:[#allocation2 + $0x80] sm:$0xff]
    %v3624 = vld [vmem:[#allocation2 + $0x88] sm:$0xf]
    %v3625 = vld [vmem:[#allocation2 + $0x8c] sm:$0xff]
    %v3626 = vld [vmem:[#allocation2 + $0x94] sm:$0xff]
    %v3627 = vld [vmem:[#allocation2 + $0x9c] sm:$0xff]
    %v3628 = vld [vmem:[#allocation2 + $0xa4] sm:$0xf]
    %v3629 = vld [vmem:[#allocation2 + $0xa8] sm:$0xff]
    %v3630 = vld [vmem:[#allocation2 + $0xb0] sm:$0xff]
    %v3631 = vld [vmem:[#allocation2 + $0xb8] sm:$0xff]
    %v3632 = vld [vmem:[#allocation2 + $0xc0] sm:$0xf]
    %v3633 = vld [vmem:[#allocation2 + $0xc4] sm:$0xff]
    %v3634 = vld [vmem:[#allocation2 + $0xcc] sm:$0xff]
    %v3635 = vld [vmem:[#allocation2 + $0xd4] sm:$0xff]
    %v3636 = vld [vmem:[#allocation2 + $0xdc] sm:$0xf]
    %v3637 = vld [vmem:[#allocation2 + $0xe0] sm:$0xff]
    %v3638 = vld [vmem:[#allocation2 + $0xe8] sm:$0xff]
    %v3639 = vld [vmem:[#allocation2 + $0xf0] sm:$0xff]
    %v3640 = vld [vmem:[#allocation2 + $0xf8] sm:$0xf]
    %v3641 = vld [vmem:[#allocation2 + $0xfc] sm:$0xff]
    %v3642 = vld [vmem:[#allocation2 + $0x104] sm:$0xff]
    %v3643 = vld [vmem:[#allocation2 + $0x10c] sm:$0xff]
    %v3644 = vld [vmem:[#allocation2 + $0x114] sm:$0xf]
    %v3645 = vld [vmem:[#allocation2 + $0x118] sm:$0xff]
    %v3646 = vld [vmem:[#allocation2 + $0x120] sm:$0xff]
    %v3647 = vld [vmem:[#allocation2 + $0x128] sm:$0xff]
    %v3648 = vld [vmem:[#allocation2 + $0x130] sm:$0xf]
    %v3649 = vld [vmem:[#allocation2 + $0x134] sm:$0xff]
    %v3650 = vld [vmem:[#allocation2 + $0x13c] sm:$0xff]
    %v3651 = vld [vmem:[#allocation2 + $0x144] sm:$0xff]
    %v3652 = vld [vmem:[#allocation2 + $0x14c] sm:$0xf]
    %v3653 = vld [vmem:[#allocation2 + $0x150] sm:$0xff]
    %v3654 = vld [vmem:[#allocation2 + $0x158] sm:$0xff]
    %v3655 = vld [vmem:[#allocation2 + $0x160] sm:$0xff]
    %v3656 = vld [vmem:[#allocation2 + $0x168] sm:$0xf]
    %v3657 = vld [vmem:[#allocation2 + $0x16c] sm:$0xff]
    %v3658 = vld [vmem:[#allocation2 + $0x174] sm:$0xff]
    %v3659 = vld [vmem:[#allocation2 + $0x17c] sm:$0xff]
    %v3660 = vld [vmem:[#allocation2 + $0x184] sm:$0xf]
    %v3661 = vld [vmem:[#allocation2 + $0x188] sm:$0xff]
    %v3662 = vld [vmem:[#allocation2 + $0x190] sm:$0xff]
    %v3663 = vld [vmem:[#allocation2 + $0x198] sm:$0xff]
    %v3664 = vld [vmem:[#allocation2 + $0x1a0] sm:$0xf]
    %v3665 = vld [vmem:[#allocation2 + $0x1a4] sm:$0xff]
    %v3666 = vld [vmem:[#allocation2 + $0x1ac] sm:$0xff]
    %v3667 = vld [vmem:[#allocation2 + $0x1b4] sm:$0xff]
    %v3668 = vld [vmem:[#allocation2 + $0x1bc] sm:$0xf]
    %v3669 = vld [vmem:[#allocation2 + $0x1c0] sm:$0xff]
    %v3670 = vld [vmem:[#allocation2 + $0x1c8] sm:$0xff]
    %v3671 = vld [vmem:[#allocation2 + $0x1d0] sm:$0xff]
    %v3672 = vld [vmem:[#allocation2 + $0x1d8] sm:$0xf]
    %v3673 = vld [vmem:[#allocation2 + $0x1dc] sm:$0xff]
    %v3674 = vld [vmem:[#allocation2 + $0x1e4] sm:$0xff]
    %v3675 = vld [vmem:[#allocation2 + $0x1ec] sm:$0xff]
    %v3676 = vld [vmem:[#allocation2 + $0x1f4] sm:$0xf]
    %v3677 = vld [vmem:[#allocation2 + $0x1f8] sm:$0xff]
    %v3678 = vld [vmem:[#allocation2 + $0x200] sm:$0xff]
    %v3679 = vld [vmem:[#allocation2 + $0x208] sm:$0xff]
    %v3680 = vld [vmem:[#allocation2 + $0x210] sm:$0xf]
    %v3681 = vld [vmem:[#allocation2 + $0x214] sm:$0xff]
    %v3682 = vld [vmem:[#allocation2 + $0x21c] sm:$0xff]
    %v3683 = vld [vmem:[#allocation2 + $0x224] sm:$0xff]
    %v3684 = vld [vmem:[#allocation2 + $0x22c] sm:$0xf]
    %v3685 = vld [vmem:[#allocation2 + $0x230] sm:$0xff]
    %v3686 = vld [vmem:[#allocation2 + $0x238] sm:$0xff]
    %v3687 = vld [vmem:[#allocation2 + $0x240] sm:$0xff]
    %v3688 = vld [vmem:[#allocation2 + $0x248] sm:$0xf]
    %v3689 = vld [vmem:[#allocation2 + $0x24c] sm:$0xff]
    %v3690 = vld [vmem:[#allocation2 + $0x254] sm:$0xff]
    %v3691 = vld [vmem:[#allocation2 + $0x25c] sm:$0xff]
    %v3692 = vld [vmem:[#allocation2 + $0x264] sm:$0xf]
    %v3693 = vld [vmem:[#allocation2 + $0x268] sm:$0xff]
    %v3694 = vld [vmem:[#allocation2 + $0x270] sm:$0xff]
    %v3695 = vld [vmem:[#allocation2 + $0x278] sm:$0xff]
    %v3696 = vld [vmem:[#allocation2 + $0x280] sm:$0xf]
    %v3697 = vld [vmem:[#allocation2 + $0x284] sm:$0xff]
    %v3698 = vld [vmem:[#allocation2 + $0x28c] sm:$0xff]
    %v3699 = vld [vmem:[#allocation2 + $0x294] sm:$0xff]
    %v3700 = vld [vmem:[#allocation2 + $0x29c] sm:$0xf]
    %v3701 = vld [vmem:[#allocation2 + $0x2a0] sm:$0xff]
    %v3702 = vld [vmem:[#allocation2 + $0x2a8] sm:$0xff]
    %v3703 = vld [vmem:[#allocation2 + $0x2b0] sm:$0xff]
    %v3704 = vld [vmem:[#allocation2 + $0x2b8] sm:$0xf]
    %v3705 = vld [vmem:[#allocation2 + $0x2bc] sm:$0xff]
    %v3706 = vld [vmem:[#allocation2 + $0x2c4] sm:$0xff]
    %v3707 = vld [vmem:[#allocation2 + $0x2cc] sm:$0xff]
    %v3708 = vld [vmem:[#allocation2 + $0x2d4] sm:$0xf]
    %v3709 = vld [vmem:[#allocation2 + $0x2d8] sm:$0xff]
    %v3710 = vld [vmem:[#allocation2 + $0x2e0] sm:$0xff]
    %v3711 = vld [vmem:[#allocation2 + $0x2e8] sm:$0xff]
    %v3712 = vld [vmem:[#allocation2 + $0x2f0] sm:$0xf]
    %v3713 = vld [vmem:[#allocation2 + $0x2f4] sm:$0xff]
    %v3714 = vld [vmem:[#allocation2 + $0x2fc] sm:$0xff]
    %v3715 = vld [vmem:[#allocation2 + $0x304] sm:$0xff]
    %v3716 = vld [vmem:[#allocation2 + $0x30c] sm:$0xf]
    %v3717 = vld [vmem:[#allocation2 + $0x310] sm:$0xff]
    %v3718 = vld [vmem:[#allocation2 + $0x318] sm:$0xff]
    %v3719 = vld [vmem:[#allocation2 + $0x320] sm:$0xff]
    %v3720 = vld [vmem:[#allocation2 + $0x328] sm:$0xf]
    %v3721 = vld [vmem:[#allocation2 + $0x32c] sm:$0xff]
    %v3722 = vld [vmem:[#allocation2 + $0x334] sm:$0xff]
    %v3723 = vld [vmem:[#allocation2 + $0x33c] sm:$0xff]
    %v3724 = vld [vmem:[#allocation2 + $0x344] sm:$0xf]
    %v3725 = vld [vmem:[#allocation2 + $0x348] sm:$0xff]
    %v3726 = vld [vmem:[#allocation2 + $0x350] sm:$0xff]
    %v3727 = vld [vmem:[#allocation2 + $0x358] sm:$0xff]
    %v3728 = vld [vmem:[#allocation2 + $0x360] sm:$0xf]
    %v3729 = vld [vmem:[#allocation2 + $0x364] sm:$0xff]
    %v3730 = vld [vmem:[#allocation2 + $0x36c] sm:$0xff]
    %v3731 = vld [vmem:[#allocation2 + $0x374] sm:$0xff]
    %v3732 = vld [vmem:[#allocation2 + $0x37c] sm:$0xf]
    %v3733 = vld [vmem:[#allocation2 + $0x380] sm:$0xff]
    %v3734 = vld [vmem:[#allocation2 + $0x388] sm:$0xff]
    %v3735 = vld [vmem:[#allocation2 + $0x390] sm:$0xff]
    %v3736 = vld [vmem:[#allocation2 + $0x398] sm:$0xf]
    %v3737 = vld [vmem:[#allocation2 + $0x39c] sm:$0xff]
    %v3738 = vld [vmem:[#allocation2 + $0x3a4] sm:$0xff]
    %v3739 = vld [vmem:[#allocation2 + $0x3ac] sm:$0xff]
    %v3740 = vld [vmem:[#allocation2 + $0x3b4] sm:$0xf]
    %v3741 = vld [vmem:[#allocation2 + $0x3b8] sm:$0xff]
    %v3742 = vld [vmem:[#allocation2 + $0x3c0] sm:$0xff]
    %v3743 = vld [vmem:[#allocation2 + $0x3c8] sm:$0xff]
    %v3744 = vld [vmem:[#allocation2 + $0x3d0] sm:$0xf]
    %v3745 = vld [vmem:[#allocation2 + $0x3d4] sm:$0xff]
    %v3746 = vld [vmem:[#allocation2 + $0x3dc] sm:$0xff]
    %v3747 = vld [vmem:[#allocation2 + $0x3e4] sm:$0xff]
    %v3748 = vld [vmem:[#allocation2 + $0x3ec] sm:$0xf]
    %v3749 = vld [vmem:[#allocation2 + $0x3f0] sm:$0xff]
    %v3750 = vld [vmem:[#allocation2 + $0x3f8] sm:$0xff]
    %v3751 = vld [vmem:[#allocation2 + $0x400] sm:$0xff]
    %v3752 = vld [vmem:[#allocation2 + $0x408] sm:$0xf]
    %v3753 = vld [vmem:[#allocation2 + $0x40c] sm:$0xff]
    %v3754 = vld [vmem:[#allocation2 + $0x414] sm:$0xff]
    %v3755 = vld [vmem:[#allocation2 + $0x41c] sm:$0xff]
    %v3756 = vld [vmem:[#allocation2 + $0x424] sm:$0xf]
    %v3757 = vld [vmem:[#allocation2 + $0x428] sm:$0xff]
    %v3758 = vld [vmem:[#allocation2 + $0x430] sm:$0xff]
    %v3759 = vld [vmem:[#allocation2 + $0x438] sm:$0xff]
    %v3760 = vld [vmem:[#allocation2 + $0x440] sm:$0xf]
    %v3761 = vld [vmem:[#allocation2 + $0x444] sm:$0xff]
    %v3762 = vld [vmem:[#allocation2 + $0x44c] sm:$0xff]
    %v3763 = vld [vmem:[#allocation2 + $0x454] sm:$0xff]
    %v3764 = vld [vmem:[#allocation2 + $0x45c] sm:$0xf]
    %v3765 = vld [vmem:[#allocation2 + $0x460] sm:$0xff]
    %v3766 = vld [vmem:[#allocation2 + $0x468] sm:$0xff]
    %v3767 = vld [vmem:[#allocation2 + $0x470] sm:$0xff]
    %v3768 = vld [vmem:[#allocation2 + $0x478] sm:$0xf]
    %v3769 = vld [vmem:[#allocation2 + $0x47c] sm:$0xff]
    %v3770 = vld [vmem:[#allocation2 + $0x484] sm:$0xff]
    %v3771 = vld [vmem:[#allocation2 + $0x48c] sm:$0xff]
    %v3772 = vld [vmem:[#allocation2 + $0x494] sm:$0xf]
    %v3773 = vld [vmem:[#allocation2 + $0x498] sm:$0xff]
    %v3774 = vld [vmem:[#allocation2 + $0x4a0] sm:$0xff]
    %v3775 = vld [vmem:[#allocation2 + $0x4a8] sm:$0xff]
    %v3776 = vld [vmem:[#allocation2 + $0x4b0] sm:$0xf]
    %v3777 = vld [vmem:[#allocation2 + $0x4b4] sm:$0xff]
    %v3778 = vld [vmem:[#allocation2 + $0x4bc] sm:$0xff]
    %v3779 = vld [vmem:[#allocation2 + $0x4c4] sm:$0xff]
    %v3780 = vld [vmem:[#allocation2 + $0x4cc] sm:$0xf]
    %v3781 = vld [vmem:[#allocation2 + $0x4d0] sm:$0xff]
    %v3782 = vld [vmem:[#allocation2 + $0x4d8] sm:$0xff]
    %v3783 = vld [vmem:[#allocation2 + $0x4e0] sm:$0xff]
    %v3784 = vld [vmem:[#allocation2 + $0x4e8] sm:$0xf]
    %v3785 = vld [vmem:[#allocation2 + $0x4ec] sm:$0xff]
    %v3786 = vld [vmem:[#allocation2 + $0x4f4] sm:$0xff]
    %v3787 = vld [vmem:[#allocation2 + $0x4fc] sm:$0xff]
    %v3788 = vld [vmem:[#allocation2 + $0x504] sm:$0xf]
    %v3789 = vld [vmem:[#allocation2 + $0x508] sm:$0xff]
    %v3790 = vld [vmem:[#allocation2 + $0x510] sm:$0xff]
    %v3791 = vld [vmem:[#allocation2 + $0x518] sm:$0xff]
    %v3792 = vld [vmem:[#allocation2 + $0x520] sm:$0xf]
    %v3793 = vld [vmem:[#allocation2 + $0x524] sm:$0xff]
    %v3794 = vld [vmem:[#allocation2 + $0x52c] sm:$0xff]
    %v3795 = vld [vmem:[#allocation2 + $0x534] sm:$0xff]
    %v3796 = vld [vmem:[#allocation2 + $0x53c] sm:$0xf]
    %v3797 = vld [vmem:[#allocation2 + $0x540] sm:$0xff]
    %v3798 = vld [vmem:[#allocation2 + $0x548] sm:$0xff]
    %v3799 = vld [vmem:[#allocation2 + $0x550] sm:$0xff]
    %v3800 = vld [vmem:[#allocation2 + $0x558] sm:$0xf]
    %v3801 = vld [vmem:[#allocation2 + $0x55c] sm:$0xff]
    %v3802 = vld [vmem:[#allocation2 + $0x564] sm:$0xff]
    %v3803 = vld [vmem:[#allocation2 + $0x56c] sm:$0xff]
    %v3804 = vld [vmem:[#allocation2 + $0x574] sm:$0xf]
    %v3805 = vld [vmem:[#allocation2 + $0x578] sm:$0xff]
    %v3806 = vld [vmem:[#allocation2 + $0x580] sm:$0xff]
    %v3807 = vld [vmem:[#allocation2 + $0x588] sm:$0xff]
    %v3808 = vld [vmem:[#allocation2 + $0x590] sm:$0xf]
    %v3809 = vld [vmem:[#allocation2 + $0x594] sm:$0xff]
    %v3810 = vld [vmem:[#allocation2 + $0x59c] sm:$0xff]
    %v3811 = vld [vmem:[#allocation2 + $0x5a4] sm:$0xff]
    %v3812 = vld [vmem:[#allocation2 + $0x5ac] sm:$0xf]
    %v3813 = vld [vmem:[#allocation2 + $0x5b0] sm:$0xff]
    %v3814 = vld [vmem:[#allocation2 + $0x5b8] sm:$0xff]
    %v3815 = vld [vmem:[#allocation2 + $0x5c0] sm:$0xff]
    %v3816 = vld [vmem:[#allocation2 + $0x5c8] sm:$0xf]
    %v3817 = vld [vmem:[#allocation2 + $0x5cc] sm:$0xff]
    %v3818 = vld [vmem:[#allocation2 + $0x5d4] sm:$0xff]
    %v3819 = vld [vmem:[#allocation2 + $0x5dc] sm:$0xff]
    %v3820 = vld [vmem:[#allocation2 + $0x5e4] sm:$0xf]
    %v3821 = vld [vmem:[#allocation2 + $0x5e8] sm:$0xff]
    %v3822 = vld [vmem:[#allocation2 + $0x5f0] sm:$0xff]
    %v3823 = vld [vmem:[#allocation2 + $0x5f8] sm:$0xff]
    %v3824 = vld [vmem:[#allocation2 + $0x600] sm:$0xf]
    %v3825 = vld [vmem:[#allocation2 + $0x604] sm:$0xff]
    %v3826 = vld [vmem:[#allocation2 + $0x60c] sm:$0xff]
    %v3827 = vld [vmem:[#allocation2 + $0x614] sm:$0xff]
    %v3828 = vld [vmem:[#allocation2 + $0x61c] sm:$0xf]
    %v3829 = vld [vmem:[#allocation2 + $0x620] sm:$0xff]
    %v3830 = vld [vmem:[#allocation2 + $0x628] sm:$0xff]
    %v3831 = vld [vmem:[#allocation2 + $0x630] sm:$0xff]
    %v3832 = vld [vmem:[#allocation2 + $0x638] sm:$0xf]
    %v3833 = vld [vmem:[#allocation2 + $0x63c] sm:$0xff]
    %v3834 = vld [vmem:[#allocation2 + $0x644] sm:$0xff]
    %v3835 = vld [vmem:[#allocation2 + $0x64c] sm:$0xff]
    %v3836 = vld [vmem:[#allocation2 + $0x654] sm:$0xf]
    %v3837 = vld [vmem:[#allocation2 + $0x658] sm:$0xff]
    %v3838 = vld [vmem:[#allocation2 + $0x660] sm:$0xff]
    %v3839 = vld [vmem:[#allocation2 + $0x668] sm:$0xff]
    %v3840 = vld [vmem:[#allocation2 + $0x670] sm:$0xf]
    %v3841 = vld [vmem:[#allocation2 + $0x674] sm:$0xff]
    %v3842 = vld [vmem:[#allocation2 + $0x67c] sm:$0xff]
    %v3843 = vld [vmem:[#allocation2 + $0x684] sm:$0xff]
    %v3844 = vld [vmem:[#allocation2 + $0x68c] sm:$0xf]
    %v3845 = vld [vmem:[#allocation2 + $0x690] sm:$0xff]
    %v3846 = vld [vmem:[#allocation2 + $0x698] sm:$0xff]
    %v3847 = vld [vmem:[#allocation2 + $0x6a0] sm:$0xff]
    %v3848 = vld [vmem:[#allocation2 + $0x6a8] sm:$0xf]
    %v3849 = vld [vmem:[#allocation2 + $0x6ac] sm:$0xff]
    %v3850 = vld [vmem:[#allocation2 + $0x6b4] sm:$0xff]
    %v3851 = vld [vmem:[#allocation2 + $0x6bc] sm:$0xff]
    %v3852 = vld [vmem:[#allocation2 + $0x6c4] sm:$0xf]
    %v3853 = vld [vmem:[#allocation2 + $0x6c8] sm:$0xff]
    %v3854 = vld [vmem:[#allocation2 + $0x6d0] sm:$0xff]
    %v3855 = vld [vmem:[#allocation2 + $0x6d8] sm:$0xff]
    %v3856 = vld [vmem:[#allocation2 + $0x6e0] sm:$0xf]
    %v3857 = vld [vmem:[#allocation2 + $0x6e4] sm:$0xff]
    %v3858 = vld [vmem:[#allocation2 + $0x6ec] sm:$0xff]
    %v3859 = vld [vmem:[#allocation2 + $0x6f4] sm:$0xff]
    %v3860 = vld [vmem:[#allocation2 + $0x6fc] sm:$0xf]
    %v3861 = vld [vmem:[#allocation2 + $0x700] sm:$0xff]
    %v3862 = vld [vmem:[#allocation2 + $0x708] sm:$0xff]
    %v3863 = vld [vmem:[#allocation2 + $0x710] sm:$0xff]
    %v3864 = vld [vmem:[#allocation2 + $0x718] sm:$0xf]
    %v3865 = vld [vmem:[#allocation2 + $0x71c] sm:$0xff]
    %v3866 = vld [vmem:[#allocation2 + $0x724] sm:$0xff]
    %v3867 = vld [vmem:[#allocation2 + $0x72c] sm:$0xff]
    %v3868 = vld [vmem:[#allocation2 + $0x734] sm:$0xf]
    %v3869 = vld [vmem:[#allocation2 + $0x738] sm:$0xff]
    %v3870 = vld [vmem:[#allocation2 + $0x740] sm:$0xff]
    %v3871 = vld [vmem:[#allocation2 + $0x748] sm:$0xff]
    %v3872 = vld [vmem:[#allocation2 + $0x750] sm:$0xf]
    %v3873 = vld [vmem:[#allocation2 + $0x754] sm:$0xff]
    %v3874 = vld [vmem:[#allocation2 + $0x75c] sm:$0xff]
    %v3875 = vld [vmem:[#allocation2 + $0x764] sm:$0xff]
    %v3876 = vld [vmem:[#allocation2 + $0x76c] sm:$0xf]
    %v3877 = vld [vmem:[#allocation2 + $0x770] sm:$0xff]
    %v3878 = vld [vmem:[#allocation2 + $0x778] sm:$0xff]
    %v3879 = vld [vmem:[#allocation2 + $0x780] sm:$0xff]
    %v3880 = vld [vmem:[#allocation2 + $0x788] sm:$0xf]
    %v3881 = vld [vmem:[#allocation2 + $0x78c] sm:$0xff]
    %v3882 = vld [vmem:[#allocation2 + $0x794] sm:$0xff]
    %v3883 = vld [vmem:[#allocation2 + $0x79c] sm:$0xff]
    %v3884 = vld [vmem:[#allocation2 + $0x7a4] sm:$0xf]
    %v3885 = vld [vmem:[#allocation2 + $0x7a8] sm:$0xff]
    %v3886 = vld [vmem:[#allocation2 + $0x7b0] sm:$0xff]
    %v3887 = vld [vmem:[#allocation2 + $0x7b8] sm:$0xff]
    %v3888 = vld [vmem:[#allocation2 + $0x7c0] sm:$0xf]
    %v3889 = vld [vmem:[#allocation2 + $0x7c4] sm:$0xff]
    %v3890 = vld [vmem:[#allocation2 + $0x7cc] sm:$0xff]
    %v3891 = vld [vmem:[#allocation2 + $0x7d4] sm:$0xff]
    %v3892 = vld [vmem:[#allocation2 + $0x7dc] sm:$0xf]
    %v3893 = vld [vmem:[#allocation2 + $0x7e0] sm:$0xff]
    %v3894 = vld [vmem:[#allocation2 + $0x7e8] sm:$0xff]
    %v3895 = vld [vmem:[#allocation2 + $0x7f0] sm:$0xff]
    %v3896 = vld [vmem:[#allocation2 + $0x7f8] sm:$0xf]
    %v3897 = vld [vmem:[#allocation2 + $0x7fc] sm:$0xff]
    %v3898 = vld [vmem:[#allocation2 + $0x804] sm:$0xff]
    %v3899 = vld [vmem:[#allocation2 + $0x80c] sm:$0xff]
    %v3900 = vld [vmem:[#allocation2 + $0x814] sm:$0xf]
    %v3901 = vld [vmem:[#allocation2 + $0x818] sm:$0xff]
    %v3902 = vld [vmem:[#allocation2 + $0x820] sm:$0xff]
    %v3903 = vld [vmem:[#allocation2 + $0x828] sm:$0xff]
    %v3904 = vld [vmem:[#allocation2 + $0x830] sm:$0xf]
    %v3905 = vld [vmem:[#allocation2 + $0x834] sm:$0xff]
    %v3906 = vld [vmem:[#allocation2 + $0x83c] sm:$0xff]
    %v3907 = vld [vmem:[#allocation2 + $0x844] sm:$0xff]
    %v3908 = vld [vmem:[#allocation2 + $0x84c] sm:$0xf]
    %v3909 = vld [vmem:[#allocation2 + $0x850] sm:$0xff]
    %v3910 = vld [vmem:[#allocation2 + $0x858] sm:$0xff]
    %v3911 = vld [vmem:[#allocation2 + $0x860] sm:$0xff]
    %v3912 = vld [vmem:[#allocation2 + $0x868] sm:$0xf]
    %v3913 = vld [vmem:[#allocation2 + $0x86c] sm:$0xff]
    %v3914 = vld [vmem:[#allocation2 + $0x874] sm:$0xff]
    %v3915 = vld [vmem:[#allocation2 + $0x87c] sm:$0xff]
    %v3916 = vld [vmem:[#allocation2 + $0x884] sm:$0xf]
    %v3917 = vld [vmem:[#allocation2 + $0x888] sm:$0xff]
    %v3918 = vld [vmem:[#allocation2 + $0x890] sm:$0xff]
    %v3919 = vld [vmem:[#allocation2 + $0x898] sm:$0xff]
    %v3920 = vld [vmem:[#allocation2 + $0x8a0] sm:$0xf]
    %v3921 = vld [vmem:[#allocation2 + $0x8a4] sm:$0xff]
    %v3922 = vld [vmem:[#allocation2 + $0x8ac] sm:$0xff]
    %v3923 = vld [vmem:[#allocation2 + $0x8b4] sm:$0xff]
    %v3924 = vld [vmem:[#allocation2 + $0x8bc] sm:$0xf]
    %v3925 = vld [vmem:[#allocation2 + $0x8c0] sm:$0xff]
    %v3926 = vld [vmem:[#allocation2 + $0x8c8] sm:$0xff]
    %v3927 = vld [vmem:[#allocation2 + $0x8d0] sm:$0xff]
    %v3928 = vld [vmem:[#allocation2 + $0x8d8] sm:$0xf]
    %v3929 = vld [vmem:[#allocation2 + $0x8dc] sm:$0xff]
    %v3930 = vld [vmem:[#allocation2 + $0x8e4] sm:$0xff]
    %v3931 = vld [vmem:[#allocation2 + $0x8ec] sm:$0xff]
    %v3932 = vld [vmem:[#allocation2 + $0x8f4] sm:$0xf]
    %v3933 = vld [vmem:[#allocation2 + $0x8f8] sm:$0xff]
    %v3934 = vld [vmem:[#allocation2 + $0x900] sm:$0xff]
    %v3935 = vld [vmem:[#allocation2 + $0x908] sm:$0xff]
    %v3936 = vld [vmem:[#allocation2 + $0x910] sm:$0xf]
    %v3937 = vld [vmem:[#allocation2 + $0x914] sm:$0xff]
    %v3938 = vld [vmem:[#allocation2 + $0x91c] sm:$0xff]
    %v3939 = vld [vmem:[#allocation2 + $0x924] sm:$0xff]
    %v3940 = vld [vmem:[#allocation2 + $0x92c] sm:$0xf]
    %v3941 = vld [vmem:[#allocation2 + $0x930] sm:$0xff]
    %v3942 = vld [vmem:[#allocation2 + $0x938] sm:$0xff]
    %v3943 = vld [vmem:[#allocation2 + $0x940] sm:$0xff]
    %v3944 = vld [vmem:[#allocation2 + $0x948] sm:$0xf]
    %v3945 = vld [vmem:[#allocation2 + $0x94c] sm:$0xff]
    %v3946 = vld [vmem:[#allocation2 + $0x954] sm:$0xff]
    %v3947 = vld [vmem:[#allocation2 + $0x95c] sm:$0xff]
    %v3948 = vld [vmem:[#allocation2 + $0x964] sm:$0xf]
    %v3949 = vld [vmem:[#allocation2 + $0x968] sm:$0xff]
    %v3950 = vld [vmem:[#allocation2 + $0x970] sm:$0xff]
    %v3951 = vld [vmem:[#allocation2 + $0x978] sm:$0xff]
    %v3952 = vld [vmem:[#allocation2 + $0x980] sm:$0xf]
    %v3953 = vld [vmem:[#allocation2 + $0x984] sm:$0xff]
    %v3954 = vld [vmem:[#allocation2 + $0x98c] sm:$0xff]
    %v3955 = vld [vmem:[#allocation2 + $0x994] sm:$0xff]
    %v3956 = vld [vmem:[#allocation2 + $0x99c] sm:$0xf]
    %v3957 = vld [vmem:[#allocation2 + $0x9a0] sm:$0xff]
    %v3958 = vld [vmem:[#allocation2 + $0x9a8] sm:$0xff]
    %v3959 = vld [vmem:[#allocation2 + $0x9b0] sm:$0xff]
    %v3960 = vld [vmem:[#allocation2 + $0x9b8] sm:$0xf]
    %v3961 = vld [vmem:[#allocation2 + $0x9bc] sm:$0xff]
    %v3962 = vld [vmem:[#allocation2 + $0x9c4] sm:$0xff]
    %v3963 = vld [vmem:[#allocation2 + $0x9cc] sm:$0xff]
    %v3964 = vld [vmem:[#allocation2 + $0x9d4] sm:$0xf]
    %v3965 = vld [vmem:[#allocation2 + $0x9d8] sm:$0xff]
    %v3966 = vld [vmem:[#allocation2 + $0x9e0] sm:$0xff]
    %v3967 = vld [vmem:[#allocation2 + $0x9e8] sm:$0xff]
    %v3968 = vld [vmem:[#allocation2 + $0x9f0] sm:$0xf]
    %v3969 = vld [vmem:[#allocation2 + $0x9f4] sm:$0xff]
    %v3970 = vld [vmem:[#allocation2 + $0x9fc] sm:$0xff]
    %v3971 = vld [vmem:[#allocation2 + $0xa04] sm:$0xff]
    %v3972 = vld [vmem:[#allocation2 + $0xa0c] sm:$0xf]
    %v3973 = vld [vmem:[#allocation2 + $0xa10] sm:$0xff]
    %v3974 = vld [vmem:[#allocation2 + $0xa18] sm:$0xff]
    %v3975 = vld [vmem:[#allocation2 + $0xa20] sm:$0xff]
    %v3976 = vld [vmem:[#allocation2 + $0xa28] sm:$0xf]
    %v3977 = vld [vmem:[#allocation2 + $0xa2c] sm:$0xff]
    %v3978 = vld [vmem:[#allocation2 + $0xa34] sm:$0xff]
    %v3979 = vld [vmem:[#allocation2 + $0xa3c] sm:$0xff]
    %v3980 = vld [vmem:[#allocation2 + $0xa44] sm:$0xf]
    %v3981 = vld [vmem:[#allocation2 + $0xa48] sm:$0xff]
    %v3982 = vld [vmem:[#allocation2 + $0xa50] sm:$0xff]
    %v3983 = vld [vmem:[#allocation2 + $0xa58] sm:$0xff]
    %v3984 = vld [vmem:[#allocation2 + $0xa60] sm:$0xf]
    %v3985 = vld [vmem:[#allocation2 + $0xa64] sm:$0xff]
    %v3986 = vld [vmem:[#allocation2 + $0xa6c] sm:$0xff]
    %v3987 = vld [vmem:[#allocation2 + $0xa74] sm:$0xff]
    %v3988 = vld [vmem:[#allocation2 + $0xa7c] sm:$0xf]
    %v3989 = vld [vmem:[#allocation2 + $0xa80] sm:$0xff]
    %v3990 = vld [vmem:[#allocation2 + $0xa88] sm:$0xff]
    %v3991 = vld [vmem:[#allocation2 + $0xa90] sm:$0xff]
    %v3992 = vld [vmem:[#allocation2 + $0xa98] sm:$0xf]
    %v3993 = vld [vmem:[#allocation2 + $0xa9c] sm:$0xff]
    %v3994 = vld [vmem:[#allocation2 + $0xaa4] sm:$0xff]
    %v3995 = vld [vmem:[#allocation2 + $0xaac] sm:$0xff]
    %v3996 = vld [vmem:[#allocation2 + $0xab4] sm:$0xf]
    %v3997 = vld [vmem:[#allocation2 + $0xab8] sm:$0xff]
    %v3998 = vld [vmem:[#allocation2 + $0xac0] sm:$0xff]
    %v3999 = vld [vmem:[#allocation2 + $0xac8] sm:$0xff]
    %v4000 = vld [vmem:[#allocation2 + $0xad0] sm:$0xf]
    %v4001 = vld [vmem:[#allocation2 + $0xad4] sm:$0xff]
    %v4002 = vld [vmem:[#allocation2 + $0xadc] sm:$0xff]
    %v4003 = vld [vmem:[#allocation2 + $0xae4] sm:$0xff]
    %v4004 = vld [vmem:[#allocation2 + $0xaec] sm:$0xf]
    %v4005 = vld [vmem:[#allocation2 + $0xaf0] sm:$0xff]
    %v4006 = vld [vmem:[#allocation2 + $0xaf8] sm:$0xff]
    %v4007 = vld [vmem:[#allocation2 + $0xb00] sm:$0xff]
    %v4008 = vld [vmem:[#allocation2 + $0xb08] sm:$0xf]
    %v4009 = vld [vmem:[#allocation2 + $0xb0c] sm:$0xff]
    %v4010 = vld [vmem:[#allocation2 + $0xb14] sm:$0xff]
    %v4011 = vld [vmem:[#allocation2 + $0xb1c] sm:$0xff]
    %v4012 = vld [vmem:[#allocation2 + $0xb24] sm:$0xf]
    %v4013 = vld [vmem:[#allocation2 + $0xb28] sm:$0xff]
    %v4014 = vld [vmem:[#allocation2 + $0xb30] sm:$0xff]
    %v4015 = vld [vmem:[#allocation2 + $0xb38] sm:$0xff]
    %v4016 = vld [vmem:[#allocation2 + $0xb40] sm:$0xf]
    %v4017 = vld [vmem:[#allocation2 + $0xb44] sm:$0xff]
    %v4018 = vld [vmem:[#allocation2 + $0xb4c] sm:$0xff]
    %v4019 = vld [vmem:[#allocation2 + $0xb54] sm:$0xff]
    %v4020 = vld [vmem:[#allocation2 + $0xb5c] sm:$0xf]
    %v4021 = vld [vmem:[#allocation2 + $0xb60] sm:$0xff]
    %v4022 = vld [vmem:[#allocation2 + $0xb68] sm:$0xff]
    %v4023 = vld [vmem:[#allocation2 + $0xb70] sm:$0xff]
    %v4024 = vld [vmem:[#allocation2 + $0xb78] sm:$0xf]
    %v4025 = vld [vmem:[#allocation2 + $0xb7c] sm:$0xff]
    %v4026 = vld [vmem:[#allocation2 + $0xb84] sm:$0xff]
    %v4027 = vld [vmem:[#allocation2 + $0xb8c] sm:$0xff]
    %v4028 = vld [vmem:[#allocation2 + $0xb94] sm:$0xf]
    %v4029 = vld [vmem:[#allocation2 + $0xb98] sm:$0xff]
    %v4030 = vld [vmem:[#allocation2 + $0xba0] sm:$0xff]
    %v4031 = vld [vmem:[#allocation2 + $0xba8] sm:$0xff]
    %v4032 = vld [vmem:[#allocation2 + $0xbb0] sm:$0xf]
    %v4033 = vld [vmem:[#allocation2 + $0xbb4] sm:$0xff]
    %v4034 = vld [vmem:[#allocation2 + $0xbbc] sm:$0xff]
    %v4035 = vld [vmem:[#allocation2 + $0xbc4] sm:$0xff]
    %v4036 = vld [vmem:[#allocation2 + $0xbcc] sm:$0xf]
    %v4037 = vld [vmem:[#allocation2 + $0xbd0] sm:$0xff]
    %v4038 = vld [vmem:[#allocation2 + $0xbd8] sm:$0xff]
    %v4039 = vld [vmem:[#allocation2 + $0xbe0] sm:$0xff]
    %v4040 = vld [vmem:[#allocation2 + $0xbe8] sm:$0xf]
    %v4041 = vld [vmem:[#allocation2 + $0xbec] sm:$0xff]
    %v4042 = vld [vmem:[#allocation2 + $0xbf4] sm:$0xff]
    %v4043 = vld [vmem:[#allocation2 + $0xbfc] sm:$0xff]
    %v4044 = vld [vmem:[#allocation2 + $0xc04] sm:$0xf]
    %v4045 = vld [vmem:[#allocation2 + $0xc08] sm:$0xff]
    %v4046 = vld [vmem:[#allocation2 + $0xc10] sm:$0xff]
    %v4047 = vld [vmem:[#allocation2 + $0xc18] sm:$0xff]
    %v4048 = vld [vmem:[#allocation2 + $0xc20] sm:$0xf]
    %v4049 = vld [vmem:[#allocation2 + $0xc24] sm:$0xff]
    %v4050 = vld [vmem:[#allocation2 + $0xc2c] sm:$0xff]
    %v4051 = vld [vmem:[#allocation2 + $0xc34] sm:$0xff]
    %v4052 = vld [vmem:[#allocation2 + $0xc3c] sm:$0xf]
    %v4053 = vld [vmem:[#allocation2 + $0xc40] sm:$0xff]
    %v4054 = vld [vmem:[#allocation2 + $0xc48] sm:$0xff]
    %v4055 = vld [vmem:[#allocation2 + $0xc50] sm:$0xff]
    %v4056 = vld [vmem:[#allocation2 + $0xc58] sm:$0xf]
    %v4057 = vld [vmem:[#allocation2 + $0xc5c] sm:$0xff]
    %v4058 = vld [vmem:[#allocation2 + $0xc64] sm:$0xff]
    %v4059 = vld [vmem:[#allocation2 + $0xc6c] sm:$0xff]
    %v4060 = vld [vmem:[#allocation2 + $0xc74] sm:$0xf]
    %v4061 = vld [vmem:[#allocation2 + $0xc78] sm:$0xff]
    %v4062 = vld [vmem:[#allocation2 + $0xc80] sm:$0xff]
    %v4063 = vld [vmem:[#allocation2 + $0xc88] sm:$0xff]
    %v4064 = vld [vmem:[#allocation2 + $0xc90] sm:$0xf]
    %v4065 = vld [vmem:[#allocation2 + $0xc94] sm:$0xff]
    %v4066 = vld [vmem:[#allocation2 + $0xc9c] sm:$0xff]
    %v4067 = vld [vmem:[#allocation2 + $0xca4] sm:$0xff]
    %v4068 = vld [vmem:[#allocation2 + $0xcac] sm:$0xf]
    %v4069 = vld [vmem:[#allocation2 + $0xcb0] sm:$0xff]
    %v4070 = vld [vmem:[#allocation2 + $0xcb8] sm:$0xff]
    %v4071 = vld [vmem:[#allocation2 + $0xcc0] sm:$0xff]
    %v4072 = vld [vmem:[#allocation2 + $0xcc8] sm:$0xf]
    %v4073 = vld [vmem:[#allocation2 + $0xccc] sm:$0xff]
    %v4074 = vld [vmem:[#allocation2 + $0xcd4] sm:$0xff]
    %v4075 = vld [vmem:[#allocation2 + $0xcdc] sm:$0xff]
    %v4076 = vld [vmem:[#allocation2 + $0xce4] sm:$0xf]
    %v4077 = vld [vmem:[#allocation2 + $0xce8] sm:$0xff]
    %v4078 = vld [vmem:[#allocation2 + $0xcf0] sm:$0xff]
    %v4079 = vld [vmem:[#allocation2 + $0xcf8] sm:$0xff]
    %v4080 = vld [vmem:[#allocation2 + $0xd00] sm:$0xf]
    %v4081 = vld [vmem:[#allocation2 + $0xd04] sm:$0xff]
    %v4082 = vld [vmem:[#allocation2 + $0xd0c] sm:$0xff]
    %v4083 = vld [vmem:[#allocation2 + $0xd14] sm:$0xff]
    %v4084 = vld [vmem:[#allocation2 + $0xd1c] sm:$0xf]
    %v4085 = vld [vmem:[#allocation2 + $0xd20] sm:$0xff]
    %v4086 = vld [vmem:[#allocation2 + $0xd28] sm:$0xff]
    %v4087 = vld [vmem:[#allocation2 + $0xd30] sm:$0xff]
    %v4088 = vld [vmem:[#allocation2 + $0xd38] sm:$0xf]
    %v4089 = vld [vmem:[#allocation2 + $0xd3c] sm:$0xff]
    %v4090 = vld [vmem:[#allocation2 + $0xd44] sm:$0xff]
    %v4091 = vld [vmem:[#allocation2 + $0xd4c] sm:$0xff]
    %v4092 = vld [vmem:[#allocation2 + $0xd54] sm:$0xf]
    %v4093 = vld [vmem:[#allocation2 + $0xd58] sm:$0xff]
    %v4094 = vld [vmem:[#allocation2 + $0xd60] sm:$0xff]
    %v4095 = vld [vmem:[#allocation2 + $0xd68] sm:$0xff]
    %v4096 = vld [vmem:[#allocation2 + $0xd70] sm:$0xf]
    %v4097 = vld [vmem:[#allocation2 + $0xd74] sm:$0xff]
    %v4098 = vld [vmem:[#allocation2 + $0xd7c] sm:$0xff]
    %v4099 = vld [vmem:[#allocation2 + $0xd84] sm:$0xff]
    %v4100 = vld [vmem:[#allocation2 + $0xd8c] sm:$0xf]
    %v4101 = vld [vmem:[#allocation2 + $0xd90] sm:$0xff]
    %v4102 = vld [vmem:[#allocation2 + $0xd98] sm:$0xff]
    %v4103 = vld [vmem:[#allocation2 + $0xda0] sm:$0xff]
    %v4104 = vld [vmem:[#allocation2 + $0xda8] sm:$0xf]
    %v4105 = vld [vmem:[#allocation2 + $0xdac] sm:$0xff]
    %v4106 = vld [vmem:[#allocation2 + $0xdb4] sm:$0xff]
    %v4107 = vld [vmem:[#allocation2 + $0xdbc] sm:$0xff]
    %v4108 = vld [vmem:[#allocation2 + $0xdc4] sm:$0xf]
    %v4109 = vld [vmem:[#allocation2 + $0xdc8] sm:$0xff]
    %v4110 = vld [vmem:[#allocation2 + $0xdd0] sm:$0xff]
    %v4111 = vld [vmem:[#allocation2 + $0xdd8] sm:$0xff]
    %v4112 = vld [vmem:[#allocation2 + $0xde0] sm:$0xf]
    %v4113 = vld [vmem:[#allocation2 + $0xde4] sm:$0xff]
    %v4114 = vld [vmem:[#allocation2 + $0xdec] sm:$0xff]
    %v4115 = vld [vmem:[#allocation2 + $0xdf4] sm:$0xff]
    %v4116 = vld [vmem:[#allocation2 + $0xdfc] sm:$0xf]
    %v4117 = vld [vmem:[#allocation26] sm:$0xff]
    %v4119 = vperm.slane %v4117, 0
    %v4120 = vperm.slane %v4117, 1
    %v4121 = vperm.slane %v4117, 2
    %v4122 = vperm.slane %v4117, 3
    %v4123 = vperm.slane %v4117, 4
    %v4124 = vperm.slane %v4117, 5
    %v4125 = vperm.slane %v4117, 6
    %v4645 = vunpack.c.l.b16 %v3605
    %v4646 = vunpack.c.h.b16 %v3605
    %v4647 = vunpack.c.l.b16 %v3606
    %v4648 = vunpack.c.h.b16 %v3606
    %v4649 = vunpack.c.l.b16 %v3607
    %v4650 = vunpack.c.h.b16 %v3607
    %v4651 = vunpack.c.l.b16 %v3608
    %v4652 = vunpack.c.l.b16 %v3609
    %v4653 = vunpack.c.h.b16 %v3609
    %v4654 = vunpack.c.l.b16 %v3610
    %v4655 = vunpack.c.h.b16 %v3610
    %v4656 = vunpack.c.l.b16 %v3611
    %v4657 = vunpack.c.h.b16 %v3611
    %v4658 = vunpack.c.l.b16 %v3612
    %v4659 = vunpack.c.l.b16 %v3613
    %v4660 = vunpack.c.h.b16 %v3613
    %v4661 = vunpack.c.l.b16 %v3614
    %v4662 = vunpack.c.h.b16 %v3614
    %v4663 = vunpack.c.l.b16 %v3615
    %v4664 = vunpack.c.h.b16 %v3615
    %v4665 = vunpack.c.l.b16 %v3616
    %v4666 = vunpack.c.l.b16 %v3617
    %v4667 = vunpack.c.h.b16 %v3617
    %v4668 = vunpack.c.l.b16 %v3618
    %v4669 = vunpack.c.h.b16 %v3618
    %v4670 = vunpack.c.l.b16 %v3619
    %v4671 = vunpack.c.h.b16 %v3619
    %v4672 = vunpack.c.l.b16 %v3620
    %v4673 = vunpack.c.l.b16 %v3621
    %v4674 = vunpack.c.h.b16 %v3621
    %v4675 = vunpack.c.l.b16 %v3622
    %v4676 = vunpack.c.h.b16 %v3622
    %v4677 = vunpack.c.l.b16 %v3623
    %v4678 = vunpack.c.h.b16 %v3623
    %v4679 = vunpack.c.l.b16 %v3624
    %v4680 = vunpack.c.l.b16 %v3625
    %v4681 = vunpack.c.h.b16 %v3625
    %v4682 = vunpack.c.l.b16 %v3626
    %v4683 = vunpack.c.h.b16 %v3626
    %v4684 = vunpack.c.l.b16 %v3627
    %v4685 = vunpack.c.h.b16 %v3627
    %v4686 = vunpack.c.l.b16 %v3628
    %v4687 = vunpack.c.l.b16 %v3629
    %v4688 = vunpack.c.h.b16 %v3629
    %v4689 = vunpack.c.l.b16 %v3630
    %v4690 = vunpack.c.h.b16 %v3630
    %v4691 = vunpack.c.l.b16 %v3631
    %v4692 = vunpack.c.h.b16 %v3631
    %v4693 = vunpack.c.l.b16 %v3632
    %v4694 = vunpack.c.l.b16 %v3633
    %v4695 = vunpack.c.h.b16 %v3633
    %v4696 = vunpack.c.l.b16 %v3634
    %v4697 = vunpack.c.h.b16 %v3634
    %v4698 = vunpack.c.l.b16 %v3635
    %v4699 = vunpack.c.h.b16 %v3635
    %v4700 = vunpack.c.l.b16 %v3636
    %v4701 = vunpack.c.l.b16 %v3637
    %v4702 = vunpack.c.h.b16 %v3637
    %v4703 = vunpack.c.l.b16 %v3638
    %v4704 = vunpack.c.h.b16 %v3638
    %v4705 = vunpack.c.l.b16 %v3639
    %v4706 = vunpack.c.h.b16 %v3639
    %v4707 = vunpack.c.l.b16 %v3640
    %v4708 = vunpack.c.l.b16 %v3641
    %v4709 = vunpack.c.h.b16 %v3641
    %v4710 = vunpack.c.l.b16 %v3642
    %v4711 = vunpack.c.h.b16 %v3642
    %v4712 = vunpack.c.l.b16 %v3643
    %v4713 = vunpack.c.h.b16 %v3643
    %v4714 = vunpack.c.l.b16 %v3644
    %v4715 = vunpack.c.l.b16 %v3645
    %v4716 = vunpack.c.h.b16 %v3645
    %v4717 = vunpack.c.l.b16 %v3646
    %v4718 = vunpack.c.h.b16 %v3646
    %v4719 = vunpack.c.l.b16 %v3647
    %v4720 = vunpack.c.h.b16 %v3647
    %v4721 = vunpack.c.l.b16 %v3648
    %v4722 = vunpack.c.l.b16 %v3649
    %v4723 = vunpack.c.h.b16 %v3649
    %v4724 = vunpack.c.l.b16 %v3650
    %v4725 = vunpack.c.h.b16 %v3650
    %v4726 = vunpack.c.l.b16 %v3651
    %v4727 = vunpack.c.h.b16 %v3651
    %v4728 = vunpack.c.l.b16 %v3652
    %v4729 = vunpack.c.l.b16 %v3653
    %v4730 = vunpack.c.h.b16 %v3653
    %v4731 = vunpack.c.l.b16 %v3654
    %v4732 = vunpack.c.h.b16 %v3654
    %v4733 = vunpack.c.l.b16 %v3655
    %v4734 = vunpack.c.h.b16 %v3655
    %v4735 = vunpack.c.l.b16 %v3656
    %v4736 = vunpack.c.l.b16 %v3657
    %v4737 = vunpack.c.h.b16 %v3657
    %v4738 = vunpack.c.l.b16 %v3658
    %v4739 = vunpack.c.h.b16 %v3658
    %v4740 = vunpack.c.l.b16 %v3659
    %v4741 = vunpack.c.h.b16 %v3659
    %v4742 = vunpack.c.l.b16 %v3660
    %v4743 = vunpack.c.l.b16 %v3661
    %v4744 = vunpack.c.h.b16 %v3661
    %v4745 = vunpack.c.l.b16 %v3662
    %v4746 = vunpack.c.h.b16 %v3662
    %v4747 = vunpack.c.l.b16 %v3663
    %v4748 = vunpack.c.h.b16 %v3663
    %v4749 = vunpack.c.l.b16 %v3664
    %v4750 = vunpack.c.l.b16 %v3665
    %v4751 = vunpack.c.h.b16 %v3665
    %v4752 = vunpack.c.l.b16 %v3666
    %v4753 = vunpack.c.h.b16 %v3666
    %v4754 = vunpack.c.l.b16 %v3667
    %v4755 = vunpack.c.h.b16 %v3667
    %v4756 = vunpack.c.l.b16 %v3668
    %v4757 = vunpack.c.l.b16 %v3669
    %v4758 = vunpack.c.h.b16 %v3669
    %v4759 = vunpack.c.l.b16 %v3670
    %v4760 = vunpack.c.h.b16 %v3670
    %v4761 = vunpack.c.l.b16 %v3671
    %v4762 = vunpack.c.h.b16 %v3671
    %v4763 = vunpack.c.l.b16 %v3672
    %v4764 = vunpack.c.l.b16 %v3673
    %v4765 = vunpack.c.h.b16 %v3673
    %v4766 = vunpack.c.l.b16 %v3674
    %v4767 = vunpack.c.h.b16 %v3674
    %v4768 = vunpack.c.l.b16 %v3675
    %v4769 = vunpack.c.h.b16 %v3675
    %v4770 = vunpack.c.l.b16 %v3676
    %v4771 = vunpack.c.l.b16 %v3677
    %v4772 = vunpack.c.h.b16 %v3677
    %v4773 = vunpack.c.l.b16 %v3678
    %v4774 = vunpack.c.h.b16 %v3678
    %v4775 = vunpack.c.l.b16 %v3679
    %v4776 = vunpack.c.h.b16 %v3679
    %v4777 = vunpack.c.l.b16 %v3680
    %v4778 = vunpack.c.l.b16 %v3681
    %v4779 = vunpack.c.h.b16 %v3681
    %v4780 = vunpack.c.l.b16 %v3682
    %v4781 = vunpack.c.h.b16 %v3682
    %v4782 = vunpack.c.l.b16 %v3683
    %v4783 = vunpack.c.h.b16 %v3683
    %v4784 = vunpack.c.l.b16 %v3684
    %v4785 = vunpack.c.l.b16 %v3685
    %v4786 = vunpack.c.h.b16 %v3685
    %v4787 = vunpack.c.l.b16 %v3686
    %v4788 = vunpack.c.h.b16 %v3686
    %v4789 = vunpack.c.l.b16 %v3687
    %v4790 = vunpack.c.h.b16 %v3687
    %v4791 = vunpack.c.l.b16 %v3688
    %v4792 = vunpack.c.l.b16 %v3689
    %v4793 = vunpack.c.h.b16 %v3689
    %v4794 = vunpack.c.l.b16 %v3690
    %v4795 = vunpack.c.h.b16 %v3690
    %v4796 = vunpack.c.l.b16 %v3691
    %v4797 = vunpack.c.h.b16 %v3691
    %v4798 = vunpack.c.l.b16 %v3692
    %v4799 = vunpack.c.l.b16 %v3693
    %v4800 = vunpack.c.h.b16 %v3693
    %v4801 = vunpack.c.l.b16 %v3694
    %v4802 = vunpack.c.h.b16 %v3694
    %v4803 = vunpack.c.l.b16 %v3695
    %v4804 = vunpack.c.h.b16 %v3695
    %v4805 = vunpack.c.l.b16 %v3696
    %v4806 = vunpack.c.l.b16 %v3697
    %v4807 = vunpack.c.h.b16 %v3697
    %v4808 = vunpack.c.l.b16 %v3698
    %v4809 = vunpack.c.h.b16 %v3698
    %v4810 = vunpack.c.l.b16 %v3699
    %v4811 = vunpack.c.h.b16 %v3699
    %v4812 = vunpack.c.l.b16 %v3700
    %v4813 = vunpack.c.l.b16 %v3701
    %v4814 = vunpack.c.h.b16 %v3701
    %v4815 = vunpack.c.l.b16 %v3702
    %v4816 = vunpack.c.h.b16 %v3702
    %v4817 = vunpack.c.l.b16 %v3703
    %v4818 = vunpack.c.h.b16 %v3703
    %v4819 = vunpack.c.l.b16 %v3704
    %v4820 = vunpack.c.l.b16 %v3705
    %v4821 = vunpack.c.h.b16 %v3705
    %v4822 = vunpack.c.l.b16 %v3706
    %v4823 = vunpack.c.h.b16 %v3706
    %v4824 = vunpack.c.l.b16 %v3707
    %v4825 = vunpack.c.h.b16 %v3707
    %v4826 = vunpack.c.l.b16 %v3708
    %v4827 = vunpack.c.l.b16 %v3709
    %v4828 = vunpack.c.h.b16 %v3709
    %v4829 = vunpack.c.l.b16 %v3710
    %v4830 = vunpack.c.h.b16 %v3710
    %v4831 = vunpack.c.l.b16 %v3711
    %v4832 = vunpack.c.h.b16 %v3711
    %v4833 = vunpack.c.l.b16 %v3712
    %v4834 = vunpack.c.l.b16 %v3713
    %v4835 = vunpack.c.h.b16 %v3713
    %v4836 = vunpack.c.l.b16 %v3714
    %v4837 = vunpack.c.h.b16 %v3714
    %v4838 = vunpack.c.l.b16 %v3715
    %v4839 = vunpack.c.h.b16 %v3715
    %v4840 = vunpack.c.l.b16 %v3716
    %v4841 = vunpack.c.l.b16 %v3717
    %v4842 = vunpack.c.h.b16 %v3717
    %v4843 = vunpack.c.l.b16 %v3718
    %v4844 = vunpack.c.h.b16 %v3718
    %v4845 = vunpack.c.l.b16 %v3719
    %v4846 = vunpack.c.h.b16 %v3719
    %v4847 = vunpack.c.l.b16 %v3720
    %v4848 = vunpack.c.l.b16 %v3721
    %v4849 = vunpack.c.h.b16 %v3721
    %v4850 = vunpack.c.l.b16 %v3722
    %v4851 = vunpack.c.h.b16 %v3722
    %v4852 = vunpack.c.l.b16 %v3723
    %v4853 = vunpack.c.h.b16 %v3723
    %v4854 = vunpack.c.l.b16 %v3724
    %v4855 = vunpack.c.l.b16 %v3725
    %v4856 = vunpack.c.h.b16 %v3725
    %v4857 = vunpack.c.l.b16 %v3726
    %v4858 = vunpack.c.h.b16 %v3726
    %v4859 = vunpack.c.l.b16 %v3727
    %v4860 = vunpack.c.h.b16 %v3727
    %v4861 = vunpack.c.l.b16 %v3728
    %v4862 = vunpack.c.l.b16 %v3729
    %v4863 = vunpack.c.h.b16 %v3729
    %v4864 = vunpack.c.l.b16 %v3730
    %v4865 = vunpack.c.h.b16 %v3730
    %v4866 = vunpack.c.l.b16 %v3731
    %v4867 = vunpack.c.h.b16 %v3731
    %v4868 = vunpack.c.l.b16 %v3732
    %v4869 = vunpack.c.l.b16 %v3733
    %v4870 = vunpack.c.h.b16 %v3733
    %v4871 = vunpack.c.l.b16 %v3734
    %v4872 = vunpack.c.h.b16 %v3734
    %v4873 = vunpack.c.l.b16 %v3735
    %v4874 = vunpack.c.h.b16 %v3735
    %v4875 = vunpack.c.l.b16 %v3736
    %v4876 = vunpack.c.l.b16 %v3737
    %v4877 = vunpack.c.h.b16 %v3737
    %v4878 = vunpack.c.l.b16 %v3738
    %v4879 = vunpack.c.h.b16 %v3738
    %v4880 = vunpack.c.l.b16 %v3739
    %v4881 = vunpack.c.h.b16 %v3739
    %v4882 = vunpack.c.l.b16 %v3740
    %v4883 = vunpack.c.l.b16 %v3741
    %v4884 = vunpack.c.h.b16 %v3741
    %v4885 = vunpack.c.l.b16 %v3742
    %v4886 = vunpack.c.h.b16 %v3742
    %v4887 = vunpack.c.l.b16 %v3743
    %v4888 = vunpack.c.h.b16 %v3743
    %v4889 = vunpack.c.l.b16 %v3744
    %v4890 = vunpack.c.l.b16 %v3745
    %v4891 = vunpack.c.h.b16 %v3745
    %v4892 = vunpack.c.l.b16 %v3746
    %v4893 = vunpack.c.h.b16 %v3746
    %v4894 = vunpack.c.l.b16 %v3747
    %v4895 = vunpack.c.h.b16 %v3747
    %v4896 = vunpack.c.l.b16 %v3748
    %v4897 = vunpack.c.l.b16 %v3749
    %v4898 = vunpack.c.h.b16 %v3749
    %v4899 = vunpack.c.l.b16 %v3750
    %v4900 = vunpack.c.h.b16 %v3750
    %v4901 = vunpack.c.l.b16 %v3751
    %v4902 = vunpack.c.h.b16 %v3751
    %v4903 = vunpack.c.l.b16 %v3752
    %v4904 = vunpack.c.l.b16 %v3753
    %v4905 = vunpack.c.h.b16 %v3753
    %v4906 = vunpack.c.l.b16 %v3754
    %v4907 = vunpack.c.h.b16 %v3754
    %v4908 = vunpack.c.l.b16 %v3755
    %v4909 = vunpack.c.h.b16 %v3755
    %v4910 = vunpack.c.l.b16 %v3756
    %v4911 = vunpack.c.l.b16 %v3757
    %v4912 = vunpack.c.h.b16 %v3757
    %v4913 = vunpack.c.l.b16 %v3758
    %v4914 = vunpack.c.h.b16 %v3758
    %v4915 = vunpack.c.l.b16 %v3759
    %v4916 = vunpack.c.h.b16 %v3759
    %v4917 = vunpack.c.l.b16 %v3760
    %v4918 = vunpack.c.l.b16 %v3761
    %v4919 = vunpack.c.h.b16 %v3761
    %v4920 = vunpack.c.l.b16 %v3762
    %v4921 = vunpack.c.h.b16 %v3762
    %v4922 = vunpack.c.l.b16 %v3763
    %v4923 = vunpack.c.h.b16 %v3763
    %v4924 = vunpack.c.l.b16 %v3764
    %v4925 = vunpack.c.l.b16 %v3765
    %v4926 = vunpack.c.h.b16 %v3765
    %v4927 = vunpack.c.l.b16 %v3766
    %v4928 = vunpack.c.h.b16 %v3766
    %v4929 = vunpack.c.l.b16 %v3767
    %v4930 = vunpack.c.h.b16 %v3767
    %v4931 = vunpack.c.l.b16 %v3768
    %v4932 = vunpack.c.l.b16 %v3769
    %v4933 = vunpack.c.h.b16 %v3769
    %v4934 = vunpack.c.l.b16 %v3770
    %v4935 = vunpack.c.h.b16 %v3770
    %v4936 = vunpack.c.l.b16 %v3771
    %v4937 = vunpack.c.h.b16 %v3771
    %v4938 = vunpack.c.l.b16 %v3772
    %v4939 = vunpack.c.l.b16 %v3773
    %v4940 = vunpack.c.h.b16 %v3773
    %v4941 = vunpack.c.l.b16 %v3774
    %v4942 = vunpack.c.h.b16 %v3774
    %v4943 = vunpack.c.l.b16 %v3775
    %v4944 = vunpack.c.h.b16 %v3775
    %v4945 = vunpack.c.l.b16 %v3776
    %v4946 = vunpack.c.l.b16 %v3777
    %v4947 = vunpack.c.h.b16 %v3777
    %v4948 = vunpack.c.l.b16 %v3778
    %v4949 = vunpack.c.h.b16 %v3778
    %v4950 = vunpack.c.l.b16 %v3779
    %v4951 = vunpack.c.h.b16 %v3779
    %v4952 = vunpack.c.l.b16 %v3780
    %v4953 = vunpack.c.l.b16 %v3781
    %v4954 = vunpack.c.h.b16 %v3781
    %v4955 = vunpack.c.l.b16 %v3782
    %v4956 = vunpack.c.h.b16 %v3782
    %v4957 = vunpack.c.l.b16 %v3783
    %v4958 = vunpack.c.h.b16 %v3783
    %v4959 = vunpack.c.l.b16 %v3784
    %v4960 = vunpack.c.l.b16 %v3785
    %v4961 = vunpack.c.h.b16 %v3785
    %v4962 = vunpack.c.l.b16 %v3786
    %v4963 = vunpack.c.h.b16 %v3786
    %v4964 = vunpack.c.l.b16 %v3787
    %v4965 = vunpack.c.h.b16 %v3787
    %v4966 = vunpack.c.l.b16 %v3788
    %v4967 = vunpack.c.l.b16 %v3789
    %v4968 = vunpack.c.h.b16 %v3789
    %v4969 = vunpack.c.l.b16 %v3790
    %v4970 = vunpack.c.h.b16 %v3790
    %v4971 = vunpack.c.l.b16 %v3791
    %v4972 = vunpack.c.h.b16 %v3791
    %v4973 = vunpack.c.l.b16 %v3792
    %v4974 = vunpack.c.l.b16 %v3793
    %v4975 = vunpack.c.h.b16 %v3793
    %v4976 = vunpack.c.l.b16 %v3794
    %v4977 = vunpack.c.h.b16 %v3794
    %v4978 = vunpack.c.l.b16 %v3795
    %v4979 = vunpack.c.h.b16 %v3795
    %v4980 = vunpack.c.l.b16 %v3796
    %v4981 = vunpack.c.l.b16 %v3797
    %v4982 = vunpack.c.h.b16 %v3797
    %v4983 = vunpack.c.l.b16 %v3798
    %v4984 = vunpack.c.h.b16 %v3798
    %v4985 = vunpack.c.l.b16 %v3799
    %v4986 = vunpack.c.h.b16 %v3799
    %v4987 = vunpack.c.l.b16 %v3800
    %v4988 = vunpack.c.l.b16 %v3801
    %v4989 = vunpack.c.h.b16 %v3801
    %v4990 = vunpack.c.l.b16 %v3802
    %v4991 = vunpack.c.h.b16 %v3802
    %v4992 = vunpack.c.l.b16 %v3803
    %v4993 = vunpack.c.h.b16 %v3803
    %v4994 = vunpack.c.l.b16 %v3804
    %v4995 = vunpack.c.l.b16 %v3805
    %v4996 = vunpack.c.h.b16 %v3805
    %v4997 = vunpack.c.l.b16 %v3806
    %v4998 = vunpack.c.h.b16 %v3806
    %v4999 = vunpack.c.l.b16 %v3807
    %v5000 = vunpack.c.h.b16 %v3807
    %v5001 = vunpack.c.l.b16 %v3808
    %v5002 = vunpack.c.l.b16 %v3809
    %v5003 = vunpack.c.h.b16 %v3809
    %v5004 = vunpack.c.l.b16 %v3810
    %v5005 = vunpack.c.h.b16 %v3810
    %v5006 = vunpack.c.l.b16 %v3811
    %v5007 = vunpack.c.h.b16 %v3811
    %v5008 = vunpack.c.l.b16 %v3812
    %v5009 = vunpack.c.l.b16 %v3813
    %v5010 = vunpack.c.h.b16 %v3813
    %v5011 = vunpack.c.l.b16 %v3814
    %v5012 = vunpack.c.h.b16 %v3814
    %v5013 = vunpack.c.l.b16 %v3815
    %v5014 = vunpack.c.h.b16 %v3815
    %v5015 = vunpack.c.l.b16 %v3816
    %v5016 = vunpack.c.l.b16 %v3817
    %v5017 = vunpack.c.h.b16 %v3817
    %v5018 = vunpack.c.l.b16 %v3818
    %v5019 = vunpack.c.h.b16 %v3818
    %v5020 = vunpack.c.l.b16 %v3819
    %v5021 = vunpack.c.h.b16 %v3819
    %v5022 = vunpack.c.l.b16 %v3820
    %v5023 = vunpack.c.l.b16 %v3821
    %v5024 = vunpack.c.h.b16 %v3821
    %v5025 = vunpack.c.l.b16 %v3822
    %v5026 = vunpack.c.h.b16 %v3822
    %v5027 = vunpack.c.l.b16 %v3823
    %v5028 = vunpack.c.h.b16 %v3823
    %v5029 = vunpack.c.l.b16 %v3824
    %v5030 = vunpack.c.l.b16 %v3825
    %v5031 = vunpack.c.h.b16 %v3825
    %v5032 = vunpack.c.l.b16 %v3826
    %v5033 = vunpack.c.h.b16 %v3826
    %v5034 = vunpack.c.l.b16 %v3827
    %v5035 = vunpack.c.h.b16 %v3827
    %v5036 = vunpack.c.l.b16 %v3828
    %v5037 = vunpack.c.l.b16 %v3829
    %v5038 = vunpack.c.h.b16 %v3829
    %v5039 = vunpack.c.l.b16 %v3830
    %v5040 = vunpack.c.h.b16 %v3830
    %v5041 = vunpack.c.l.b16 %v3831
    %v5042 = vunpack.c.h.b16 %v3831
    %v5043 = vunpack.c.l.b16 %v3832
    %v5044 = vunpack.c.l.b16 %v3833
    %v5045 = vunpack.c.h.b16 %v3833
    %v5046 = vunpack.c.l.b16 %v3834
    %v5047 = vunpack.c.h.b16 %v3834
    %v5048 = vunpack.c.l.b16 %v3835
    %v5049 = vunpack.c.h.b16 %v3835
    %v5050 = vunpack.c.l.b16 %v3836
    %v5051 = vunpack.c.l.b16 %v3837
    %v5052 = vunpack.c.h.b16 %v3837
    %v5053 = vunpack.c.l.b16 %v3838
    %v5054 = vunpack.c.h.b16 %v3838
    %v5055 = vunpack.c.l.b16 %v3839
    %v5056 = vunpack.c.h.b16 %v3839
    %v5057 = vunpack.c.l.b16 %v3840
    %v5058 = vunpack.c.l.b16 %v3841
    %v5059 = vunpack.c.h.b16 %v3841
    %v5060 = vunpack.c.l.b16 %v3842
    %v5061 = vunpack.c.h.b16 %v3842
    %v5062 = vunpack.c.l.b16 %v3843
    %v5063 = vunpack.c.h.b16 %v3843
    %v5064 = vunpack.c.l.b16 %v3844
    %v5065 = vunpack.c.l.b16 %v3845
    %v5066 = vunpack.c.h.b16 %v3845
    %v5067 = vunpack.c.l.b16 %v3846
    %v5068 = vunpack.c.h.b16 %v3846
    %v5069 = vunpack.c.l.b16 %v3847
    %v5070 = vunpack.c.h.b16 %v3847
    %v5071 = vunpack.c.l.b16 %v3848
    %v5072 = vunpack.c.l.b16 %v3849
    %v5073 = vunpack.c.h.b16 %v3849
    %v5074 = vunpack.c.l.b16 %v3850
    %v5075 = vunpack.c.h.b16 %v3850
    %v5076 = vunpack.c.l.b16 %v3851
    %v5077 = vunpack.c.h.b16 %v3851
    %v5078 = vunpack.c.l.b16 %v3852
    %v5079 = vunpack.c.l.b16 %v3853
    %v5080 = vunpack.c.h.b16 %v3853
    %v5081 = vunpack.c.l.b16 %v3854
    %v5082 = vunpack.c.h.b16 %v3854
    %v5083 = vunpack.c.l.b16 %v3855
    %v5084 = vunpack.c.h.b16 %v3855
    %v5085 = vunpack.c.l.b16 %v3856
    %v5086 = vunpack.c.l.b16 %v3857
    %v5087 = vunpack.c.h.b16 %v3857
    %v5088 = vunpack.c.l.b16 %v3858
    %v5089 = vunpack.c.h.b16 %v3858
    %v5090 = vunpack.c.l.b16 %v3859
    %v5091 = vunpack.c.h.b16 %v3859
    %v5092 = vunpack.c.l.b16 %v3860
    %v5093 = vunpack.c.l.b16 %v3861
    %v5094 = vunpack.c.h.b16 %v3861
    %v5095 = vunpack.c.l.b16 %v3862
    %v5096 = vunpack.c.h.b16 %v3862
    %v5097 = vunpack.c.l.b16 %v3863
    %v5098 = vunpack.c.h.b16 %v3863
    %v5099 = vunpack.c.l.b16 %v3864
    %v5100 = vunpack.c.l.b16 %v3865
    %v5101 = vunpack.c.h.b16 %v3865
    %v5102 = vunpack.c.l.b16 %v3866
    %v5103 = vunpack.c.h.b16 %v3866
    %v5104 = vunpack.c.l.b16 %v3867
    %v5105 = vunpack.c.h.b16 %v3867
    %v5106 = vunpack.c.l.b16 %v3868
    %v5107 = vunpack.c.l.b16 %v3869
    %v5108 = vunpack.c.h.b16 %v3869
    %v5109 = vunpack.c.l.b16 %v3870
    %v5110 = vunpack.c.h.b16 %v3870
    %v5111 = vunpack.c.l.b16 %v3871
    %v5112 = vunpack.c.h.b16 %v3871
    %v5113 = vunpack.c.l.b16 %v3872
    %v5114 = vunpack.c.l.b16 %v3873
    %v5115 = vunpack.c.h.b16 %v3873
    %v5116 = vunpack.c.l.b16 %v3874
    %v5117 = vunpack.c.h.b16 %v3874
    %v5118 = vunpack.c.l.b16 %v3875
    %v5119 = vunpack.c.h.b16 %v3875
    %v5120 = vunpack.c.l.b16 %v3876
    %v5121 = vunpack.c.l.b16 %v3877
    %v5122 = vunpack.c.h.b16 %v3877
    %v5123 = vunpack.c.l.b16 %v3878
    %v5124 = vunpack.c.h.b16 %v3878
    %v5125 = vunpack.c.l.b16 %v3879
    %v5126 = vunpack.c.h.b16 %v3879
    %v5127 = vunpack.c.l.b16 %v3880
    %v5128 = vunpack.c.l.b16 %v3881
    %v5129 = vunpack.c.h.b16 %v3881
    %v5130 = vunpack.c.l.b16 %v3882
    %v5131 = vunpack.c.h.b16 %v3882
    %v5132 = vunpack.c.l.b16 %v3883
    %v5133 = vunpack.c.h.b16 %v3883
    %v5134 = vunpack.c.l.b16 %v3884
    %v5135 = vunpack.c.l.b16 %v3885
    %v5136 = vunpack.c.h.b16 %v3885
    %v5137 = vunpack.c.l.b16 %v3886
    %v5138 = vunpack.c.h.b16 %v3886
    %v5139 = vunpack.c.l.b16 %v3887
    %v5140 = vunpack.c.h.b16 %v3887
    %v5141 = vunpack.c.l.b16 %v3888
    %v5142 = vunpack.c.l.b16 %v3889
    %v5143 = vunpack.c.h.b16 %v3889
    %v5144 = vunpack.c.l.b16 %v3890
    %v5145 = vunpack.c.h.b16 %v3890
    %v5146 = vunpack.c.l.b16 %v3891
    %v5147 = vunpack.c.h.b16 %v3891
    %v5148 = vunpack.c.l.b16 %v3892
    %v5149 = vunpack.c.l.b16 %v3893
    %v5150 = vunpack.c.h.b16 %v3893
    %v5151 = vunpack.c.l.b16 %v3894
    %v5152 = vunpack.c.h.b16 %v3894
    %v5153 = vunpack.c.l.b16 %v3895
    %v5154 = vunpack.c.h.b16 %v3895
    %v5155 = vunpack.c.l.b16 %v3896
    %v5156 = vunpack.c.l.b16 %v3897
    %v5157 = vunpack.c.h.b16 %v3897
    %v5158 = vunpack.c.l.b16 %v3898
    %v5159 = vunpack.c.h.b16 %v3898
    %v5160 = vunpack.c.l.b16 %v3899
    %v5161 = vunpack.c.h.b16 %v3899
    %v5162 = vunpack.c.l.b16 %v3900
    %v5163 = vunpack.c.l.b16 %v3901
    %v5164 = vunpack.c.h.b16 %v3901
    %v5165 = vunpack.c.l.b16 %v3902
    %v5166 = vunpack.c.h.b16 %v3902
    %v5167 = vunpack.c.l.b16 %v3903
    %v5168 = vunpack.c.h.b16 %v3903
    %v5169 = vunpack.c.l.b16 %v3904
    %v5170 = vunpack.c.l.b16 %v3905
    %v5171 = vunpack.c.h.b16 %v3905
    %v5172 = vunpack.c.l.b16 %v3906
    %v5173 = vunpack.c.h.b16 %v3906
    %v5174 = vunpack.c.l.b16 %v3907
    %v5175 = vunpack.c.h.b16 %v3907
    %v5176 = vunpack.c.l.b16 %v3908
    %v5177 = vunpack.c.l.b16 %v3909
    %v5178 = vunpack.c.h.b16 %v3909
    %v5179 = vunpack.c.l.b16 %v3910
    %v5180 = vunpack.c.h.b16 %v3910
    %v5181 = vunpack.c.l.b16 %v3911
    %v5182 = vunpack.c.h.b16 %v3911
    %v5183 = vunpack.c.l.b16 %v3912
    %v5184 = vunpack.c.l.b16 %v3913
    %v5185 = vunpack.c.h.b16 %v3913
    %v5186 = vunpack.c.l.b16 %v3914
    %v5187 = vunpack.c.h.b16 %v3914
    %v5188 = vunpack.c.l.b16 %v3915
    %v5189 = vunpack.c.h.b16 %v3915
    %v5190 = vunpack.c.l.b16 %v3916
    %v5191 = vunpack.c.l.b16 %v3917
    %v5192 = vunpack.c.h.b16 %v3917
    %v5193 = vunpack.c.l.b16 %v3918
    %v5194 = vunpack.c.h.b16 %v3918
    %v5195 = vunpack.c.l.b16 %v3919
    %v5196 = vunpack.c.h.b16 %v3919
    %v5197 = vunpack.c.l.b16 %v3920
    %v5198 = vunpack.c.l.b16 %v3921
    %v5199 = vunpack.c.h.b16 %v3921
    %v5200 = vunpack.c.l.b16 %v3922
    %v5201 = vunpack.c.h.b16 %v3922
    %v5202 = vunpack.c.l.b16 %v3923
    %v5203 = vunpack.c.h.b16 %v3923
    %v5204 = vunpack.c.l.b16 %v3924
    %v5205 = vunpack.c.l.b16 %v3925
    %v5206 = vunpack.c.h.b16 %v3925
    %v5207 = vunpack.c.l.b16 %v3926
    %v5208 = vunpack.c.h.b16 %v3926
    %v5209 = vunpack.c.l.b16 %v3927
    %v5210 = vunpack.c.h.b16 %v3927
    %v5211 = vunpack.c.l.b16 %v3928
    %v5212 = vunpack.c.l.b16 %v3929
    %v5213 = vunpack.c.h.b16 %v3929
    %v5214 = vunpack.c.l.b16 %v3930
    %v5215 = vunpack.c.h.b16 %v3930
    %v5216 = vunpack.c.l.b16 %v3931
    %v5217 = vunpack.c.h.b16 %v3931
    %v5218 = vunpack.c.l.b16 %v3932
    %v5219 = vunpack.c.l.b16 %v3933
    %v5220 = vunpack.c.h.b16 %v3933
    %v5221 = vunpack.c.l.b16 %v3934
    %v5222 = vunpack.c.h.b16 %v3934
    %v5223 = vunpack.c.l.b16 %v3935
    %v5224 = vunpack.c.h.b16 %v3935
    %v5225 = vunpack.c.l.b16 %v3936
    %v5226 = vunpack.c.l.b16 %v3937
    %v5227 = vunpack.c.h.b16 %v3937
    %v5228 = vunpack.c.l.b16 %v3938
    %v5229 = vunpack.c.h.b16 %v3938
    %v5230 = vunpack.c.l.b16 %v3939
    %v5231 = vunpack.c.h.b16 %v3939
    %v5232 = vunpack.c.l.b16 %v3940
    %v5233 = vunpack.c.l.b16 %v3941
    %v5234 = vunpack.c.h.b16 %v3941
    %v5235 = vunpack.c.l.b16 %v3942
    %v5236 = vunpack.c.h.b16 %v3942
    %v5237 = vunpack.c.l.b16 %v3943
    %v5238 = vunpack.c.h.b16 %v3943
    %v5239 = vunpack.c.l.b16 %v3944
    %v5240 = vunpack.c.l.b16 %v3945
    %v5241 = vunpack.c.h.b16 %v3945
    %v5242 = vunpack.c.l.b16 %v3946
    %v5243 = vunpack.c.h.b16 %v3946
    %v5244 = vunpack.c.l.b16 %v3947
    %v5245 = vunpack.c.h.b16 %v3947
    %v5246 = vunpack.c.l.b16 %v3948
    %v5247 = vunpack.c.l.b16 %v3949
    %v5248 = vunpack.c.h.b16 %v3949
    %v5249 = vunpack.c.l.b16 %v3950
    %v5250 = vunpack.c.h.b16 %v3950
    %v5251 = vunpack.c.l.b16 %v3951
    %v5252 = vunpack.c.h.b16 %v3951
    %v5253 = vunpack.c.l.b16 %v3952
    %v5254 = vunpack.c.l.b16 %v3953
    %v5255 = vunpack.c.h.b16 %v3953
    %v5256 = vunpack.c.l.b16 %v3954
    %v5257 = vunpack.c.h.b16 %v3954
    %v5258 = vunpack.c.l.b16 %v3955
    %v5259 = vunpack.c.h.b16 %v3955
    %v5260 = vunpack.c.l.b16 %v3956
    %v5261 = vunpack.c.l.b16 %v3957
    %v5262 = vunpack.c.h.b16 %v3957
    %v5263 = vunpack.c.l.b16 %v3958
    %v5264 = vunpack.c.h.b16 %v3958
    %v5265 = vunpack.c.l.b16 %v3959
    %v5266 = vunpack.c.h.b16 %v3959
    %v5267 = vunpack.c.l.b16 %v3960
    %v5268 = vunpack.c.l.b16 %v3961
    %v5269 = vunpack.c.h.b16 %v3961
    %v5270 = vunpack.c.l.b16 %v3962
    %v5271 = vunpack.c.h.b16 %v3962
    %v5272 = vunpack.c.l.b16 %v3963
    %v5273 = vunpack.c.h.b16 %v3963
    %v5274 = vunpack.c.l.b16 %v3964
    %v5275 = vunpack.c.l.b16 %v3965
    %v5276 = vunpack.c.h.b16 %v3965
    %v5277 = vunpack.c.l.b16 %v3966
    %v5278 = vunpack.c.h.b16 %v3966
    %v5279 = vunpack.c.l.b16 %v3967
    %v5280 = vunpack.c.h.b16 %v3967
    %v5281 = vunpack.c.l.b16 %v3968
    %v5282 = vunpack.c.l.b16 %v3969
    %v5283 = vunpack.c.h.b16 %v3969
    %v5284 = vunpack.c.l.b16 %v3970
    %v5285 = vunpack.c.h.b16 %v3970
    %v5286 = vunpack.c.l.b16 %v3971
    %v5287 = vunpack.c.h.b16 %v3971
    %v5288 = vunpack.c.l.b16 %v3972
    %v5289 = vunpack.c.l.b16 %v3973
    %v5290 = vunpack.c.h.b16 %v3973
    %v5291 = vunpack.c.l.b16 %v3974
    %v5292 = vunpack.c.h.b16 %v3974
    %v5293 = vunpack.c.l.b16 %v3975
    %v5294 = vunpack.c.h.b16 %v3975
    %v5295 = vunpack.c.l.b16 %v3976
    %v5296 = vunpack.c.l.b16 %v3977
    %v5297 = vunpack.c.h.b16 %v3977
    %v5298 = vunpack.c.l.b16 %v3978
    %v5299 = vunpack.c.h.b16 %v3978
    %v5300 = vunpack.c.l.b16 %v3979
    %v5301 = vunpack.c.h.b16 %v3979
    %v5302 = vunpack.c.l.b16 %v3980
    %v5303 = vunpack.c.l.b16 %v3981
    %v5304 = vunpack.c.h.b16 %v3981
    %v5305 = vunpack.c.l.b16 %v3982
    %v5306 = vunpack.c.h.b16 %v3982
    %v5307 = vunpack.c.l.b16 %v3983
    %v5308 = vunpack.c.h.b16 %v3983
    %v5309 = vunpack.c.l.b16 %v3984
    %v5310 = vunpack.c.l.b16 %v3985
    %v5311 = vunpack.c.h.b16 %v3985
    %v5312 = vunpack.c.l.b16 %v3986
    %v5313 = vunpack.c.h.b16 %v3986
    %v5314 = vunpack.c.l.b16 %v3987
    %v5315 = vunpack.c.h.b16 %v3987
    %v5316 = vunpack.c.l.b16 %v3988
    %v5317 = vunpack.c.l.b16 %v3989
    %v5318 = vunpack.c.h.b16 %v3989
    %v5319 = vunpack.c.l.b16 %v3990
    %v5320 = vunpack.c.h.b16 %v3990
    %v5321 = vunpack.c.l.b16 %v3991
    %v5322 = vunpack.c.h.b16 %v3991
    %v5323 = vunpack.c.l.b16 %v3992
    %v5324 = vunpack.c.l.b16 %v3993
    %v5325 = vunpack.c.h.b16 %v3993
    %v5326 = vunpack.c.l.b16 %v3994
    %v5327 = vunpack.c.h.b16 %v3994
    %v5328 = vunpack.c.l.b16 %v3995
    %v5329 = vunpack.c.h.b16 %v3995
    %v5330 = vunpack.c.l.b16 %v3996
    %v5331 = vunpack.c.l.b16 %v3997
    %v5332 = vunpack.c.h.b16 %v3997
    %v5333 = vunpack.c.l.b16 %v3998
    %v5334 = vunpack.c.h.b16 %v3998
    %v5335 = vunpack.c.l.b16 %v3999
    %v5336 = vunpack.c.h.b16 %v3999
    %v5337 = vunpack.c.l.b16 %v4000
    %v5338 = vunpack.c.l.b16 %v4001
    %v5339 = vunpack.c.h.b16 %v4001
    %v5340 = vunpack.c.l.b16 %v4002
    %v5341 = vunpack.c.h.b16 %v4002
    %v5342 = vunpack.c.l.b16 %v4003
    %v5343 = vunpack.c.h.b16 %v4003
    %v5344 = vunpack.c.l.b16 %v4004
    %v5345 = vunpack.c.l.b16 %v4005
    %v5346 = vunpack.c.h.b16 %v4005
    %v5347 = vunpack.c.l.b16 %v4006
    %v5348 = vunpack.c.h.b16 %v4006
    %v5349 = vunpack.c.l.b16 %v4007
    %v5350 = vunpack.c.h.b16 %v4007
    %v5351 = vunpack.c.l.b16 %v4008
    %v5352 = vunpack.c.l.b16 %v4009
    %v5353 = vunpack.c.h.b16 %v4009
    %v5354 = vunpack.c.l.b16 %v4010
    %v5355 = vunpack.c.h.b16 %v4010
    %v5356 = vunpack.c.l.b16 %v4011
    %v5357 = vunpack.c.h.b16 %v4011
    %v5358 = vunpack.c.l.b16 %v4012
    %v5359 = vunpack.c.l.b16 %v4013
    %v5360 = vunpack.c.h.b16 %v4013
    %v5361 = vunpack.c.l.b16 %v4014
    %v5362 = vunpack.c.h.b16 %v4014
    %v5363 = vunpack.c.l.b16 %v4015
    %v5364 = vunpack.c.h.b16 %v4015
    %v5365 = vunpack.c.l.b16 %v4016
    %v5366 = vunpack.c.l.b16 %v4017
    %v5367 = vunpack.c.h.b16 %v4017
    %v5368 = vunpack.c.l.b16 %v4018
    %v5369 = vunpack.c.h.b16 %v4018
    %v5370 = vunpack.c.l.b16 %v4019
    %v5371 = vunpack.c.h.b16 %v4019
    %v5372 = vunpack.c.l.b16 %v4020
    %v5373 = vunpack.c.l.b16 %v4021
    %v5374 = vunpack.c.h.b16 %v4021
    %v5375 = vunpack.c.l.b16 %v4022
    %v5376 = vunpack.c.h.b16 %v4022
    %v5377 = vunpack.c.l.b16 %v4023
    %v5378 = vunpack.c.h.b16 %v4023
    %v5379 = vunpack.c.l.b16 %v4024
    %v5380 = vunpack.c.l.b16 %v4025
    %v5381 = vunpack.c.h.b16 %v4025
    %v5382 = vunpack.c.l.b16 %v4026
    %v5383 = vunpack.c.h.b16 %v4026
    %v5384 = vunpack.c.l.b16 %v4027
    %v5385 = vunpack.c.h.b16 %v4027
    %v5386 = vunpack.c.l.b16 %v4028
    %v5387 = vunpack.c.l.b16 %v4029
    %v5388 = vunpack.c.h.b16 %v4029
    %v5389 = vunpack.c.l.b16 %v4030
    %v5390 = vunpack.c.h.b16 %v4030
    %v5391 = vunpack.c.l.b16 %v4031
    %v5392 = vunpack.c.h.b16 %v4031
    %v5393 = vunpack.c.l.b16 %v4032
    %v5394 = vunpack.c.l.b16 %v4033
    %v5395 = vunpack.c.h.b16 %v4033
    %v5396 = vunpack.c.l.b16 %v4034
    %v5397 = vunpack.c.h.b16 %v4034
    %v5398 = vunpack.c.l.b16 %v4035
    %v5399 = vunpack.c.h.b16 %v4035
    %v5400 = vunpack.c.l.b16 %v4036
    %v5401 = vunpack.c.l.b16 %v4037
    %v5402 = vunpack.c.h.b16 %v4037
    %v5403 = vunpack.c.l.b16 %v4038
    %v5404 = vunpack.c.h.b16 %v4038
    %v5405 = vunpack.c.l.b16 %v4039
    %v5406 = vunpack.c.h.b16 %v4039
    %v5407 = vunpack.c.l.b16 %v4040
    %v5408 = vunpack.c.l.b16 %v4041
    %v5409 = vunpack.c.h.b16 %v4041
    %v5410 = vunpack.c.l.b16 %v4042
    %v5411 = vunpack.c.h.b16 %v4042
    %v5412 = vunpack.c.l.b16 %v4043
    %v5413 = vunpack.c.h.b16 %v4043
    %v5414 = vunpack.c.l.b16 %v4044
    %v5415 = vunpack.c.l.b16 %v4045
    %v5416 = vunpack.c.h.b16 %v4045
    %v5417 = vunpack.c.l.b16 %v4046
    %v5418 = vunpack.c.h.b16 %v4046
    %v5419 = vunpack.c.l.b16 %v4047
    %v5420 = vunpack.c.h.b16 %v4047
    %v5421 = vunpack.c.l.b16 %v4048
    %v5422 = vunpack.c.l.b16 %v4049
    %v5423 = vunpack.c.h.b16 %v4049
    %v5424 = vunpack.c.l.b16 %v4050
    %v5425 = vunpack.c.h.b16 %v4050
    %v5426 = vunpack.c.l.b16 %v4051
    %v5427 = vunpack.c.h.b16 %v4051
    %v5428 = vunpack.c.l.b16 %v4052
    %v5429 = vunpack.c.l.b16 %v4053
    %v5430 = vunpack.c.h.b16 %v4053
    %v5431 = vunpack.c.l.b16 %v4054
    %v5432 = vunpack.c.h.b16 %v4054
    %v5433 = vunpack.c.l.b16 %v4055
    %v5434 = vunpack.c.h.b16 %v4055
    %v5435 = vunpack.c.l.b16 %v4056
    %v5436 = vunpack.c.l.b16 %v4057
    %v5437 = vunpack.c.h.b16 %v4057
    %v5438 = vunpack.c.l.b16 %v4058
    %v5439 = vunpack.c.h.b16 %v4058
    %v5440 = vunpack.c.l.b16 %v4059
    %v5441 = vunpack.c.h.b16 %v4059
    %v5442 = vunpack.c.l.b16 %v4060
    %v5443 = vunpack.c.l.b16 %v4061
    %v5444 = vunpack.c.h.b16 %v4061
    %v5445 = vunpack.c.l.b16 %v4062
    %v5446 = vunpack.c.h.b16 %v4062
    %v5447 = vunpack.c.l.b16 %v4063
    %v5448 = vunpack.c.h.b16 %v4063
    %v5449 = vunpack.c.l.b16 %v4064
    %v5450 = vunpack.c.l.b16 %v4065
    %v5451 = vunpack.c.h.b16 %v4065
    %v5452 = vunpack.c.l.b16 %v4066
    %v5453 = vunpack.c.h.b16 %v4066
    %v5454 = vunpack.c.l.b16 %v4067
    %v5455 = vunpack.c.h.b16 %v4067
    %v5456 = vunpack.c.l.b16 %v4068
    %v5457 = vunpack.c.l.b16 %v4069
    %v5458 = vunpack.c.h.b16 %v4069
    %v5459 = vunpack.c.l.b16 %v4070
    %v5460 = vunpack.c.h.b16 %v4070
    %v5461 = vunpack.c.l.b16 %v4071
    %v5462 = vunpack.c.h.b16 %v4071
    %v5463 = vunpack.c.l.b16 %v4072
    %v5464 = vunpack.c.l.b16 %v4073
    %v5465 = vunpack.c.h.b16 %v4073
    %v5466 = vunpack.c.l.b16 %v4074
    %v5467 = vunpack.c.h.b16 %v4074
    %v5468 = vunpack.c.l.b16 %v4075
    %v5469 = vunpack.c.h.b16 %v4075
    %v5470 = vunpack.c.l.b16 %v4076
    %v5471 = vunpack.c.l.b16 %v4077
    %v5472 = vunpack.c.h.b16 %v4077
    %v5473 = vunpack.c.l.b16 %v4078
    %v5474 = vunpack.c.h.b16 %v4078
    %v5475 = vunpack.c.l.b16 %v4079
    %v5476 = vunpack.c.h.b16 %v4079
    %v5477 = vunpack.c.l.b16 %v4080
    %v5478 = vunpack.c.l.b16 %v4081
    %v5479 = vunpack.c.h.b16 %v4081
    %v5480 = vunpack.c.l.b16 %v4082
    %v5481 = vunpack.c.h.b16 %v4082
    %v5482 = vunpack.c.l.b16 %v4083
    %v5483 = vunpack.c.h.b16 %v4083
    %v5484 = vunpack.c.l.b16 %v4084
    %v5485 = vunpack.c.l.b16 %v4085
    %v5486 = vunpack.c.h.b16 %v4085
    %v5487 = vunpack.c.l.b16 %v4086
    %v5488 = vunpack.c.h.b16 %v4086
    %v5489 = vunpack.c.l.b16 %v4087
    %v5490 = vunpack.c.h.b16 %v4087
    %v5491 = vunpack.c.l.b16 %v4088
    %v5492 = vunpack.c.l.b16 %v4089
    %v5493 = vunpack.c.h.b16 %v4089
    %v5494 = vunpack.c.l.b16 %v4090
    %v5495 = vunpack.c.h.b16 %v4090
    %v5496 = vunpack.c.l.b16 %v4091
    %v5497 = vunpack.c.h.b16 %v4091
    %v5498 = vunpack.c.l.b16 %v4092
    %v5499 = vunpack.c.l.b16 %v4093
    %v5500 = vunpack.c.h.b16 %v4093
    %v5501 = vunpack.c.l.b16 %v4094
    %v5502 = vunpack.c.h.b16 %v4094
    %v5503 = vunpack.c.l.b16 %v4095
    %v5504 = vunpack.c.h.b16 %v4095
    %v5505 = vunpack.c.l.b16 %v4096
    %v5506 = vunpack.c.l.b16 %v4097
    %v5507 = vunpack.c.h.b16 %v4097
    %v5508 = vunpack.c.l.b16 %v4098
    %v5509 = vunpack.c.h.b16 %v4098
    %v5510 = vunpack.c.l.b16 %v4099
    %v5511 = vunpack.c.h.b16 %v4099
    %v5512 = vunpack.c.l.b16 %v4100
    %v5513 = vunpack.c.l.b16 %v4101
    %v5514 = vunpack.c.h.b16 %v4101
    %v5515 = vunpack.c.l.b16 %v4102
    %v5516 = vunpack.c.h.b16 %v4102
    %v5517 = vunpack.c.l.b16 %v4103
    %v5518 = vunpack.c.h.b16 %v4103
    %v5519 = vunpack.c.l.b16 %v4104
    %v5520 = vunpack.c.l.b16 %v4105
    %v5521 = vunpack.c.h.b16 %v4105
    %v5522 = vunpack.c.l.b16 %v4106
    %v5523 = vunpack.c.h.b16 %v4106
    %v5524 = vunpack.c.l.b16 %v4107
    %v5525 = vunpack.c.h.b16 %v4107
    %v5526 = vunpack.c.l.b16 %v4108
    %v5527 = vunpack.c.l.b16 %v4109
    %v5528 = vunpack.c.h.b16 %v4109
    %v5529 = vunpack.c.l.b16 %v4110
    %v5530 = vunpack.c.h.b16 %v4110
    %v5531 = vunpack.c.l.b16 %v4111
    %v5532 = vunpack.c.h.b16 %v4111
    %v5533 = vunpack.c.l.b16 %v4112
    %v5534 = vunpack.c.l.b16 %v4113
    %v5535 = vunpack.c.h.b16 %v4113
    %v5536 = vunpack.c.l.b16 %v4114
    %v5537 = vunpack.c.h.b16 %v4114
    %v5538 = vunpack.c.l.b16 %v4115
    %v5539 = vunpack.c.h.b16 %v4115
    %v5540 = vunpack.c.l.b16 %v4116
    %v5541 = vpack.c.b16 %v4652, %v4645
    %v5542 = vpack.c.b16 %v4653, %v4646
    %v5543 = vpack.c.b16 %v4654, %v4647
    %v5544 = vpack.c.b16 %v4655, %v4648
    %v5545 = vpack.c.b16 %v4656, %v4649
    %v5546 = vpack.c.b16 %v4657, %v4650
    %v5547 = vpack.c.b16 %v4658, %v4651
    %v5548 = vpack.c.b16 %v4666, %v4659
    %v5549 = vpack.c.b16 %v4667, %v4660
    %v5550 = vpack.c.b16 %v4668, %v4661
    %v5551 = vpack.c.b16 %v4669, %v4662
    %v5552 = vpack.c.b16 %v4670, %v4663
    %v5553 = vpack.c.b16 %v4671, %v4664
    %v5554 = vpack.c.b16 %v4672, %v4665
    %v5555 = vpack.c.b16 %v4680, %v4673
    %v5556 = vpack.c.b16 %v4681, %v4674
    %v5557 = vpack.c.b16 %v4682, %v4675
    %v5558 = vpack.c.b16 %v4683, %v4676
    %v5559 = vpack.c.b16 %v4684, %v4677
    %v5560 = vpack.c.b16 %v4685, %v4678
    %v5561 = vpack.c.b16 %v4686, %v4679
    %v5562 = vpack.c.b16 %v4694, %v4687
    %v5563 = vpack.c.b16 %v4695, %v4688
    %v5564 = vpack.c.b16 %v4696, %v4689
    %v5565 = vpack.c.b16 %v4697, %v4690
    %v5566 = vpack.c.b16 %v4698, %v4691
    %v5567 = vpack.c.b16 %v4699, %v4692
    %v5568 = vpack.c.b16 %v4700, %v4693
    %v5569 = vpack.c.b16 %v4708, %v4701
    %v5570 = vpack.c.b16 %v4709, %v4702
    %v5571 = vpack.c.b16 %v4710, %v4703
    %v5572 = vpack.c.b16 %v4711, %v4704
    %v5573 = vpack.c.b16 %v4712, %v4705
    %v5574 = vpack.c.b16 %v4713, %v4706
    %v5575 = vpack.c.b16 %v4714, %v4707
    %v5576 = vpack.c.b16 %v4722, %v4715
    %v5577 = vpack.c.b16 %v4723, %v4716
    %v5578 = vpack.c.b16 %v4724, %v4717
    %v5579 = vpack.c.b16 %v4725, %v4718
    %v5580 = vpack.c.b16 %v4726, %v4719
    %v5581 = vpack.c.b16 %v4727, %v4720
    %v5582 = vpack.c.b16 %v4728, %v4721
    %v5583 = vpack.c.b16 %v4736, %v4729
    %v5584 = vpack.c.b16 %v4737, %v4730
    %v5585 = vpack.c.b16 %v4738, %v4731
    %v5586 = vpack.c.b16 %v4739, %v4732
    %v5587 = vpack.c.b16 %v4740, %v4733
    %v5588 = vpack.c.b16 %v4741, %v4734
    %v5589 = vpack.c.b16 %v4742, %v4735
    %v5590 = vpack.c.b16 %v4750, %v4743
    %v5591 = vpack.c.b16 %v4751, %v4744
    %v5592 = vpack.c.b16 %v4752, %v4745
    %v5593 = vpack.c.b16 %v4753, %v4746
    %v5594 = vpack.c.b16 %v4754, %v4747
    %v5595 = vpack.c.b16 %v4755, %v4748
    %v5596 = vpack.c.b16 %v4756, %v4749
    %v5597 = vpack.c.b16 %v4764, %v4757
    %v5598 = vpack.c.b16 %v4765, %v4758
    %v5599 = vpack.c.b16 %v4766, %v4759
    %v5600 = vpack.c.b16 %v4767, %v4760
    %v5601 = vpack.c.b16 %v4768, %v4761
    %v5602 = vpack.c.b16 %v4769, %v4762
    %v5603 = vpack.c.b16 %v4770, %v4763
    %v5604 = vpack.c.b16 %v4778, %v4771
    %v5605 = vpack.c.b16 %v4779, %v4772
    %v5606 = vpack.c.b16 %v4780, %v4773
    %v5607 = vpack.c.b16 %v4781, %v4774
    %v5608 = vpack.c.b16 %v4782, %v4775
    %v5609 = vpack.c.b16 %v4783, %v4776
    %v5610 = vpack.c.b16 %v4784, %v4777
    %v5611 = vpack.c.b16 %v4792, %v4785
    %v5612 = vpack.c.b16 %v4793, %v4786
    %v5613 = vpack.c.b16 %v4794, %v4787
    %v5614 = vpack.c.b16 %v4795, %v4788
    %v5615 = vpack.c.b16 %v4796, %v4789
    %v5616 = vpack.c.b16 %v4797, %v4790
    %v5617 = vpack.c.b16 %v4798, %v4791
    %v5618 = vpack.c.b16 %v4806, %v4799
    %v5619 = vpack.c.b16 %v4807, %v4800
    %v5620 = vpack.c.b16 %v4808, %v4801
    %v5621 = vpack.c.b16 %v4809, %v4802
    %v5622 = vpack.c.b16 %v4810, %v4803
    %v5623 = vpack.c.b16 %v4811, %v4804
    %v5624 = vpack.c.b16 %v4812, %v4805
    %v5625 = vpack.c.b16 %v4820, %v4813
    %v5626 = vpack.c.b16 %v4821, %v4814
    %v5627 = vpack.c.b16 %v4822, %v4815
    %v5628 = vpack.c.b16 %v4823, %v4816
    %v5629 = vpack.c.b16 %v4824, %v4817
    %v5630 = vpack.c.b16 %v4825, %v4818
    %v5631 = vpack.c.b16 %v4826, %v4819
    %v5632 = vpack.c.b16 %v4834, %v4827
    %v5633 = vpack.c.b16 %v4835, %v4828
    %v5634 = vpack.c.b16 %v4836, %v4829
    %v5635 = vpack.c.b16 %v4837, %v4830
    %v5636 = vpack.c.b16 %v4838, %v4831
    %v5637 = vpack.c.b16 %v4839, %v4832
    %v5638 = vpack.c.b16 %v4840, %v4833
    %v5639 = vpack.c.b16 %v4848, %v4841
    %v5640 = vpack.c.b16 %v4849, %v4842
    %v5641 = vpack.c.b16 %v4850, %v4843
    %v5642 = vpack.c.b16 %v4851, %v4844
    %v5643 = vpack.c.b16 %v4852, %v4845
    %v5644 = vpack.c.b16 %v4853, %v4846
    %v5645 = vpack.c.b16 %v4854, %v4847
    %v5646 = vpack.c.b16 %v4862, %v4855
    %v5647 = vpack.c.b16 %v4863, %v4856
    %v5648 = vpack.c.b16 %v4864, %v4857
    %v5649 = vpack.c.b16 %v4865, %v4858
    %v5650 = vpack.c.b16 %v4866, %v4859
    %v5651 = vpack.c.b16 %v4867, %v4860
    %v5652 = vpack.c.b16 %v4868, %v4861
    %v5653 = vpack.c.b16 %v4876, %v4869
    %v5654 = vpack.c.b16 %v4877, %v4870
    %v5655 = vpack.c.b16 %v4878, %v4871
    %v5656 = vpack.c.b16 %v4879, %v4872
    %v5657 = vpack.c.b16 %v4880, %v4873
    %v5658 = vpack.c.b16 %v4881, %v4874
    %v5659 = vpack.c.b16 %v4882, %v4875
    %v5660 = vpack.c.b16 %v4890, %v4883
    %v5661 = vpack.c.b16 %v4891, %v4884
    %v5662 = vpack.c.b16 %v4892, %v4885
    %v5663 = vpack.c.b16 %v4893, %v4886
    %v5664 = vpack.c.b16 %v4894, %v4887
    %v5665 = vpack.c.b16 %v4895, %v4888
    %v5666 = vpack.c.b16 %v4896, %v4889
    %v5667 = vpack.c.b16 %v4904, %v4897
    %v5668 = vpack.c.b16 %v4905, %v4898
    %v5669 = vpack.c.b16 %v4906, %v4899
    %v5670 = vpack.c.b16 %v4907, %v4900
    %v5671 = vpack.c.b16 %v4908, %v4901
    %v5672 = vpack.c.b16 %v4909, %v4902
    %v5673 = vpack.c.b16 %v4910, %v4903
    %v5674 = vpack.c.b16 %v4918, %v4911
    %v5675 = vpack.c.b16 %v4919, %v4912
    %v5676 = vpack.c.b16 %v4920, %v4913
    %v5677 = vpack.c.b16 %v4921, %v4914
    %v5678 = vpack.c.b16 %v4922, %v4915
    %v5679 = vpack.c.b16 %v4923, %v4916
    %v5680 = vpack.c.b16 %v4924, %v4917
    %v5681 = vpack.c.b16 %v4932, %v4925
    %v5682 = vpack.c.b16 %v4933, %v4926
    %v5683 = vpack.c.b16 %v4934, %v4927
    %v5684 = vpack.c.b16 %v4935, %v4928
    %v5685 = vpack.c.b16 %v4936, %v4929
    %v5686 = vpack.c.b16 %v4937, %v4930
    %v5687 = vpack.c.b16 %v4938, %v4931
    %v5688 = vpack.c.b16 %v4946, %v4939
    %v5689 = vpack.c.b16 %v4947, %v4940
    %v5690 = vpack.c.b16 %v4948, %v4941
    %v5691 = vpack.c.b16 %v4949, %v4942
    %v5692 = vpack.c.b16 %v4950, %v4943
    %v5693 = vpack.c.b16 %v4951, %v4944
    %v5694 = vpack.c.b16 %v4952, %v4945
    %v5695 = vpack.c.b16 %v4960, %v4953
    %v5696 = vpack.c.b16 %v4961, %v4954
    %v5697 = vpack.c.b16 %v4962, %v4955
    %v5698 = vpack.c.b16 %v4963, %v4956
    %v5699 = vpack.c.b16 %v4964, %v4957
    %v5700 = vpack.c.b16 %v4965, %v4958
    %v5701 = vpack.c.b16 %v4966, %v4959
    %v5702 = vpack.c.b16 %v4974, %v4967
    %v5703 = vpack.c.b16 %v4975, %v4968
    %v5704 = vpack.c.b16 %v4976, %v4969
    %v5705 = vpack.c.b16 %v4977, %v4970
    %v5706 = vpack.c.b16 %v4978, %v4971
    %v5707 = vpack.c.b16 %v4979, %v4972
    %v5708 = vpack.c.b16 %v4980, %v4973
    %v5709 = vpack.c.b16 %v4988, %v4981
    %v5710 = vpack.c.b16 %v4989, %v4982
    %v5711 = vpack.c.b16 %v4990, %v4983
    %v5712 = vpack.c.b16 %v4991, %v4984
    %v5713 = vpack.c.b16 %v4992, %v4985
    %v5714 = vpack.c.b16 %v4993, %v4986
    %v5715 = vpack.c.b16 %v4994, %v4987
    %v5716 = vpack.c.b16 %v5002, %v4995
    %v5717 = vpack.c.b16 %v5003, %v4996
    %v5718 = vpack.c.b16 %v5004, %v4997
    %v5719 = vpack.c.b16 %v5005, %v4998
    %v5720 = vpack.c.b16 %v5006, %v4999
    %v5721 = vpack.c.b16 %v5007, %v5000
    %v5722 = vpack.c.b16 %v5008, %v5001
    %v5723 = vpack.c.b16 %v5016, %v5009
    %v5724 = vpack.c.b16 %v5017, %v5010
    %v5725 = vpack.c.b16 %v5018, %v5011
    %v5726 = vpack.c.b16 %v5019, %v5012
    %v5727 = vpack.c.b16 %v5020, %v5013
    %v5728 = vpack.c.b16 %v5021, %v5014
    %v5729 = vpack.c.b16 %v5022, %v5015
    %v5730 = vpack.c.b16 %v5030, %v5023
    %v5731 = vpack.c.b16 %v5031, %v5024
    %v5732 = vpack.c.b16 %v5032, %v5025
    %v5733 = vpack.c.b16 %v5033, %v5026
    %v5734 = vpack.c.b16 %v5034, %v5027
    %v5735 = vpack.c.b16 %v5035, %v5028
    %v5736 = vpack.c.b16 %v5036, %v5029
    %v5737 = vpack.c.b16 %v5044, %v5037
    %v5738 = vpack.c.b16 %v5045, %v5038
    %v5739 = vpack.c.b16 %v5046, %v5039
    %v5740 = vpack.c.b16 %v5047, %v5040
    %v5741 = vpack.c.b16 %v5048, %v5041
    %v5742 = vpack.c.b16 %v5049, %v5042
    %v5743 = vpack.c.b16 %v5050, %v5043
    %v5744 = vpack.c.b16 %v5058, %v5051
    %v5745 = vpack.c.b16 %v5059, %v5052
    %v5746 = vpack.c.b16 %v5060, %v5053
    %v5747 = vpack.c.b16 %v5061, %v5054
    %v5748 = vpack.c.b16 %v5062, %v5055
    %v5749 = vpack.c.b16 %v5063, %v5056
    %v5750 = vpack.c.b16 %v5064, %v5057
    %v5751 = vpack.c.b16 %v5072, %v5065
    %v5752 = vpack.c.b16 %v5073, %v5066
    %v5753 = vpack.c.b16 %v5074, %v5067
    %v5754 = vpack.c.b16 %v5075, %v5068
    %v5755 = vpack.c.b16 %v5076, %v5069
    %v5756 = vpack.c.b16 %v5077, %v5070
    %v5757 = vpack.c.b16 %v5078, %v5071
    %v5758 = vpack.c.b16 %v5086, %v5079
    %v5759 = vpack.c.b16 %v5087, %v5080
    %v5760 = vpack.c.b16 %v5088, %v5081
    %v5761 = vpack.c.b16 %v5089, %v5082
    %v5762 = vpack.c.b16 %v5090, %v5083
    %v5763 = vpack.c.b16 %v5091, %v5084
    %v5764 = vpack.c.b16 %v5092, %v5085
    %v5765 = vpack.c.b16 %v5100, %v5093
    %v5766 = vpack.c.b16 %v5101, %v5094
    %v5767 = vpack.c.b16 %v5102, %v5095
    %v5768 = vpack.c.b16 %v5103, %v5096
    %v5769 = vpack.c.b16 %v5104, %v5097
    %v5770 = vpack.c.b16 %v5105, %v5098
    %v5771 = vpack.c.b16 %v5106, %v5099
    %v5772 = vpack.c.b16 %v5114, %v5107
    %v5773 = vpack.c.b16 %v5115, %v5108
    %v5774 = vpack.c.b16 %v5116, %v5109
    %v5775 = vpack.c.b16 %v5117, %v5110
    %v5776 = vpack.c.b16 %v5118, %v5111
    %v5777 = vpack.c.b16 %v5119, %v5112
    %v5778 = vpack.c.b16 %v5120, %v5113
    %v5779 = vpack.c.b16 %v5128, %v5121
    %v5780 = vpack.c.b16 %v5129, %v5122
    %v5781 = vpack.c.b16 %v5130, %v5123
    %v5782 = vpack.c.b16 %v5131, %v5124
    %v5783 = vpack.c.b16 %v5132, %v5125
    %v5784 = vpack.c.b16 %v5133, %v5126
    %v5785 = vpack.c.b16 %v5134, %v5127
    %v5786 = vpack.c.b16 %v5142, %v5135
    %v5787 = vpack.c.b16 %v5143, %v5136
    %v5788 = vpack.c.b16 %v5144, %v5137
    %v5789 = vpack.c.b16 %v5145, %v5138
    %v5790 = vpack.c.b16 %v5146, %v5139
    %v5791 = vpack.c.b16 %v5147, %v5140
    %v5792 = vpack.c.b16 %v5148, %v5141
    %v5793 = vpack.c.b16 %v5156, %v5149
    %v5794 = vpack.c.b16 %v5157, %v5150
    %v5795 = vpack.c.b16 %v5158, %v5151
    %v5796 = vpack.c.b16 %v5159, %v5152
    %v5797 = vpack.c.b16 %v5160, %v5153
    %v5798 = vpack.c.b16 %v5161, %v5154
    %v5799 = vpack.c.b16 %v5162, %v5155
    %v5800 = vpack.c.b16 %v5170, %v5163
    %v5801 = vpack.c.b16 %v5171, %v5164
    %v5802 = vpack.c.b16 %v5172, %v5165
    %v5803 = vpack.c.b16 %v5173, %v5166
    %v5804 = vpack.c.b16 %v5174, %v5167
    %v5805 = vpack.c.b16 %v5175, %v5168
    %v5806 = vpack.c.b16 %v5176, %v5169
    %v5807 = vpack.c.b16 %v5184, %v5177
    %v5808 = vpack.c.b16 %v5185, %v5178
    %v5809 = vpack.c.b16 %v5186, %v5179
    %v5810 = vpack.c.b16 %v5187, %v5180
    %v5811 = vpack.c.b16 %v5188, %v5181
    %v5812 = vpack.c.b16 %v5189, %v5182
    %v5813 = vpack.c.b16 %v5190, %v5183
    %v5814 = vpack.c.b16 %v5198, %v5191
    %v5815 = vpack.c.b16 %v5199, %v5192
    %v5816 = vpack.c.b16 %v5200, %v5193
    %v5817 = vpack.c.b16 %v5201, %v5194
    %v5818 = vpack.c.b16 %v5202, %v5195
    %v5819 = vpack.c.b16 %v5203, %v5196
    %v5820 = vpack.c.b16 %v5204, %v5197
    %v5821 = vpack.c.b16 %v5212, %v5205
    %v5822 = vpack.c.b16 %v5213, %v5206
    %v5823 = vpack.c.b16 %v5214, %v5207
    %v5824 = vpack.c.b16 %v5215, %v5208
    %v5825 = vpack.c.b16 %v5216, %v5209
    %v5826 = vpack.c.b16 %v5217, %v5210
    %v5827 = vpack.c.b16 %v5218, %v5211
    %v5828 = vpack.c.b16 %v5226, %v5219
    %v5829 = vpack.c.b16 %v5227, %v5220
    %v5830 = vpack.c.b16 %v5228, %v5221
    %v5831 = vpack.c.b16 %v5229, %v5222
    %v5832 = vpack.c.b16 %v5230, %v5223
    %v5833 = vpack.c.b16 %v5231, %v5224
    %v5834 = vpack.c.b16 %v5232, %v5225
    %v5835 = vpack.c.b16 %v5240, %v5233
    %v5836 = vpack.c.b16 %v5241, %v5234
    %v5837 = vpack.c.b16 %v5242, %v5235
    %v5838 = vpack.c.b16 %v5243, %v5236
    %v5839 = vpack.c.b16 %v5244, %v5237
    %v5840 = vpack.c.b16 %v5245, %v5238
    %v5841 = vpack.c.b16 %v5246, %v5239
    %v5842 = vpack.c.b16 %v5254, %v5247
    %v5843 = vpack.c.b16 %v5255, %v5248
    %v5844 = vpack.c.b16 %v5256, %v5249
    %v5845 = vpack.c.b16 %v5257, %v5250
    %v5846 = vpack.c.b16 %v5258, %v5251
    %v5847 = vpack.c.b16 %v5259, %v5252
    %v5848 = vpack.c.b16 %v5260, %v5253
    %v5849 = vpack.c.b16 %v5268, %v5261
    %v5850 = vpack.c.b16 %v5269, %v5262
    %v5851 = vpack.c.b16 %v5270, %v5263
    %v5852 = vpack.c.b16 %v5271, %v5264
    %v5853 = vpack.c.b16 %v5272, %v5265
    %v5854 = vpack.c.b16 %v5273, %v5266
    %v5855 = vpack.c.b16 %v5274, %v5267
    %v5856 = vpack.c.b16 %v5282, %v5275
    %v5857 = vpack.c.b16 %v5283, %v5276
    %v5858 = vpack.c.b16 %v5284, %v5277
    %v5859 = vpack.c.b16 %v5285, %v5278
    %v5860 = vpack.c.b16 %v5286, %v5279
    %v5861 = vpack.c.b16 %v5287, %v5280
    %v5862 = vpack.c.b16 %v5288, %v5281
    %v5863 = vpack.c.b16 %v5296, %v5289
    %v5864 = vpack.c.b16 %v5297, %v5290
    %v5865 = vpack.c.b16 %v5298, %v5291
    %v5866 = vpack.c.b16 %v5299, %v5292
    %v5867 = vpack.c.b16 %v5300, %v5293
    %v5868 = vpack.c.b16 %v5301, %v5294
    %v5869 = vpack.c.b16 %v5302, %v5295
    %v5870 = vpack.c.b16 %v5310, %v5303
    %v5871 = vpack.c.b16 %v5311, %v5304
    %v5872 = vpack.c.b16 %v5312, %v5305
    %v5873 = vpack.c.b16 %v5313, %v5306
    %v5874 = vpack.c.b16 %v5314, %v5307
    %v5875 = vpack.c.b16 %v5315, %v5308
    %v5876 = vpack.c.b16 %v5316, %v5309
    %v5877 = vpack.c.b16 %v5324, %v5317
    %v5878 = vpack.c.b16 %v5325, %v5318
    %v5879 = vpack.c.b16 %v5326, %v5319
    %v5880 = vpack.c.b16 %v5327, %v5320
    %v5881 = vpack.c.b16 %v5328, %v5321
    %v5882 = vpack.c.b16 %v5329, %v5322
    %v5883 = vpack.c.b16 %v5330, %v5323
    %v5884 = vpack.c.b16 %v5338, %v5331
    %v5885 = vpack.c.b16 %v5339, %v5332
    %v5886 = vpack.c.b16 %v5340, %v5333
    %v5887 = vpack.c.b16 %v5341, %v5334
    %v5888 = vpack.c.b16 %v5342, %v5335
    %v5889 = vpack.c.b16 %v5343, %v5336
    %v5890 = vpack.c.b16 %v5344, %v5337
    %v5891 = vpack.c.b16 %v5352, %v5345
    %v5892 = vpack.c.b16 %v5353, %v5346
    %v5893 = vpack.c.b16 %v5354, %v5347
    %v5894 = vpack.c.b16 %v5355, %v5348
    %v5895 = vpack.c.b16 %v5356, %v5349
    %v5896 = vpack.c.b16 %v5357, %v5350
    %v5897 = vpack.c.b16 %v5358, %v5351
    %v5898 = vpack.c.b16 %v5366, %v5359
    %v5899 = vpack.c.b16 %v5367, %v5360
    %v5900 = vpack.c.b16 %v5368, %v5361
    %v5901 = vpack.c.b16 %v5369, %v5362
    %v5902 = vpack.c.b16 %v5370, %v5363
    %v5903 = vpack.c.b16 %v5371, %v5364
    %v5904 = vpack.c.b16 %v5372, %v5365
    %v5905 = vpack.c.b16 %v5380, %v5373
    %v5906 = vpack.c.b16 %v5381, %v5374
    %v5907 = vpack.c.b16 %v5382, %v5375
    %v5908 = vpack.c.b16 %v5383, %v5376
    %v5909 = vpack.c.b16 %v5384, %v5377
    %v5910 = vpack.c.b16 %v5385, %v5378
    %v5911 = vpack.c.b16 %v5386, %v5379
    %v5912 = vpack.c.b16 %v5394, %v5387
    %v5913 = vpack.c.b16 %v5395, %v5388
    %v5914 = vpack.c.b16 %v5396, %v5389
    %v5915 = vpack.c.b16 %v5397, %v5390
    %v5916 = vpack.c.b16 %v5398, %v5391
    %v5917 = vpack.c.b16 %v5399, %v5392
    %v5918 = vpack.c.b16 %v5400, %v5393
    %v5919 = vpack.c.b16 %v5408, %v5401
    %v5920 = vpack.c.b16 %v5409, %v5402
    %v5921 = vpack.c.b16 %v5410, %v5403
    %v5922 = vpack.c.b16 %v5411, %v5404
    %v5923 = vpack.c.b16 %v5412, %v5405
    %v5924 = vpack.c.b16 %v5413, %v5406
    %v5925 = vpack.c.b16 %v5414, %v5407
    %v5926 = vpack.c.b16 %v5422, %v5415
    %v5927 = vpack.c.b16 %v5423, %v5416
    %v5928 = vpack.c.b16 %v5424, %v5417
    %v5929 = vpack.c.b16 %v5425, %v5418
    %v5930 = vpack.c.b16 %v5426, %v5419
    %v5931 = vpack.c.b16 %v5427, %v5420
    %v5932 = vpack.c.b16 %v5428, %v5421
    %v5933 = vpack.c.b16 %v5436, %v5429
    %v5934 = vpack.c.b16 %v5437, %v5430
    %v5935 = vpack.c.b16 %v5438, %v5431
    %v5936 = vpack.c.b16 %v5439, %v5432
    %v5937 = vpack.c.b16 %v5440, %v5433
    %v5938 = vpack.c.b16 %v5441, %v5434
    %v5939 = vpack.c.b16 %v5442, %v5435
    %v5940 = vpack.c.b16 %v5450, %v5443
    %v5941 = vpack.c.b16 %v5451, %v5444
    %v5942 = vpack.c.b16 %v5452, %v5445
    %v5943 = vpack.c.b16 %v5453, %v5446
    %v5944 = vpack.c.b16 %v5454, %v5447
    %v5945 = vpack.c.b16 %v5455, %v5448
    %v5946 = vpack.c.b16 %v5456, %v5449
    %v5947 = vpack.c.b16 %v5464, %v5457
    %v5948 = vpack.c.b16 %v5465, %v5458
    %v5949 = vpack.c.b16 %v5466, %v5459
    %v5950 = vpack.c.b16 %v5467, %v5460
    %v5951 = vpack.c.b16 %v5468, %v5461
    %v5952 = vpack.c.b16 %v5469, %v5462
    %v5953 = vpack.c.b16 %v5470, %v5463
    %v5954 = vpack.c.b16 %v5478, %v5471
    %v5955 = vpack.c.b16 %v5479, %v5472
    %v5956 = vpack.c.b16 %v5480, %v5473
    %v5957 = vpack.c.b16 %v5481, %v5474
    %v5958 = vpack.c.b16 %v5482, %v5475
    %v5959 = vpack.c.b16 %v5483, %v5476
    %v5960 = vpack.c.b16 %v5484, %v5477
    %v5961 = vpack.c.b16 %v5492, %v5485
    %v5962 = vpack.c.b16 %v5493, %v5486
    %v5963 = vpack.c.b16 %v5494, %v5487
    %v5964 = vpack.c.b16 %v5495, %v5488
    %v5965 = vpack.c.b16 %v5496, %v5489
    %v5966 = vpack.c.b16 %v5497, %v5490
    %v5967 = vpack.c.b16 %v5498, %v5491
    %v5968 = vpack.c.b16 %v5506, %v5499
    %v5969 = vpack.c.b16 %v5507, %v5500
    %v5970 = vpack.c.b16 %v5508, %v5501
    %v5971 = vpack.c.b16 %v5509, %v5502
    %v5972 = vpack.c.b16 %v5510, %v5503
    %v5973 = vpack.c.b16 %v5511, %v5504
    %v5974 = vpack.c.b16 %v5512, %v5505
    %v5975 = vpack.c.b16 %v5520, %v5513
    %v5976 = vpack.c.b16 %v5521, %v5514
    %v5977 = vpack.c.b16 %v5522, %v5515
    %v5978 = vpack.c.b16 %v5523, %v5516
    %v5979 = vpack.c.b16 %v5524, %v5517
    %v5980 = vpack.c.b16 %v5525, %v5518
    %v5981 = vpack.c.b16 %v5526, %v5519
    %v5982 = vpack.c.b16 %v5534, %v5527
    %v5983 = vpack.c.b16 %v5535, %v5528
    %v5984 = vpack.c.b16 %v5536, %v5529
    %v5985 = vpack.c.b16 %v5537, %v5530
    %v5986 = vpack.c.b16 %v5538, %v5531
    %v5987 = vpack.c.b16 %v5539, %v5532
    %v5988 = vpack.c.b16 %v5540, %v5533
    %6437 = vmatpush.bf16.msra.mxu0 %v5590
    %6438 = vmatpush.bf16.msra.mxu0 %v5583
    %6439 = vmatpush.bf16.msra.mxu0 %v5576
    %6440 = vmatpush.bf16.msra.mxu0 %v5569
    %6441 = vmatpush.bf16.msra.mxu0 %v5562
    %6442 = vmatpush.bf16.msra.mxu0 %v5555
    %6443 = vmatpush.bf16.msra.mxu0 %v5548
    %6444 = vmatpush.bf16.msra.mxu0 %v5541
    %6445 = vmatmul.bf16.gmra.mxu0 %v3597
    %v6446 = vpop.f32.mrf.mxu0
    %v6447 = vadd.f32 %v4119, %v6446
    %v6448 = vpop.f32.mrf.mxu0
    %6449 = vdwg.mxu0
    %6450 = vmatpush.bf16.msra.mxu0 %v5646
    %6451 = vmatpush.bf16.msra.mxu0 %v5639
    %6452 = vmatpush.bf16.msra.mxu0 %v5632
    %6453 = vmatpush.bf16.msra.mxu0 %v5625
    %6454 = vmatpush.bf16.msra.mxu0 %v5618
    %6455 = vmatpush.bf16.msra.mxu0 %v5611
    %6456 = vmatpush.bf16.msra.mxu0 %v5604
    %6457 = vmatpush.bf16.msra.mxu0 %v5597
    %6458 = vmatmul.bf16.gmra.mxu0 %v3598
    %v6459 = vpop.f32.mrf.mxu0
    %v6460 = vadd.f32 %v6447, %v6459
    %v6461 = vpop.f32.mrf.mxu0
    %6462 = vdwg.mxu0
    %6463 = vmatpush.bf16.msra.mxu0 %v5702
    %6464 = vmatpush.bf16.msra.mxu0 %v5695
    %6465 = vmatpush.bf16.msra.mxu0 %v5688
    %6466 = vmatpush.bf16.msra.mxu0 %v5681
    %6467 = vmatpush.bf16.msra.mxu0 %v5674
    %6468 = vmatpush.bf16.msra.mxu0 %v5667
    %6469 = vmatpush.bf16.msra.mxu0 %v5660
    %6470 = vmatpush.bf16.msra.mxu0 %v5653
    %6471 = vmatmul.bf16.gmra.mxu0 %v3599
    %v6472 = vpop.f32.mrf.mxu0
    %v6473 = vadd.f32 %v6460, %v6472
    %v6474 = vpop.f32.mrf.mxu0
    %6475 = vdwg.mxu0
    %6476 = vmatpush.bf16.msra.mxu0 %v5758
    %6477 = vmatpush.bf16.msra.mxu0 %v5751
    %6478 = vmatpush.bf16.msra.mxu0 %v5744
    %6479 = vmatpush.bf16.msra.mxu0 %v5737
    %6480 = vmatpush.bf16.msra.mxu0 %v5730
    %6481 = vmatpush.bf16.msra.mxu0 %v5723
    %6482 = vmatpush.bf16.msra.mxu0 %v5716
    %6483 = vmatpush.bf16.msra.mxu0 %v5709
    %6484 = vmatmul.bf16.gmra.mxu0 %v3600
    %v6485 = vpop.f32.mrf.mxu0
    %v6486 = vadd.f32 %v6473, %v6485
    %v6487 = vpop.f32.mrf.mxu0
    %6488 = vdwg.mxu0
    %6489 = vmatpush.bf16.msra.mxu0 %v5814
    %6490 = vmatpush.bf16.msra.mxu0 %v5807
    %6491 = vmatpush.bf16.msra.mxu0 %v5800
    %6492 = vmatpush.bf16.msra.mxu0 %v5793
    %6493 = vmatpush.bf16.msra.mxu0 %v5786
    %6494 = vmatpush.bf16.msra.mxu0 %v5779
    %6495 = vmatpush.bf16.msra.mxu0 %v5772
    %6496 = vmatpush.bf16.msra.mxu0 %v5765
    %6497 = vmatmul.bf16.gmra.mxu0 %v3601
    %v6498 = vpop.f32.mrf.mxu0
    %v6499 = vadd.f32 %v6486, %v6498
    %v6500 = vpop.f32.mrf.mxu0
    %6501 = vdwg.mxu0
    %6502 = vmatpush.bf16.msra.mxu0 %v5870
    %6503 = vmatpush.bf16.msra.mxu0 %v5863
    %6504 = vmatpush.bf16.msra.mxu0 %v5856
    %6505 = vmatpush.bf16.msra.mxu0 %v5849
    %6506 = vmatpush.bf16.msra.mxu0 %v5842
    %6507 = vmatpush.bf16.msra.mxu0 %v5835
    %6508 = vmatpush.bf16.msra.mxu0 %v5828
    %6509 = vmatpush.bf16.msra.mxu0 %v5821
    %6510 = vmatmul.bf16.gmra.mxu0 %v3602
    %v6511 = vpop.f32.mrf.mxu0
    %v6512 = vadd.f32 %v6499, %v6511
    %v6513 = vpop.f32.mrf.mxu0
    %6514 = vdwg.mxu0
    %6515 = vmatpush.bf16.msra.mxu0 %v5926
    %6516 = vmatpush.bf16.msra.mxu0 %v5919
    %6517 = vmatpush.bf16.msra.mxu0 %v5912
    %6518 = vmatpush.bf16.msra.mxu0 %v5905
    %6519 = vmatpush.bf16.msra.mxu0 %v5898
    %6520 = vmatpush.bf16.msra.mxu0 %v5891
    %6521 = vmatpush.bf16.msra.mxu0 %v5884
    %6522 = vmatpush.bf16.msra.mxu0 %v5877
    %6523 = vmatmul.bf16.gmra.mxu0 %v3603
    %v6524 = vpop.f32.mrf.mxu0
    %v6525 = vadd.f32 %v6512, %v6524
    %v6526 = vpop.f32.mrf.mxu0
    %6527 = vdwg.mxu0
    %6528 = vmatpush.bf16.msra.mxu0 %v5982
    %6529 = vmatpush.bf16.msra.mxu0 %v5975
    %6530 = vmatpush.bf16.msra.mxu0 %v5968
    %6531 = vmatpush.bf16.msra.mxu0 %v5961
    %6532 = vmatpush.bf16.msra.mxu0 %v5954
    %6533 = vmatpush.bf16.msra.mxu0 %v5947
    %6534 = vmatpush.bf16.msra.mxu0 %v5940
    %6535 = vmatpush.bf16.msra.mxu0 %v5933
    %6536 = vmatmul.bf16.gmra.mxu0 %v3604
    %v6537 = vpop.f32.mrf.mxu0
    %v6538 = vadd.f32 %v6525, %v6537
    %v6539 = vpop.f32.mrf.mxu0
    %6540 = vdwg.mxu0
    %6541 = vmatpush.bf16.msra.mxu0 %v5591
    %6542 = vmatpush.bf16.msra.mxu0 %v5584
    %6543 = vmatpush.bf16.msra.mxu0 %v5577
    %6544 = vmatpush.bf16.msra.mxu0 %v5570
    %6545 = vmatpush.bf16.msra.mxu0 %v5563
    %6546 = vmatpush.bf16.msra.mxu0 %v5556
    %6547 = vmatpush.bf16.msra.mxu0 %v5549
    %6548 = vmatpush.bf16.msra.mxu0 %v5542
    %6549 = vmatmul.bf16.gmra.mxu0 %v3597
    %v6550 = vpop.f32.mrf.mxu0
    %v6551 = vadd.f32 %v4120, %v6550
    %v6552 = vpop.f32.mrf.mxu0
    %6553 = vdwg.mxu0
    %6554 = vmatpush.bf16.msra.mxu0 %v5647
    %6555 = vmatpush.bf16.msra.mxu0 %v5640
    %6556 = vmatpush.bf16.msra.mxu0 %v5633
    %6557 = vmatpush.bf16.msra.mxu0 %v5626
    %6558 = vmatpush.bf16.msra.mxu0 %v5619
    %6559 = vmatpush.bf16.msra.mxu0 %v5612
    %6560 = vmatpush.bf16.msra.mxu0 %v5605
    %6561 = vmatpush.bf16.msra.mxu0 %v5598
    %6562 = vmatmul.bf16.gmra.mxu0 %v3598
    %v6563 = vpop.f32.mrf.mxu0
    %v6564 = vadd.f32 %v6551, %v6563
    %v6565 = vpop.f32.mrf.mxu0
    %6566 = vdwg.mxu0
    %6567 = vmatpush.bf16.msra.mxu0 %v5703
    %6568 = vmatpush.bf16.msra.mxu0 %v5696
    %6569 = vmatpush.bf16.msra.mxu0 %v5689
    %6570 = vmatpush.bf16.msra.mxu0 %v5682
    %6571 = vmatpush.bf16.msra.mxu0 %v5675
    %6572 = vmatpush.bf16.msra.mxu0 %v5668
    %6573 = vmatpush.bf16.msra.mxu0 %v5661
    %6574 = vmatpush.bf16.msra.mxu0 %v5654
    %6575 = vmatmul.bf16.gmra.mxu0 %v3599
    %v6576 = vpop.f32.mrf.mxu0
    %v6577 = vadd.f32 %v6564, %v6576
    %v6578 = vpop.f32.mrf.mxu0
    %6579 = vdwg.mxu0
    %6580 = vmatpush.bf16.msra.mxu0 %v5759
    %6581 = vmatpush.bf16.msra.mxu0 %v5752
    %6582 = vmatpush.bf16.msra.mxu0 %v5745
    %6583 = vmatpush.bf16.msra.mxu0 %v5738
    %6584 = vmatpush.bf16.msra.mxu0 %v5731
    %6585 = vmatpush.bf16.msra.mxu0 %v5724
    %6586 = vmatpush.bf16.msra.mxu0 %v5717
    %6587 = vmatpush.bf16.msra.mxu0 %v5710
    %6588 = vmatmul.bf16.gmra.mxu0 %v3600
    %v6589 = vpop.f32.mrf.mxu0
    %v6590 = vadd.f32 %v6577, %v6589
    %v6591 = vpop.f32.mrf.mxu0
    %6592 = vdwg.mxu0
    %6593 = vmatpush.bf16.msra.mxu0 %v5815
    %6594 = vmatpush.bf16.msra.mxu0 %v5808
    %6595 = vmatpush.bf16.msra.mxu0 %v5801
    %6596 = vmatpush.bf16.msra.mxu0 %v5794
    %6597 = vmatpush.bf16.msra.mxu0 %v5787
    %6598 = vmatpush.bf16.msra.mxu0 %v5780
    %6599 = vmatpush.bf16.msra.mxu0 %v5773
    %6600 = vmatpush.bf16.msra.mxu0 %v5766
    %6601 = vmatmul.bf16.gmra.mxu0 %v3601
    %v6602 = vpop.f32.mrf.mxu0
    %v6603 = vadd.f32 %v6590, %v6602
    %v6604 = vpop.f32.mrf.mxu0
    %6605 = vdwg.mxu0
    %6606 = vmatpush.bf16.msra.mxu0 %v5871
    %6607 = vmatpush.bf16.msra.mxu0 %v5864
    %6608 = vmatpush.bf16.msra.mxu0 %v5857
    %6609 = vmatpush.bf16.msra.mxu0 %v5850
    %6610 = vmatpush.bf16.msra.mxu0 %v5843
    %6611 = vmatpush.bf16.msra.mxu0 %v5836
    %6612 = vmatpush.bf16.msra.mxu0 %v5829
    %6613 = vmatpush.bf16.msra.mxu0 %v5822
    %6614 = vmatmul.bf16.gmra.mxu0 %v3602
    %v6615 = vpop.f32.mrf.mxu0
    %v6616 = vadd.f32 %v6603, %v6615
    %v6617 = vpop.f32.mrf.mxu0
    %6618 = vdwg.mxu0
    %6619 = vmatpush.bf16.msra.mxu0 %v5927
    %6620 = vmatpush.bf16.msra.mxu0 %v5920
    %6621 = vmatpush.bf16.msra.mxu0 %v5913
    %6622 = vmatpush.bf16.msra.mxu0 %v5906
    %6623 = vmatpush.bf16.msra.mxu0 %v5899
    %6624 = vmatpush.bf16.msra.mxu0 %v5892
    %6625 = vmatpush.bf16.msra.mxu0 %v5885
    %6626 = vmatpush.bf16.msra.mxu0 %v5878
    %6627 = vmatmul.bf16.gmra.mxu0 %v3603
    %v6628 = vpop.f32.mrf.mxu0
    %v6629 = vadd.f32 %v6616, %v6628
    %v6630 = vpop.f32.mrf.mxu0
    %6631 = vdwg.mxu0
    %6632 = vmatpush.bf16.msra.mxu0 %v5983
    %6633 = vmatpush.bf16.msra.mxu0 %v5976
    %6634 = vmatpush.bf16.msra.mxu0 %v5969
    %6635 = vmatpush.bf16.msra.mxu0 %v5962
    %6636 = vmatpush.bf16.msra.mxu0 %v5955
    %6637 = vmatpush.bf16.msra.mxu0 %v5948
    %6638 = vmatpush.bf16.msra.mxu0 %v5941
    %6639 = vmatpush.bf16.msra.mxu0 %v5934
    %6640 = vmatmul.bf16.gmra.mxu0 %v3604
    %v6641 = vpop.f32.mrf.mxu0
    %v6642 = vadd.f32 %v6629, %v6641
    %v6643 = vpop.f32.mrf.mxu0
    %6644 = vdwg.mxu0
    %6645 = vmatpush.bf16.msra.mxu0 %v5592
    %6646 = vmatpush.bf16.msra.mxu0 %v5585
    %6647 = vmatpush.bf16.msra.mxu0 %v5578
    %6648 = vmatpush.bf16.msra.mxu0 %v5571
    %6649 = vmatpush.bf16.msra.mxu0 %v5564
    %6650 = vmatpush.bf16.msra.mxu0 %v5557
    %6651 = vmatpush.bf16.msra.mxu0 %v5550
    %6652 = vmatpush.bf16.msra.mxu0 %v5543
    %6653 = vmatmul.bf16.gmra.mxu0 %v3597
    %v6654 = vpop.f32.mrf.mxu0
    %v6655 = vadd.f32 %v4121, %v6654
    %v6656 = vpop.f32.mrf.mxu0
    %6657 = vdwg.mxu0
    %6658 = vmatpush.bf16.msra.mxu0 %v5648
    %6659 = vmatpush.bf16.msra.mxu0 %v5641
    %6660 = vmatpush.bf16.msra.mxu0 %v5634
    %6661 = vmatpush.bf16.msra.mxu0 %v5627
    %6662 = vmatpush.bf16.msra.mxu0 %v5620
    %6663 = vmatpush.bf16.msra.mxu0 %v5613
    %6664 = vmatpush.bf16.msra.mxu0 %v5606
    %6665 = vmatpush.bf16.msra.mxu0 %v5599
    %6666 = vmatmul.bf16.gmra.mxu0 %v3598
    %v6667 = vpop.f32.mrf.mxu0
    %v6668 = vadd.f32 %v6655, %v6667
    %v6669 = vpop.f32.mrf.mxu0
    %6670 = vdwg.mxu0
    %6671 = vmatpush.bf16.msra.mxu0 %v5704
    %6672 = vmatpush.bf16.msra.mxu0 %v5697
    %6673 = vmatpush.bf16.msra.mxu0 %v5690
    %6674 = vmatpush.bf16.msra.mxu0 %v5683
    %6675 = vmatpush.bf16.msra.mxu0 %v5676
    %6676 = vmatpush.bf16.msra.mxu0 %v5669
    %6677 = vmatpush.bf16.msra.mxu0 %v5662
    %6678 = vmatpush.bf16.msra.mxu0 %v5655
    %6679 = vmatmul.bf16.gmra.mxu0 %v3599
    %v6680 = vpop.f32.mrf.mxu0
    %v6681 = vadd.f32 %v6668, %v6680
    %v6682 = vpop.f32.mrf.mxu0
    %6683 = vdwg.mxu0
    %6684 = vmatpush.bf16.msra.mxu0 %v5760
    %6685 = vmatpush.bf16.msra.mxu0 %v5753
    %6686 = vmatpush.bf16.msra.mxu0 %v5746
    %6687 = vmatpush.bf16.msra.mxu0 %v5739
    %6688 = vmatpush.bf16.msra.mxu0 %v5732
    %6689 = vmatpush.bf16.msra.mxu0 %v5725
    %6690 = vmatpush.bf16.msra.mxu0 %v5718
    %6691 = vmatpush.bf16.msra.mxu0 %v5711
    %6692 = vmatmul.bf16.gmra.mxu0 %v3600
    %v6693 = vpop.f32.mrf.mxu0
    %v6694 = vadd.f32 %v6681, %v6693
    %v6695 = vpop.f32.mrf.mxu0
    %6696 = vdwg.mxu0
    %6697 = vmatpush.bf16.msra.mxu0 %v5816
    %6698 = vmatpush.bf16.msra.mxu0 %v5809
    %6699 = vmatpush.bf16.msra.mxu0 %v5802
    %6700 = vmatpush.bf16.msra.mxu0 %v5795
    %6701 = vmatpush.bf16.msra.mxu0 %v5788
    %6702 = vmatpush.bf16.msra.mxu0 %v5781
    %6703 = vmatpush.bf16.msra.mxu0 %v5774
    %6704 = vmatpush.bf16.msra.mxu0 %v5767
    %6705 = vmatmul.bf16.gmra.mxu0 %v3601
    %v6706 = vpop.f32.mrf.mxu0
    %v6707 = vadd.f32 %v6694, %v6706
    %v6708 = vpop.f32.mrf.mxu0
    %6709 = vdwg.mxu0
    %6710 = vmatpush.bf16.msra.mxu0 %v5872
    %6711 = vmatpush.bf16.msra.mxu0 %v5865
    %6712 = vmatpush.bf16.msra.mxu0 %v5858
    %6713 = vmatpush.bf16.msra.mxu0 %v5851
    %6714 = vmatpush.bf16.msra.mxu0 %v5844
    %6715 = vmatpush.bf16.msra.mxu0 %v5837
    %6716 = vmatpush.bf16.msra.mxu0 %v5830
    %6717 = vmatpush.bf16.msra.mxu0 %v5823
    %6718 = vmatmul.bf16.gmra.mxu0 %v3602
    %v6719 = vpop.f32.mrf.mxu0
    %v6720 = vadd.f32 %v6707, %v6719
    %v6721 = vpop.f32.mrf.mxu0
    %6722 = vdwg.mxu0
    %6723 = vmatpush.bf16.msra.mxu0 %v5928
    %6724 = vmatpush.bf16.msra.mxu0 %v5921
    %6725 = vmatpush.bf16.msra.mxu0 %v5914
    %6726 = vmatpush.bf16.msra.mxu0 %v5907
    %6727 = vmatpush.bf16.msra.mxu0 %v5900
    %6728 = vmatpush.bf16.msra.mxu0 %v5893
    %6729 = vmatpush.bf16.msra.mxu0 %v5886
    %6730 = vmatpush.bf16.msra.mxu0 %v5879
    %6731 = vmatmul.bf16.gmra.mxu0 %v3603
    %v6732 = vpop.f32.mrf.mxu0
    %v6733 = vadd.f32 %v6720, %v6732
    %v6734 = vpop.f32.mrf.mxu0
    %6735 = vdwg.mxu0
    %6736 = vmatpush.bf16.msra.mxu0 %v5984
    %6737 = vmatpush.bf16.msra.mxu0 %v5977
    %6738 = vmatpush.bf16.msra.mxu0 %v5970
    %6739 = vmatpush.bf16.msra.mxu0 %v5963
    %6740 = vmatpush.bf16.msra.mxu0 %v5956
    %6741 = vmatpush.bf16.msra.mxu0 %v5949
    %6742 = vmatpush.bf16.msra.mxu0 %v5942
    %6743 = vmatpush.bf16.msra.mxu0 %v5935
    %6744 = vmatmul.bf16.gmra.mxu0 %v3604
    %v6745 = vpop.f32.mrf.mxu0
    %v6746 = vadd.f32 %v6733, %v6745
    %v6747 = vpop.f32.mrf.mxu0
    %6748 = vdwg.mxu0
    %6749 = vmatpush.bf16.msra.mxu0 %v5593
    %6750 = vmatpush.bf16.msra.mxu0 %v5586
    %6751 = vmatpush.bf16.msra.mxu0 %v5579
    %6752 = vmatpush.bf16.msra.mxu0 %v5572
    %6753 = vmatpush.bf16.msra.mxu0 %v5565
    %6754 = vmatpush.bf16.msra.mxu0 %v5558
    %6755 = vmatpush.bf16.msra.mxu0 %v5551
    %6756 = vmatpush.bf16.msra.mxu0 %v5544
    %6757 = vmatmul.bf16.gmra.mxu0 %v3597
    %v6758 = vpop.f32.mrf.mxu0
    %v6759 = vadd.f32 %v4122, %v6758
    %v6760 = vpop.f32.mrf.mxu0
    %6761 = vdwg.mxu0
    %6762 = vmatpush.bf16.msra.mxu0 %v5649
    %6763 = vmatpush.bf16.msra.mxu0 %v5642
    %6764 = vmatpush.bf16.msra.mxu0 %v5635
    %6765 = vmatpush.bf16.msra.mxu0 %v5628
    %6766 = vmatpush.bf16.msra.mxu0 %v5621
    %6767 = vmatpush.bf16.msra.mxu0 %v5614
    %6768 = vmatpush.bf16.msra.mxu0 %v5607
    %6769 = vmatpush.bf16.msra.mxu0 %v5600
    %6770 = vmatmul.bf16.gmra.mxu0 %v3598
    %v6771 = vpop.f32.mrf.mxu0
    %v6772 = vadd.f32 %v6759, %v6771
    %v6773 = vpop.f32.mrf.mxu0
    %6774 = vdwg.mxu0
    %6775 = vmatpush.bf16.msra.mxu0 %v5705
    %6776 = vmatpush.bf16.msra.mxu0 %v5698
    %6777 = vmatpush.bf16.msra.mxu0 %v5691
    %6778 = vmatpush.bf16.msra.mxu0 %v5684
    %6779 = vmatpush.bf16.msra.mxu0 %v5677
    %6780 = vmatpush.bf16.msra.mxu0 %v5670
    %6781 = vmatpush.bf16.msra.mxu0 %v5663
    %6782 = vmatpush.bf16.msra.mxu0 %v5656
    %6783 = vmatmul.bf16.gmra.mxu0 %v3599
    %v6784 = vpop.f32.mrf.mxu0
    %v6785 = vadd.f32 %v6772, %v6784
    %v6786 = vpop.f32.mrf.mxu0
    %6787 = vdwg.mxu0
    %6788 = vmatpush.bf16.msra.mxu0 %v5761
    %6789 = vmatpush.bf16.msra.mxu0 %v5754
    %6790 = vmatpush.bf16.msra.mxu0 %v5747
    %6791 = vmatpush.bf16.msra.mxu0 %v5740
    %6792 = vmatpush.bf16.msra.mxu0 %v5733
    %6793 = vmatpush.bf16.msra.mxu0 %v5726
    %6794 = vmatpush.bf16.msra.mxu0 %v5719
    %6795 = vmatpush.bf16.msra.mxu0 %v5712
    %6796 = vmatmul.bf16.gmra.mxu0 %v3600
    %v6797 = vpop.f32.mrf.mxu0
    %v6798 = vadd.f32 %v6785, %v6797
    %v6799 = vpop.f32.mrf.mxu0
    %6800 = vdwg.mxu0
    %6801 = vmatpush.bf16.msra.mxu0 %v5817
    %6802 = vmatpush.bf16.msra.mxu0 %v5810
    %6803 = vmatpush.bf16.msra.mxu0 %v5803
    %6804 = vmatpush.bf16.msra.mxu0 %v5796
    %6805 = vmatpush.bf16.msra.mxu0 %v5789
    %6806 = vmatpush.bf16.msra.mxu0 %v5782
    %6807 = vmatpush.bf16.msra.mxu0 %v5775
    %6808 = vmatpush.bf16.msra.mxu0 %v5768
    %6809 = vmatmul.bf16.gmra.mxu0 %v3601
    %v6810 = vpop.f32.mrf.mxu0
    %v6811 = vadd.f32 %v6798, %v6810
    %v6812 = vpop.f32.mrf.mxu0
    %6813 = vdwg.mxu0
    %6814 = vmatpush.bf16.msra.mxu0 %v5873
    %6815 = vmatpush.bf16.msra.mxu0 %v5866
    %6816 = vmatpush.bf16.msra.mxu0 %v5859
    %6817 = vmatpush.bf16.msra.mxu0 %v5852
    %6818 = vmatpush.bf16.msra.mxu0 %v5845
    %6819 = vmatpush.bf16.msra.mxu0 %v5838
    %6820 = vmatpush.bf16.msra.mxu0 %v5831
    %6821 = vmatpush.bf16.msra.mxu0 %v5824
    %6822 = vmatmul.bf16.gmra.mxu0 %v3602
    %v6823 = vpop.f32.mrf.mxu0
    %v6824 = vadd.f32 %v6811, %v6823
    %v6825 = vpop.f32.mrf.mxu0
    %6826 = vdwg.mxu0
    %6827 = vmatpush.bf16.msra.mxu0 %v5929
    %6828 = vmatpush.bf16.msra.mxu0 %v5922
    %6829 = vmatpush.bf16.msra.mxu0 %v5915
    %6830 = vmatpush.bf16.msra.mxu0 %v5908
    %6831 = vmatpush.bf16.msra.mxu0 %v5901
    %6832 = vmatpush.bf16.msra.mxu0 %v5894
    %6833 = vmatpush.bf16.msra.mxu0 %v5887
    %6834 = vmatpush.bf16.msra.mxu0 %v5880
    %6835 = vmatmul.bf16.gmra.mxu0 %v3603
    %v6836 = vpop.f32.mrf.mxu0
    %v6837 = vadd.f32 %v6824, %v6836
    %v6838 = vpop.f32.mrf.mxu0
    %6839 = vdwg.mxu0
    %6840 = vmatpush.bf16.msra.mxu0 %v5985
    %6841 = vmatpush.bf16.msra.mxu0 %v5978
    %6842 = vmatpush.bf16.msra.mxu0 %v5971
    %6843 = vmatpush.bf16.msra.mxu0 %v5964
    %6844 = vmatpush.bf16.msra.mxu0 %v5957
    %6845 = vmatpush.bf16.msra.mxu0 %v5950
    %6846 = vmatpush.bf16.msra.mxu0 %v5943
    %6847 = vmatpush.bf16.msra.mxu0 %v5936
    %6848 = vmatmul.bf16.gmra.mxu0 %v3604
    %v6849 = vpop.f32.mrf.mxu0
    %v6850 = vadd.f32 %v6837, %v6849
    %v6851 = vpop.f32.mrf.mxu0
    %6852 = vdwg.mxu0
    %6853 = vmatpush.bf16.msra.mxu0 %v5594
    %6854 = vmatpush.bf16.msra.mxu0 %v5587
    %6855 = vmatpush.bf16.msra.mxu0 %v5580
    %6856 = vmatpush.bf16.msra.mxu0 %v5573
    %6857 = vmatpush.bf16.msra.mxu0 %v5566
    %6858 = vmatpush.bf16.msra.mxu0 %v5559
    %6859 = vmatpush.bf16.msra.mxu0 %v5552
    %6860 = vmatpush.bf16.msra.mxu0 %v5545
    %6861 = vmatmul.bf16.gmra.mxu0 %v3597
    %v6862 = vpop.f32.mrf.mxu0
    %v6863 = vadd.f32 %v4123, %v6862
    %v6864 = vpop.f32.mrf.mxu0
    %6865 = vdwg.mxu0
    %6866 = vmatpush.bf16.msra.mxu0 %v5650
    %6867 = vmatpush.bf16.msra.mxu0 %v5643
    %6868 = vmatpush.bf16.msra.mxu0 %v5636
    %6869 = vmatpush.bf16.msra.mxu0 %v5629
    %6870 = vmatpush.bf16.msra.mxu0 %v5622
    %6871 = vmatpush.bf16.msra.mxu0 %v5615
    %6872 = vmatpush.bf16.msra.mxu0 %v5608
    %6873 = vmatpush.bf16.msra.mxu0 %v5601
    %6874 = vmatmul.bf16.gmra.mxu0 %v3598
    %v6875 = vpop.f32.mrf.mxu0
    %v6876 = vadd.f32 %v6863, %v6875
    %v6877 = vpop.f32.mrf.mxu0
    %6878 = vdwg.mxu0
    %6879 = vmatpush.bf16.msra.mxu0 %v5706
    %6880 = vmatpush.bf16.msra.mxu0 %v5699
    %6881 = vmatpush.bf16.msra.mxu0 %v5692
    %6882 = vmatpush.bf16.msra.mxu0 %v5685
    %6883 = vmatpush.bf16.msra.mxu0 %v5678
    %6884 = vmatpush.bf16.msra.mxu0 %v5671
    %6885 = vmatpush.bf16.msra.mxu0 %v5664
    %6886 = vmatpush.bf16.msra.mxu0 %v5657
    %6887 = vmatmul.bf16.gmra.mxu0 %v3599
    %v6888 = vpop.f32.mrf.mxu0
    %v6889 = vadd.f32 %v6876, %v6888
    %v6890 = vpop.f32.mrf.mxu0
    %6891 = vdwg.mxu0
    %6892 = vmatpush.bf16.msra.mxu0 %v5762
    %6893 = vmatpush.bf16.msra.mxu0 %v5755
    %6894 = vmatpush.bf16.msra.mxu0 %v5748
    %6895 = vmatpush.bf16.msra.mxu0 %v5741
    %6896 = vmatpush.bf16.msra.mxu0 %v5734
    %6897 = vmatpush.bf16.msra.mxu0 %v5727
    %6898 = vmatpush.bf16.msra.mxu0 %v5720
    %6899 = vmatpush.bf16.msra.mxu0 %v5713
    %6900 = vmatmul.bf16.gmra.mxu0 %v3600
    %v6901 = vpop.f32.mrf.mxu0
    %v6902 = vadd.f32 %v6889, %v6901
    %v6903 = vpop.f32.mrf.mxu0
    %6904 = vdwg.mxu0
    %6905 = vmatpush.bf16.msra.mxu0 %v5818
    %6906 = vmatpush.bf16.msra.mxu0 %v5811
    %6907 = vmatpush.bf16.msra.mxu0 %v5804
    %6908 = vmatpush.bf16.msra.mxu0 %v5797
    %6909 = vmatpush.bf16.msra.mxu0 %v5790
    %6910 = vmatpush.bf16.msra.mxu0 %v5783
    %6911 = vmatpush.bf16.msra.mxu0 %v5776
    %6912 = vmatpush.bf16.msra.mxu0 %v5769
    %6913 = vmatmul.bf16.gmra.mxu0 %v3601
    %v6914 = vpop.f32.mrf.mxu0
    %v6915 = vadd.f32 %v6902, %v6914
    %v6916 = vpop.f32.mrf.mxu0
    %6917 = vdwg.mxu0
    %6918 = vmatpush.bf16.msra.mxu0 %v5874
    %6919 = vmatpush.bf16.msra.mxu0 %v5867
    %6920 = vmatpush.bf16.msra.mxu0 %v5860
    %6921 = vmatpush.bf16.msra.mxu0 %v5853
    %6922 = vmatpush.bf16.msra.mxu0 %v5846
    %6923 = vmatpush.bf16.msra.mxu0 %v5839
    %6924 = vmatpush.bf16.msra.mxu0 %v5832
    %6925 = vmatpush.bf16.msra.mxu0 %v5825
    %6926 = vmatmul.bf16.gmra.mxu0 %v3602
    %v6927 = vpop.f32.mrf.mxu0
    %v6928 = vadd.f32 %v6915, %v6927
    %v6929 = vpop.f32.mrf.mxu0
    %6930 = vdwg.mxu0
    %6931 = vmatpush.bf16.msra.mxu0 %v5930
    %6932 = vmatpush.bf16.msra.mxu0 %v5923
    %6933 = vmatpush.bf16.msra.mxu0 %v5916
    %6934 = vmatpush.bf16.msra.mxu0 %v5909
    %6935 = vmatpush.bf16.msra.mxu0 %v5902
    %6936 = vmatpush.bf16.msra.mxu0 %v5895
    %6937 = vmatpush.bf16.msra.mxu0 %v5888
    %6938 = vmatpush.bf16.msra.mxu0 %v5881
    %6939 = vmatmul.bf16.gmra.mxu0 %v3603
    %v6940 = vpop.f32.mrf.mxu0
    %v6941 = vadd.f32 %v6928, %v6940
    %v6942 = vpop.f32.mrf.mxu0
    %6943 = vdwg.mxu0
    %6944 = vmatpush.bf16.msra.mxu0 %v5986
    %6945 = vmatpush.bf16.msra.mxu0 %v5979
    %6946 = vmatpush.bf16.msra.mxu0 %v5972
    %6947 = vmatpush.bf16.msra.mxu0 %v5965
    %6948 = vmatpush.bf16.msra.mxu0 %v5958
    %6949 = vmatpush.bf16.msra.mxu0 %v5951
    %6950 = vmatpush.bf16.msra.mxu0 %v5944
    %6951 = vmatpush.bf16.msra.mxu0 %v5937
    %6952 = vmatmul.bf16.gmra.mxu0 %v3604
    %v6953 = vpop.f32.mrf.mxu0
    %v6954 = vadd.f32 %v6941, %v6953
    %v6955 = vpop.f32.mrf.mxu0
    %6956 = vdwg.mxu0
    %6957 = vmatpush.bf16.msra.mxu0 %v5595
    %6958 = vmatpush.bf16.msra.mxu0 %v5588
    %6959 = vmatpush.bf16.msra.mxu0 %v5581
    %6960 = vmatpush.bf16.msra.mxu0 %v5574
    %6961 = vmatpush.bf16.msra.mxu0 %v5567
    %6962 = vmatpush.bf16.msra.mxu0 %v5560
    %6963 = vmatpush.bf16.msra.mxu0 %v5553
    %6964 = vmatpush.bf16.msra.mxu0 %v5546
    %6965 = vmatmul.bf16.gmra.mxu0 %v3597
    %v6966 = vpop.f32.mrf.mxu0
    %v6967 = vadd.f32 %v4124, %v6966
    %v6968 = vpop.f32.mrf.mxu0
    %6969 = vdwg.mxu0
    %6970 = vmatpush.bf16.msra.mxu0 %v5651
    %6971 = vmatpush.bf16.msra.mxu0 %v5644
    %6972 = vmatpush.bf16.msra.mxu0 %v5637
    %6973 = vmatpush.bf16.msra.mxu0 %v5630
    %6974 = vmatpush.bf16.msra.mxu0 %v5623
    %6975 = vmatpush.bf16.msra.mxu0 %v5616
    %6976 = vmatpush.bf16.msra.mxu0 %v5609
    %6977 = vmatpush.bf16.msra.mxu0 %v5602
    %6978 = vmatmul.bf16.gmra.mxu0 %v3598
    %v6979 = vpop.f32.mrf.mxu0
    %v6980 = vadd.f32 %v6967, %v6979
    %v6981 = vpop.f32.mrf.mxu0
    %6982 = vdwg.mxu0
    %6983 = vmatpush.bf16.msra.mxu0 %v5707
    %6984 = vmatpush.bf16.msra.mxu0 %v5700
    %6985 = vmatpush.bf16.msra.mxu0 %v5693
    %6986 = vmatpush.bf16.msra.mxu0 %v5686
    %6987 = vmatpush.bf16.msra.mxu0 %v5679
    %6988 = vmatpush.bf16.msra.mxu0 %v5672
    %6989 = vmatpush.bf16.msra.mxu0 %v5665
    %6990 = vmatpush.bf16.msra.mxu0 %v5658
    %6991 = vmatmul.bf16.gmra.mxu0 %v3599
    %v6992 = vpop.f32.mrf.mxu0
    %v6993 = vadd.f32 %v6980, %v6992
    %v6994 = vpop.f32.mrf.mxu0
    %6995 = vdwg.mxu0
    %6996 = vmatpush.bf16.msra.mxu0 %v5763
    %6997 = vmatpush.bf16.msra.mxu0 %v5756
    %6998 = vmatpush.bf16.msra.mxu0 %v5749
    %6999 = vmatpush.bf16.msra.mxu0 %v5742
    %7000 = vmatpush.bf16.msra.mxu0 %v5735
    %7001 = vmatpush.bf16.msra.mxu0 %v5728
    %7002 = vmatpush.bf16.msra.mxu0 %v5721
    %7003 = vmatpush.bf16.msra.mxu0 %v5714
    %7004 = vmatmul.bf16.gmra.mxu0 %v3600
    %v7005 = vpop.f32.mrf.mxu0
    %v7006 = vadd.f32 %v6993, %v7005
    %v7007 = vpop.f32.mrf.mxu0
    %7008 = vdwg.mxu0
    %7009 = vmatpush.bf16.msra.mxu0 %v5819
    %7010 = vmatpush.bf16.msra.mxu0 %v5812
    %7011 = vmatpush.bf16.msra.mxu0 %v5805
    %7012 = vmatpush.bf16.msra.mxu0 %v5798
    %7013 = vmatpush.bf16.msra.mxu0 %v5791
    %7014 = vmatpush.bf16.msra.mxu0 %v5784
    %7015 = vmatpush.bf16.msra.mxu0 %v5777
    %7016 = vmatpush.bf16.msra.mxu0 %v5770
    %7017 = vmatmul.bf16.gmra.mxu0 %v3601
    %v7018 = vpop.f32.mrf.mxu0
    %v7019 = vadd.f32 %v7006, %v7018
    %v7020 = vpop.f32.mrf.mxu0
    %7021 = vdwg.mxu0
    %7022 = vmatpush.bf16.msra.mxu0 %v5875
    %7023 = vmatpush.bf16.msra.mxu0 %v5868
    %7024 = vmatpush.bf16.msra.mxu0 %v5861
    %7025 = vmatpush.bf16.msra.mxu0 %v5854
    %7026 = vmatpush.bf16.msra.mxu0 %v5847
    %7027 = vmatpush.bf16.msra.mxu0 %v5840
    %7028 = vmatpush.bf16.msra.mxu0 %v5833
    %7029 = vmatpush.bf16.msra.mxu0 %v5826
    %7030 = vmatmul.bf16.gmra.mxu0 %v3602
    %v7031 = vpop.f32.mrf.mxu0
    %v7032 = vadd.f32 %v7019, %v7031
    %v7033 = vpop.f32.mrf.mxu0
    %7034 = vdwg.mxu0
    %7035 = vmatpush.bf16.msra.mxu0 %v5931
    %7036 = vmatpush.bf16.msra.mxu0 %v5924
    %7037 = vmatpush.bf16.msra.mxu0 %v5917
    %7038 = vmatpush.bf16.msra.mxu0 %v5910
    %7039 = vmatpush.bf16.msra.mxu0 %v5903
    %7040 = vmatpush.bf16.msra.mxu0 %v5896
    %7041 = vmatpush.bf16.msra.mxu0 %v5889
    %7042 = vmatpush.bf16.msra.mxu0 %v5882
    %7043 = vmatmul.bf16.gmra.mxu0 %v3603
    %v7044 = vpop.f32.mrf.mxu0
    %v7045 = vadd.f32 %v7032, %v7044
    %v7046 = vpop.f32.mrf.mxu0
    %7047 = vdwg.mxu0
    %7048 = vmatpush.bf16.msra.mxu0 %v5987
    %7049 = vmatpush.bf16.msra.mxu0 %v5980
    %7050 = vmatpush.bf16.msra.mxu0 %v5973
    %7051 = vmatpush.bf16.msra.mxu0 %v5966
    %7052 = vmatpush.bf16.msra.mxu0 %v5959
    %7053 = vmatpush.bf16.msra.mxu0 %v5952
    %7054 = vmatpush.bf16.msra.mxu0 %v5945
    %7055 = vmatpush.bf16.msra.mxu0 %v5938
    %7056 = vmatmul.bf16.gmra.mxu0 %v3604
    %v7057 = vpop.f32.mrf.mxu0
    %v7058 = vadd.f32 %v7045, %v7057
    %v7059 = vpop.f32.mrf.mxu0
    %7060 = vdwg.mxu0
    %7061 = vmatpush.bf16.msra.mxu0 %v5596
    %7062 = vmatpush.bf16.msra.mxu0 %v5589
    %7063 = vmatpush.bf16.msra.mxu0 %v5582
    %7064 = vmatpush.bf16.msra.mxu0 %v5575
    %7065 = vmatpush.bf16.msra.mxu0 %v5568
    %7066 = vmatpush.bf16.msra.mxu0 %v5561
    %7067 = vmatpush.bf16.msra.mxu0 %v5554
    %7068 = vmatpush.bf16.msra.mxu0 %v5547
    %7069 = vmatmul.bf16.gmra.mxu0 %v3597
    %v7070 = vpop.f32.mrf.mxu0
    %v7071 = vadd.f32 %v4125, %v7070
    %v7072 = vpop.f32.mrf.mxu0
    %7073 = vdwg.mxu0
    %7074 = vmatpush.bf16.msra.mxu0 %v5652
    %7075 = vmatpush.bf16.msra.mxu0 %v5645
    %7076 = vmatpush.bf16.msra.mxu0 %v5638
    %7077 = vmatpush.bf16.msra.mxu0 %v5631
    %7078 = vmatpush.bf16.msra.mxu0 %v5624
    %7079 = vmatpush.bf16.msra.mxu0 %v5617
    %7080 = vmatpush.bf16.msra.mxu0 %v5610
    %7081 = vmatpush.bf16.msra.mxu0 %v5603
    %7082 = vmatmul.bf16.gmra.mxu0 %v3598
    %v7083 = vpop.f32.mrf.mxu0
    %v7084 = vadd.f32 %v7071, %v7083
    %v7085 = vpop.f32.mrf.mxu0
    %7086 = vdwg.mxu0
    %7087 = vmatpush.bf16.msra.mxu0 %v5708
    %7088 = vmatpush.bf16.msra.mxu0 %v5701
    %7089 = vmatpush.bf16.msra.mxu0 %v5694
    %7090 = vmatpush.bf16.msra.mxu0 %v5687
    %7091 = vmatpush.bf16.msra.mxu0 %v5680
    %7092 = vmatpush.bf16.msra.mxu0 %v5673
    %7093 = vmatpush.bf16.msra.mxu0 %v5666
    %7094 = vmatpush.bf16.msra.mxu0 %v5659
    %7095 = vmatmul.bf16.gmra.mxu0 %v3599
    %v7096 = vpop.f32.mrf.mxu0
    %v7097 = vadd.f32 %v7084, %v7096
    %v7098 = vpop.f32.mrf.mxu0
    %7099 = vdwg.mxu0
    %7100 = vmatpush.bf16.msra.mxu0 %v5764
    %7101 = vmatpush.bf16.msra.mxu0 %v5757
    %7102 = vmatpush.bf16.msra.mxu0 %v5750
    %7103 = vmatpush.bf16.msra.mxu0 %v5743
    %7104 = vmatpush.bf16.msra.mxu0 %v5736
    %7105 = vmatpush.bf16.msra.mxu0 %v5729
    %7106 = vmatpush.bf16.msra.mxu0 %v5722
    %7107 = vmatpush.bf16.msra.mxu0 %v5715
    %7108 = vmatmul.bf16.gmra.mxu0 %v3600
    %v7109 = vpop.f32.mrf.mxu0
    %v7110 = vadd.f32 %v7097, %v7109
    %v7111 = vpop.f32.mrf.mxu0
    %7112 = vdwg.mxu0
    %7113 = vmatpush.bf16.msra.mxu0 %v5820
    %7114 = vmatpush.bf16.msra.mxu0 %v5813
    %7115 = vmatpush.bf16.msra.mxu0 %v5806
    %7116 = vmatpush.bf16.msra.mxu0 %v5799
    %7117 = vmatpush.bf16.msra.mxu0 %v5792
    %7118 = vmatpush.bf16.msra.mxu0 %v5785
    %7119 = vmatpush.bf16.msra.mxu0 %v5778
    %7120 = vmatpush.bf16.msra.mxu0 %v5771
    %7121 = vmatmul.bf16.gmra.mxu0 %v3601
    %v7122 = vpop.f32.mrf.mxu0
    %v7123 = vadd.f32 %v7110, %v7122
    %v7124 = vpop.f32.mrf.mxu0
    %7125 = vdwg.mxu0
    %7126 = vmatpush.bf16.msra.mxu0 %v5876
    %7127 = vmatpush.bf16.msra.mxu0 %v5869
    %7128 = vmatpush.bf16.msra.mxu0 %v5862
    %7129 = vmatpush.bf16.msra.mxu0 %v5855
    %7130 = vmatpush.bf16.msra.mxu0 %v5848
    %7131 = vmatpush.bf16.msra.mxu0 %v5841
    %7132 = vmatpush.bf16.msra.mxu0 %v5834
    %7133 = vmatpush.bf16.msra.mxu0 %v5827
    %7134 = vmatmul.bf16.gmra.mxu0 %v3602
    %v7135 = vpop.f32.mrf.mxu0
    %v7136 = vadd.f32 %v7123, %v7135
    %v7137 = vpop.f32.mrf.mxu0
    %7138 = vdwg.mxu0
    %7139 = vmatpush.bf16.msra.mxu0 %v5932
    %7140 = vmatpush.bf16.msra.mxu0 %v5925
    %7141 = vmatpush.bf16.msra.mxu0 %v5918
    %7142 = vmatpush.bf16.msra.mxu0 %v5911
    %7143 = vmatpush.bf16.msra.mxu0 %v5904
    %7144 = vmatpush.bf16.msra.mxu0 %v5897
    %7145 = vmatpush.bf16.msra.mxu0 %v5890
    %7146 = vmatpush.bf16.msra.mxu0 %v5883
    %7147 = vmatmul.bf16.gmra.mxu0 %v3603
    %v7148 = vpop.f32.mrf.mxu0
    %v7149 = vadd.f32 %v7136, %v7148
    %v7150 = vpop.f32.mrf.mxu0
    %7151 = vdwg.mxu0
    %7152 = vmatpush.bf16.msra.mxu0 %v5988
    %7153 = vmatpush.bf16.msra.mxu0 %v5981
    %7154 = vmatpush.bf16.msra.mxu0 %v5974
    %7155 = vmatpush.bf16.msra.mxu0 %v5967
    %7156 = vmatpush.bf16.msra.mxu0 %v5960
    %7157 = vmatpush.bf16.msra.mxu0 %v5953
    %7158 = vmatpush.bf16.msra.mxu0 %v5946
    %7159 = vmatpush.bf16.msra.mxu0 %v5939
    %7160 = vmatmul.bf16.gmra.mxu0 %v3604
    %v7161 = vpop.f32.mrf.mxu0
    %v7162 = vadd.f32 %v7149, %v7161
    %v7163 = vpop.f32.mrf.mxu0
    %7164 = vdwg.mxu0
    %v7165 = vtanh.pop %v6538
    %v7166 = vtanh.pop %v6642
    %v7167 = vtanh.pop %v6746
    %v7168 = vtanh.pop %v6850
    %v7169 = vtanh.pop %v6954
    %v7170 = vtanh.pop %v7058
    %v7171 = vtanh.pop %v7162
    %7172 = vst [vmem:[%s17] sm:$0xff] %v7165
    %7173 = vst [vmem:[%s17 + $0x8] sm:$0xff] %v7166
    %7174 = vst [vmem:[%s17 + $0x10] sm:$0xff] %v7167
    %7175 = vst [vmem:[%s17 + $0x18] sm:$0xff] %v7168
    %7176 = vst [vmem:[%s17 + $0x20] sm:$0xff] %v7169
    %7177 = vst [vmem:[%s17 + $0x28] sm:$0xff] %v7170
    %7178 = vst [vmem:[%s17 + $0x30] sm:$0xff] %v7171
    // Predicated region
    $region130: #{generator_forward.1} parent=1 // pred_check
      _
    $region131: #{generator_forward.1} parent=1 // pred_check_branch
      %7180 = sbr.rel (0) target = $region133
    $region132: #{generator_forward.1} parent=1 // pred_region
      _
    $region133: #{generator_forward.1} parent=1 // pred_fallthru
      _
    // Predicated region
    $region134: #{generator_forward.1} parent=1 // pred_check
      _
    $region135: #{generator_forward.1} parent=1 // pred_check_branch
      %7182 = sbr.rel (0) target = $region137
    $region136: #{generator_forward.1} parent=1 // pred_region
      _
    $region137: #{generator_forward.1} parent=1 // pred_fallthru
      _
    %7183 = vsyncpa [#allocation5], 1
    %7184 = vsyncpa [#allocation7], 1
    %7185 = vsyncpa [#allocation10], 1
    %7186 = vsyncpa [#allocation13], 1
    %7187 = vsyncpa [#allocation16], 1
    %7188 = vsyncpa [#allocation19], 1
    %7189 = vsyncpa [#allocation22], 1
    %7190 = vsyncpa [#allocation25], 1
  %7191 = vsyncmov [#allocation3]
  %s7192 = vpop.sfrf %7191
  %p7193 = scmp.eq.s32.totalorder %s7192, 0
  %p7194 = pneg %p7193
  %7196 = shalt.err (%p7194)

</llo_original>
